<compile_context>
chip_gen: v5e
topology: v5e:2x2
jax: 0.10.0
libtpu: 0.0.40
codegen_flags: <defaults>
</compile_context>

<pallas_src>
import functools
import math

import jax
import jax.numpy as jnp
from jax.experimental import pallas as pl
from jax.experimental.pallas import tpu as pltpu


# ----------------------------------------------------------------------------
# config helpers
# ----------------------------------------------------------------------------
def _default_vmem_limit():
    # Generation-aware scoped-VMEM budget (~75% of physical VMEM):
    #   v5e/v6e (128 MiB) -> ~96 MiB, v7x (64 MiB) -> ~48 MiB.
    try:
        cap = int(getattr(pltpu.get_tpu_info(), "vmem_capacity_bytes", 0))
    except Exception:
        cap = 0
    if cap <= 0:
        cap = 64 * 1024 * 1024          # conservative (v7x-sized) fallback
    return min((cap * 3) // 4, 112 * 1024 * 1024)


_VMEM_LIMIT = _default_vmem_limit()


def _pick_kv_block_size(sk):
    """KV tile: full Sk when small, else a multiple of 128 that divides Sk."""
    if sk <= 512:
        return sk
    for tk in (512, 384, 256, 128):
        if sk % tk == 0:
            return tk
    return sk


def _pick_ff_block_size(d_ff):
    """d_ff tile: full when small, else a multiple of 128 that divides d_ff."""
    if d_ff <= 1024:
        return d_ff
    for tf in (1024, 512, 256, 128):
        if d_ff % tf == 0:
            return tf
    return d_ff


# ----------------------------------------------------------------------------
# kernels
# ----------------------------------------------------------------------------
def _linear_kernel(x_ref, w_ref, b_ref, o_ref):
    # y = x @ W + b ; bf16 MXU inputs, f32 accumulation.
    y = jnp.dot(x_ref[...].astype(jnp.bfloat16), w_ref[...],
                preferred_element_type=jnp.float32)
    o_ref[...] = (y + b_ref[...]).astype(o_ref.dtype)


def _linear_add_ln_kernel(x_ref, w_ref, b_ref, res_ref, g_ref, beta_ref, o_ref):
    # LayerNorm(residual + (x @ W + b)), eps=1e-5, biased variance (PyTorch).
    y = jnp.dot(x_ref[...].astype(jnp.bfloat16), w_ref[...],
                preferred_element_type=jnp.float32) + b_ref[...]
    v = y + res_ref[...].astype(jnp.float32)
    mu = jnp.mean(v, axis=-1, keepdims=True)
    c = v - mu
    var = jnp.mean(c * c, axis=-1, keepdims=True)
    o_ref[...] = (c * jax.lax.rsqrt(var + 1e-5) * g_ref[...]
                  + beta_ref[...]).astype(o_ref.dtype)


def _ffn_add_ln_kernel(x_ref, w1_ref, b1_ref, w2_ref, b2_ref, g_ref, beta_ref,
                       o_ref, acc_ref):
    # LayerNorm(x + linear2(relu(linear1(x)))) with d_ff tiled on grid axis 1.
    f = pl.program_id(1)

    @pl.when(f == 0)
    def _():
        acc_ref[...] = jnp.zeros_like(acc_ref)

    xb = x_ref[...].astype(jnp.bfloat16)
    h = jnp.dot(xb, w1_ref[...], preferred_element_type=jnp.float32) + b1_ref[...]
    h = jnp.maximum(h, 0.0)                       # eval-mode dropout = identity
    acc_ref[...] += jnp.dot(h.astype(jnp.bfloat16), w2_ref[...],
                            preferred_element_type=jnp.float32)

    @pl.when(f == pl.num_programs(1) - 1)
    def _():
        v = acc_ref[...] + b2_ref[...] + x_ref[...].astype(jnp.float32)
        mu = jnp.mean(v, axis=-1, keepdims=True)
        c = v - mu
        var = jnp.mean(c * c, axis=-1, keepdims=True)
        o_ref[...] = (c * jax.lax.rsqrt(var + 1e-5) * g_ref[...]
                      + beta_ref[...]).astype(o_ref.dtype)


def _mha_flash_kernel(q_ref, k_ref, v_ref, *rest, n_heads, dk, scale, has_mask):
    # One batch element per grid row, KV tiles on grid axis 1 (online softmax).
    # Heads are handled with static feature slices -> no in-kernel transposes.
    if has_mask:
        mask_ref = rest[0]
        rest = rest[1:]
    o_ref, m_scr, l_scr, acc_scr = rest

    f = pl.program_id(1)

    @pl.when(f == 0)
    def _():
        m_scr[...] = jnp.full_like(m_scr, -jnp.inf)
        l_scr[...] = jnp.zeros_like(l_scr)
        acc_scr[...] = jnp.zeros_like(acc_scr)

    for h in range(n_heads):
        lo, hi = h * dk, (h + 1) * dk
        q = q_ref[0, :, lo:hi].astype(jnp.bfloat16)          # (Sq, dk)
        k = k_ref[0, :, lo:hi].astype(jnp.bfloat16)          # (tk, dk)
        v = v_ref[0, :, lo:hi].astype(jnp.bfloat16)          # (tk, dk)
        s = jax.lax.dot_general(q, k, (((1,), (1,)), ((), ())),
                                preferred_element_type=jnp.float32) * scale
        if has_mask:
            hm = h if mask_ref.shape[1] > 1 else 0
            s = jnp.where(mask_ref[0, hm] == 0, -1e9, s)     # masked_fill(mask==0)

        m_prev = m_scr[h]                                    # (Sq, 1)
        m_new = jnp.maximum(m_prev, jnp.max(s, axis=-1, keepdims=True))
        alpha = jnp.exp(m_prev - m_new)
        p = jnp.exp(s - m_new)                               # (Sq, tk)
        l_scr[h] = alpha * l_scr[h] + jnp.sum(p, axis=-1, keepdims=True)
        acc_scr[h] = alpha * acc_scr[h] + jnp.dot(
            p.astype(jnp.bfloat16), v, preferred_element_type=jnp.float32)
        m_scr[h] = m_new

    @pl.when(f == pl.num_programs(1) - 1)
    def _():
        for h in range(n_heads):
            inv_h = pl.reciprocal(l_scr[h], approx=True)
            o_ref[0, :, h * dk:(h + 1) * dk] = (acc_scr[h] * inv_h).astype(o_ref.dtype)


# ----------------------------------------------------------------------------
# Pallas wrappers
# ----------------------------------------------------------------------------
def linear_pallas(x, w, b, *, tm=512):
    """y = x @ w + b over the last dim.  `w` is (d_in, d_out) = torch weight.T,
    stored bf16; activations stay f32 in HBM and are cast to bf16 in-kernel."""
    *lead, d_in = x.shape
    d_out = w.shape[1]
    M = math.prod(lead)
    tm = min(tm, M)
    cost = pl.CostEstimate(
        flops=2 * M * d_in * d_out, transcendentals=0,
        bytes_accessed=(4 * M * d_in + int(w.dtype.itemsize) * d_in * d_out
                        + 4 * d_out + 4 * M * d_out))
    out = pl.pallas_call(
        _linear_kernel,
        out_shape=jax.ShapeDtypeStruct((M, d_out), x.dtype),
        grid_spec=pltpu.PrefetchScalarGridSpec(
            num_scalar_prefetch=0, grid=(pl.cdiv(M, tm),),
            in_specs=[
                pl.BlockSpec((tm, d_in), lambda i: (i, 0)),
                # constant index maps -> weights/bias stay resident in VMEM
                pl.BlockSpec((d_in, d_out), lambda i: (0, 0)),
                pl.BlockSpec((1, d_out), lambda i: (0, 0)),
            ],
            out_specs=pl.BlockSpec((tm, d_out), lambda i: (i, 0))),
        compiler_params=pltpu.CompilerParams(
            dimension_semantics=("parallel",), vmem_limit_bytes=_VMEM_LIMIT),
        cost_estimate=cost,
    )(x.reshape(M, d_in), w, b.reshape(1, d_out))
    return out.reshape(*lead, d_out)


def linear_add_ln_pallas(x, w, b, residual, gamma, beta, *, tm=512):
    """LayerNorm(residual + x @ w + b) fused in one kernel."""
    *lead, d_in = x.shape
    d_out = w.shape[1]
    M = math.prod(lead)
    tm = min(tm, M)
    out = pl.pallas_call(
        _linear_add_ln_kernel,
        out_shape=jax.ShapeDtypeStruct((M, d_out), x.dtype),
        grid_spec=pltpu.PrefetchScalarGridSpec(
            num_scalar_prefetch=0, grid=(pl.cdiv(M, tm),),
            in_specs=[
                pl.BlockSpec((tm, d_in), lambda i: (i, 0)),
                pl.BlockSpec((d_in, d_out), lambda i: (0, 0)),
                pl.BlockSpec((1, d_out), lambda i: (0, 0)),
                pl.BlockSpec((tm, d_out), lambda i: (i, 0)),
                pl.BlockSpec((1, d_out), lambda i: (0, 0)),
                pl.BlockSpec((1, d_out), lambda i: (0, 0)),
            ],
            out_specs=pl.BlockSpec((tm, d_out), lambda i: (i, 0))),
        compiler_params=pltpu.CompilerParams(
            dimension_semantics=("parallel",), vmem_limit_bytes=_VMEM_LIMIT),
    )(x.reshape(M, d_in), w, b.reshape(1, d_out),
      residual.reshape(M, d_out), gamma.reshape(1, d_out), beta.reshape(1, d_out))
    return out.reshape(*lead, d_out)


def ffn_add_ln_pallas(x, w1, b1, w2, b2, gamma, beta, *, tm=256):
    """LayerNorm(x + linear2(relu(linear1(x)))), d_ff tiled on the grid."""
    B, S, d_model = x.shape
    d_ff = w1.shape[1]
    M = B * S
    tm = min(tm, M)
    tf = _pick_ff_block_size(d_ff)
    nf = d_ff // tf
    cost = pl.CostEstimate(
        flops=4 * M * d_model * d_ff, transcendentals=0,
        bytes_accessed=(4 * M * d_model + 2 * 2 * d_model * d_ff
                        + 4 * (d_ff + 3 * d_model) + 4 * M * d_model))
    out = pl.pallas_call(
        _ffn_add_ln_kernel,
        out_shape=jax.ShapeDtypeStruct((M, d_model), x.dtype),
        grid_spec=pltpu.PrefetchScalarGridSpec(
            num_scalar_prefetch=0, grid=(pl.cdiv(M, tm), nf),
            in_specs=[
                pl.BlockSpec((tm, d_model), lambda i, f: (i, 0)),   # x (and residual)
                pl.BlockSpec((d_model, tf), lambda i, f: (0, f)),   # W1 column block
                pl.BlockSpec((1, tf), lambda i, f: (0, f)),
                pl.BlockSpec((tf, d_model), lambda i, f: (f, 0)),   # W2 row block
                pl.BlockSpec((1, d_model), lambda i, f: (0, 0)),
                pl.BlockSpec((1, d_model), lambda i, f: (0, 0)),    # gamma
                pl.BlockSpec((1, d_model), lambda i, f: (0, 0)),    # beta
            ],
            out_specs=pl.BlockSpec((tm, d_model), lambda i, f: (i, 0)),
            scratch_shapes=[pltpu.VMEM((tm, d_model), jnp.float32)]),
        compiler_params=pltpu.CompilerParams(
            dimension_semantics=("parallel", "arbitrary"),
            vmem_limit_bytes=_VMEM_LIMIT),
        cost_estimate=cost,
    )(x.reshape(M, d_model), w1, b1.reshape(1, d_ff), w2,
      b2.reshape(1, d_model), gamma.reshape(1, d_model), beta.reshape(1, d_model))
    return out.reshape(B, S, d_model)


def flash_mha_pallas(q_src, k_src, v_src, mask, *, feat_blocks=(0, 0, 0),
                     n_heads, d_model):
    """Flash-style multi-head attention.

    q_src/k_src/v_src: (B, S, n*d_model) buffers; feat_blocks gives the
    feature-block offset (in units of d_model) of Q/K/V inside each buffer,
    so the fused QKV projection output can be consumed directly.
    mask: None, or any array broadcastable to (B, H, Sq, Sk); nonzero = keep.
    """
    B, Sq = q_src.shape[0], q_src.shape[1]
    Sk = k_src.shape[1]
    dk = d_model // n_heads
    qb, kb, vb = feat_blocks
    tk = _pick_kv_block_size(Sk)
    num_kv = Sk // tk
    scale = 1.0 / math.sqrt(dk)

    in_specs = [
        pl.BlockSpec((1, Sq, d_model), lambda b, f, o=qb: (b, 0, o)),
        pl.BlockSpec((1, tk, d_model), lambda b, f, o=kb: (b, f, o)),
        pl.BlockSpec((1, tk, d_model), lambda b, f, o=vb: (b, f, o)),
    ]
    args = [q_src, k_src, v_src]

    has_mask = mask is not None
    if has_mask:
        m = jnp.asarray(mask)
        while m.ndim < 4:
            m = m[None]
        m = jnp.broadcast_to(m, (m.shape[0], m.shape[1], Sq, Sk)).astype(jnp.bfloat16)
        Bm, Hm = m.shape[0], m.shape[1]
        if Bm > 1:
            mask_map = lambda b, f: (b, 0, 0, f)
        else:
            mask_map = lambda b, f: (0, 0, 0, f)
        in_specs.append(pl.BlockSpec((1, Hm, Sq, tk), mask_map))
        args.append(m)
    # TODO(synk): when the mask is known to be causal, generate it in-kernel
    # via lax.broadcasted_iota and skip the mask DMA entirely.

    kern = functools.partial(_mha_flash_kernel, n_heads=n_heads, dk=dk,
                             scale=scale, has_mask=has_mask)
    out = pl.pallas_call(
        kern,
        out_shape=jax.ShapeDtypeStruct((B, Sq, d_model), q_src.dtype),
        grid_spec=pltpu.PrefetchScalarGridSpec(
            num_scalar_prefetch=0, grid=(B, num_kv),
            in_specs=in_specs,
            out_specs=pl.BlockSpec((1, Sq, d_model), lambda b, f: (b, 0, 0)),
            scratch_shapes=[
                pltpu.VMEM((n_heads, Sq, 1), jnp.float32),    # running max
                pltpu.VMEM((n_heads, Sq, 1), jnp.float32),    # running sum
                pltpu.VMEM((n_heads, Sq, dk), jnp.float32),   # output accumulator
            ]),
        compiler_params=pltpu.CompilerParams(
            dimension_semantics=("parallel", "arbitrary"),
            vmem_limit_bytes=_VMEM_LIMIT),
    )(*args)
    return out


# ----------------------------------------------------------------------------
# model forward (eval mode)
# ----------------------------------------------------------------------------
def decoder_layer(p, x, enc, src_mask, tgt_mask, *, n_heads):
    d_model = x.shape[-1]
    fused_layout = (d_model % 128 == 0)

    # --- masked self-attention (+ residual + LayerNorm fused into out-proj) ---
    qkv = linear_pallas(x, p["self_w_qkv"], p["self_b_qkv"])        # (B, S, 3*d_model)
    if fused_layout:
        ctx = flash_mha_pallas(qkv, qkv, qkv, tgt_mask, feat_blocks=(0, 1, 2),
                               n_heads=n_heads, d_model=d_model)
    else:
        q, k, v = jnp.split(qkv, 3, axis=-1)
        ctx = flash_mha_pallas(q, k, v, tgt_mask, feat_blocks=(0, 0, 0),
                               n_heads=n_heads, d_model=d_model)
    x = linear_add_ln_pallas(ctx, p["self_w_o"], p["self_b_o"], x,
                             p["ln1_g"], p["ln1_b"])

    # --- cross-attention (+ residual + LayerNorm fused into out-proj) ---
    q = linear_pallas(x, p["cross_w_q"], p["cross_b_q"])
    kv = linear_pallas(enc, p["cross_w_kv"], p["cross_b_kv"])       # (B, Sk, 2*d_model)
    if fused_layout:
        ctx = flash_mha_pallas(q, kv, kv, src_mask, feat_blocks=(0, 0, 1),
                               n_heads=n_heads, d_model=d_model)
    else:
        k, v = jnp.split(kv, 2, axis=-1)
        ctx = flash_mha_pallas(q, k, v, src_mask, feat_blocks=(0, 0, 0),
                               n_heads=n_heads, d_model=d_model)
    x = linear_add_ln_pallas(ctx, p["cross_w_o"], p["cross_b_o"], x,
                             p["ln2_g"], p["ln2_b"])

    # --- feed-forward + residual + LayerNorm (single fused kernel) ---
    x = ffn_add_ln_pallas(x, p["w1"], p["b1"], p["w2"], p["b2"],
                          p["ln3_g"], p["ln3_b"])
    return x


def decoder_forward(fast_params, tokens, encoder_output, src_mask, tgt_mask,
                    *, n_heads, d_model):
    # Embedding gather + positional-encoding add stay in plain JAX.
    # TODO(synk): Pallas DMA-gather embedding lookup for very large vocab tables.
    x = fast_params["embedding"][tokens] * math.sqrt(d_model)
    # Faithful to the reference module: pe[:x.size(0)] indexes by *batch*
    # (pe buffer is (max_len, 1, d_model)) and broadcasts over the seq dim.
    x = x + fast_params["pe"][: tokens.shape[0]]
    # eval-mode dropout = identity
    for lp in fast_params["layers"]:
        x = decoder_layer(lp, x, encoder_output, src_mask, tgt_mask,
                          n_heads=n_heads)
    return x


# ----------------------------------------------------------------------------
# params / positional encoding / param prep
# ----------------------------------------------------------------------------
def _make_positional_encoding(max_len, d_model):
    position = jnp.arange(max_len, dtype=jnp.float32)[:, None]
    div_term = jnp.exp(jnp.arange(0, d_model, 2, dtype=jnp.float32)
                       * (-math.log(10000.0) / d_model))
    pe = jnp.zeros((max_len, d_model), jnp.float32)
    pe = pe.at[:, 0::2].set(jnp.sin(position * div_term))
    pe = pe.at[:, 1::2].set(jnp.cos(position * div_term))
    return pe[:, None, :]   # (max_len, 1, d_model), matches the torch buffer


def _linear_init(key, fan_in, fan_out):
    kw, kb = jax.random.split(key)
    bound = 1.0 / math.sqrt(fan_in)
    w = jax.random.uniform(kw, (fan_in, fan_out), jnp.float32, -bound, bound)
    b = jax.random.uniform(kb, (fan_out,), jnp.float32, -bound, bound)
    return w, b


def init_decoder_params(key, vocab_size, d_model, n_heads, n_layers, d_ff, max_len):
    key, k_emb = jax.random.split(key)
    params = {
        "embedding": jax.random.normal(k_emb, (vocab_size, d_model), jnp.float32),
        "pe": _make_positional_encoding(max_len, d_model),
        "layers": [],
    }
    for _ in range(n_layers):
        layer = {}
        for attn_name in ("self_attn", "cross_attn"):
            attn = {}
            for w_name in ("wq", "wk", "wv", "wo"):
                key, sub = jax.random.split(key)
                w, b = _linear_init(sub, d_model, d_model)
                attn[w_name] = w
                attn["b" + w_name[1]] = b
            layer[attn_name] = attn
        key, k1 = jax.random.split(key)
        layer["w1"], layer["b1"] = _linear_init(k1, d_model, d_ff)
        key, k2 = jax.random.split(key)
        layer["w2"], layer["b2"] = _linear_init(k2, d_ff, d_model)
        for i in (1, 2, 3):
            layer[f"ln{i}_g"] = jnp.ones((d_model,), jnp.float32)
            layer[f"ln{i}_b"] = jnp.zeros((d_model,), jnp.float32)
        params["layers"].append(layer)
    return params, key


def prepare_fast_params(params):
    """One-time prep: fuse QKV / KV projection weights, cast weights to bf16
    (activations stay f32; biases / LN params stay f32)."""
    bf = jnp.bfloat16
    fast = {"embedding": params["embedding"], "pe": params["pe"], "layers": []}
    for lp in params["layers"]:
        sa, ca = lp["self_attn"], lp["cross_attn"]
        fl = {
            "self_w_qkv": jnp.concatenate([sa["wq"], sa["wk"], sa["wv"]], axis=1).astype(bf),
            "self_b_qkv": jnp.concatenate([sa["bq"], sa["bk"], sa["bv"]], axis=0),
            "self_w_o": sa["wo"].astype(bf), "self_b_o": sa["bo"],
            "cross_w_q": ca["wq"].astype(bf), "cross_b_q": ca["bq"],
            "cross_w_kv": jnp.concatenate([ca["wk"], ca["wv"]], axis=1).astype(bf),
            "cross_b_kv": jnp.concatenate([ca["bk"], ca["bv"]], axis=0),
            "cross_w_o": ca["wo"].astype(bf), "cross_b_o": ca["bo"],
            "w1": lp["w1"].astype(bf), "b1": lp["b1"],
            "w2": lp["w2"].astype(bf), "b2": lp["b2"],
            "ln1_g": lp["ln1_g"], "ln1_b": lp["ln1_b"],
            "ln2_g": lp["ln2_g"], "ln2_b": lp["ln2_b"],
            "ln3_g": lp["ln3_g"], "ln3_b": lp["ln3_b"],
        }
        fast["layers"].append(fl)
    return fast


# ----------------------------------------------------------------------------
# plain-JAX reference (PyTorch math, mirroring the kernels' bf16 MXU casts)
# ----------------------------------------------------------------------------
def _attention_reference(q, k, v, mask, *, n_heads):
    bf = jnp.bfloat16
    B, Sq, d_model = q.shape
    Sk = k.shape[1]
    dk = d_model // n_heads
    Q = q.reshape(B, Sq, n_heads, dk).transpose(0, 2, 1, 3)
    K = k.reshape(B, Sk, n_heads, dk).transpose(0, 2, 1, 3)
    V = v.reshape(B, Sk, n_heads, dk).transpose(0, 2, 1, 3)
    s = jnp.einsum("bhqd,bhkd->bhqk", Q.astype(bf), K.astype(bf),
                   preferred_element_type=jnp.float32) * (1.0 / math.sqrt(dk))
    if mask is not None:
        m = jnp.asarray(mask)
        while m.ndim < 4:
            m = m[None]
        s = jnp.where(jnp.broadcast_to(m, s.shape) == 0, -1e9, s)
    s_max = jnp.max(s, axis=-1, keepdims=True)
    p = jnp.exp(s - s_max)
    l = jnp.sum(p, axis=-1, keepdims=True)
    o = jnp.einsum("bhqk,bhkd->bhqd", p.astype(bf), V.astype(bf),
                   preferred_element_type=jnp.float32) / l
    return o.transpose(0, 2, 1, 3).reshape(B, Sq, d_model)


def _reference_forward(params, tokens, encoder_output, src_mask, tgt_mask,
                       *, n_heads, d_model):
    bf = jnp.bfloat16

    def mm(a, w):
        return jnp.dot(a.astype(bf), w.astype(bf), preferred_element_type=jnp.float32)

    def linear(a, w, b):
        return mm(a, w) + b

    def layer_norm(v, g, b):
        mu = jnp.mean(v, axis=-1, keepdims=True)
        c = v - mu
        var = jnp.mean(c * c, axis=-1, keepdims=True)
        return c * jax.lax.rsqrt(var + 1e-5) * g + b

    def mha(p, q_in, kv_in, mask):
        q = linear(q_in, p["wq"], p["bq"])
        k = linear(kv_in, p["wk"], p["bk"])
        v = linear(kv_in, p["wv"], p["bv"])
        ctx = _attention_reference(q, k, v, mask, n_heads=n_heads)
        return linear(ctx, p["wo"], p["bo"])

    x = params["embedding"][tokens] * math.sqrt(d_model)
    x = x + params["pe"][: tokens.shape[0]]
    for p in params["layers"]:
        x = layer_norm(x + mha(p["self_attn"], x, x, tgt_mask), p["ln1_g"], p["ln1_b"])
        x = layer_norm(x + mha(p["cross_attn"], x, encoder_output, src_mask),
                       p["ln2_g"], p["ln2_b"])
        h = jnp.maximum(mm(x, p["w1"]) + p["b1"], 0.0)
        ff = mm(h, p["w2"]) + p["b2"]
        x = layer_norm(x + ff, p["ln3_g"], p["ln3_b"])
    return x


# ----------------------------------------------------------------------------
# demo
# ----------------------------------------------------------------------------
if __name__ == "__main__":
    vocab_size, d_model, n_heads, n_layers, d_ff = 100, 32, 4, 2, 64
    B, S_tgt, S_src, max_len = 2, 8, 8, 64

    key = jax.random.PRNGKey(0)
    params, key = init_decoder_params(key, vocab_size, d_model, n_heads,
                                      n_layers, d_ff, max_len)
    fast_params = prepare_fast_params(params)

    k_tok, k_enc, key = jax.random.split(key, 3)
    tokens = jax.random.randint(k_tok, (B, S_tgt), 0, vocab_size)
    encoder_output = jax.random.normal(k_enc, (B, S_src, d_model), jnp.float32)
    tgt_mask = jnp.tril(jnp.ones((S_tgt, S_tgt), jnp.float32))[None, None]  # (1,1,S,S)
    src_mask = None

    fwd = jax.jit(functools.partial(decoder_forward, n_heads=n_heads, d_model=d_model))
    out = jax.block_until_ready(fwd(fast_params, tokens, encoder_output,
                                    src_mask, tgt_mask))
    assert out.shape == (B, S_tgt, d_model)

    ref = _reference_forward(params, tokens, encoder_output, src_mask, tgt_mask,
                             n_heads=n_heads, d_model=d_model)
    # Tolerance covers the approximate EUP reciprocal in the flash finalize and
    # minor accumulation-order differences; bf16 MXU effects are mirrored.
    err = float(jnp.max(jnp.abs(out - ref)))
    assert err < 5e-2, f"decoder max abs error vs reference: {err}"

    # Extra self-check: KV-tiled flash path (2 KV blocks), fused-QKV feature
    # offsets, causal mask, multi-head slicing.
    Ba, Ha, Sa, dma = 2, 2, 1024, 128
    kq2, kk2, kv2, key = jax.random.split(key, 4)
    qa = jax.random.normal(kq2, (Ba, Sa, dma), jnp.float32)
    ka = jax.random.normal(kk2, (Ba, Sa, dma), jnp.float32)
    va = jax.random.normal(kv2, (Ba, Sa, dma), jnp.float32)
    qkv_a = jnp.concatenate([qa, ka, va], axis=-1)            # (B, S, 3*d_model)
    causal = jnp.tril(jnp.ones((Sa, Sa), jnp.float32))[None, None]
    out_a = jax.block_until_ready(
        flash_mha_pallas(qkv_a, qkv_a, qkv_a, causal, feat_blocks=(0, 1, 2),
                         n_heads=Ha, d_model=dma))
    ref_a = _attention_reference(qa, ka, va, causal, n_heads=Ha)
    err_a = float(jnp.max(jnp.abs(out_a - ref_a)))
    assert err_a < 2.5e-2, f"flash attention max abs error vs reference: {err_a}"

    print("KERNEL_OK")
</pallas_src>

<mosaic_0001>
module attributes {stable_mosaic.version = 11 : i64} {
  func.func @_linear_kernel(%arg0: i32, %arg1: memref<16x32xf32, #tpu.memory_space<vmem>>, %arg2: memref<32x96xbf16, #tpu.memory_space<vmem>>, %arg3: memref<1x96xf32, #tpu.memory_space<vmem>>, %arg4: memref<16x96xf32, #tpu.memory_space<vmem>>) attributes {dimension_semantics = [#tpu.dimension_semantics<parallel>], iteration_bounds = array<i64: 1>, scalar_prefetch = 0 : i64, scratch_operands = 0 : i64, tpu.core_type = #tpu.core_type<tc>, window_params = [{transform_indices = @transform_0, window_bounds = array<i64: 16, 32>}, {pipeline_mode = #tpu.pipeline_mode<synchronous>, transform_indices = @transform_1, window_bounds = array<i64: 32, 96>}, {pipeline_mode = #tpu.pipeline_mode<synchronous>, transform_indices = @transform_2, window_bounds = array<i64: 1, 96>}, {transform_indices = @transform_3, window_bounds = array<i64: 16, 96>}]} {
    %c0 = arith.constant 0 : index
    %c0_0 = arith.constant 0 : index
    %0 = vector.load %arg1[%c0, %c0_0] : memref<16x32xf32, #tpu.memory_space<vmem>>, vector<16x32xf32>
    %1 = arith.truncf %0 : vector<16x32xf32> to vector<16x32xbf16>
    %c0_1 = arith.constant 0 : index
    %c0_2 = arith.constant 0 : index
    %2 = vector.load %arg2[%c0_1, %c0_2] : memref<32x96xbf16, #tpu.memory_space<vmem>>, vector<32x96xbf16>
    %cst = arith.constant dense<0.000000e+00> : vector<16x96xf32>
    %3 = tpu.matmul %1, %2, %cst {dimension_numbers = #tpu.dot_dimension_numbers<[1], [0], [0], [1], [0, 0, 1, 1], [], []>} : vector<16x32xbf16>, vector<32x96xbf16>, vector<16x96xf32> -> vector<16x96xf32>
    %c0_3 = arith.constant 0 : index
    %c0_4 = arith.constant 0 : index
    %4 = vector.load %arg3[%c0_3, %c0_4] : memref<1x96xf32, #tpu.memory_space<vmem>>, vector<1x96xf32>
    %5 = vector.broadcast %4 : vector<1x96xf32> to vector<16x96xf32>
    %6 = arith.addf %3, %5 : vector<16x96xf32>
    %c0_5 = arith.constant 0 : index
    %c0_6 = arith.constant 0 : index
    %7 = vector.load %arg4[%c0_5, %c0_6] : memref<16x96xf32, #tpu.memory_space<vmem>>, vector<16x96xf32>
    tpu.vector_store %arg4[%c0_5, %c0_6], %6 {strides = array<i32>} : memref<16x96xf32, #tpu.memory_space<vmem>>, vector<16x96xf32>,
    return
  }
  func.func @transform_0(%arg0: i32) -> (i32, i32) {
    %c0_i32 = arith.constant 0 : i32
    %c0_i32_0 = arith.constant 0 : i32
    return %arg0, %c0_i32 : i32, i32
  }
  func.func @transform_1(%arg0: i32) -> (i32, i32) {
    %c0_i32 = arith.constant 0 : i32
    %c0_i32_0 = arith.constant 0 : i32
    %c0_i32_1 = arith.constant 0 : i32
    return %c0_i32, %c0_i32_0 : i32, i32
  }
  func.func @transform_2(%arg0: i32) -> (i32, i32) {
    %c0_i32 = arith.constant 0 : i32
    %c0_i32_0 = arith.constant 0 : i32
    %c0_i32_1 = arith.constant 0 : i32
    return %c0_i32, %c0_i32_0 : i32, i32
  }
  func.func @transform_3(%arg0: i32) -> (i32, i32) {
    %c0_i32 = arith.constant 0 : i32
    %c0_i32_0 = arith.constant 0 : i32
    return %arg0, %c0_i32 : i32, i32
  }
}

module attributes {stable_mosaic.version = 11 : i64} {
  func.func @_linear_kernel(%arg0: i32, %arg1: memref<16x32xf32, #tpu.memory_space<vmem>>, %arg2: memref<32x32xbf16, #tpu.memory_space<vmem>>, %arg3: memref<1x32xf32, #tpu.memory_space<vmem>>, %arg4: memref<16x32xf32, #tpu.memory_space<vmem>>) attributes {dimension_semantics = [#tpu.dimension_semantics<parallel>], iteration_bounds = array<i64: 1>, scalar_prefetch = 0 : i64, scratch_operands = 0 : i64, tpu.core_type = #tpu.core_type<tc>, window_params = [{transform_indices = @transform_0, window_bounds = array<i64: 16, 32>}, {pipeline_mode = #tpu.pipeline_mode<synchronous>, transform_indices = @transform_1, window_bounds = array<i64: 32, 32>}, {pipeline_mode = #tpu.pipeline_mode<synchronous>, transform_indices = @transform_2, window_bounds = array<i64: 1, 32>}, {transform_indices = @transform_3, window_bounds = array<i64: 16, 32>}]} {
    %c0 = arith.constant 0 : index
    %c0_0 = arith.constant 0 : index
    %0 = vector.load %arg1[%c0, %c0_0] : memref<16x32xf32, #tpu.memory_space<vmem>>, vector<16x32xf32>
    %1 = arith.truncf %0 : vector<16x32xf32> to vector<16x32xbf16>
    %c0_1 = arith.constant 0 : index
    %c0_2 = arith.constant 0 : index
    %2 = vector.load %arg2[%c0_1, %c0_2] : memref<32x32xbf16, #tpu.memory_space<vmem>>, vector<32x32xbf16>
    %cst = arith.constant dense<0.000000e+00> : vector<16x32xf32>
    %3 = tpu.matmul %1, %2, %cst {dimension_numbers = #tpu.dot_dimension_numbers<[1], [0], [0], [1], [0, 0, 1, 1], [], []>} : vector<16x32xbf16>, vector<32x32xbf16>, vector<16x32xf32> -> vector<16x32xf32>
    %c0_3 = arith.constant 0 : index
    %c0_4 = arith.constant 0 : index
    %4 = vector.load %arg3[%c0_3, %c0_4] : memref<1x32xf32, #tpu.memory_space<vmem>>, vector<1x32xf32>
    %5 = vector.broadcast %4 : vector<1x32xf32> to vector<16x32xf32>
    %6 = arith.addf %3, %5 : vector<16x32xf32>
    %c0_5 = arith.constant 0 : index
    %c0_6 = arith.constant 0 : index
    %7 = vector.load %arg4[%c0_5, %c0_6] : memref<16x32xf32, #tpu.memory_space<vmem>>, vector<16x32xf32>
    tpu.vector_store %arg4[%c0_5, %c0_6], %6 {strides = array<i32>} : memref<16x32xf32, #tpu.memory_space<vmem>>, vector<16x32xf32>,
    return
  }
  func.func @transform_0(%arg0: i32) -> (i32, i32) {
    %c0_i32 = arith.constant 0 : i32
    %c0_i32_0 = arith.constant 0 : i32
    return %arg0, %c0_i32 : i32, i32
  }
  func.func @transform_1(%arg0: i32) -> (i32, i32) {
    %c0_i32 = arith.constant 0 : i32
    %c0_i32_0 = arith.constant 0 : i32
    %c0_i32_1 = arith.constant 0 : i32
    return %c0_i32, %c0_i32_0 : i32, i32
  }
  func.func @transform_2(%arg0: i32) -> (i32, i32) {
    %c0_i32 = arith.constant 0 : i32
    %c0_i32_0 = arith.constant 0 : i32
    %c0_i32_1 = arith.constant 0 : i32
    return %c0_i32, %c0_i32_0 : i32, i32
  }
  func.func @transform_3(%arg0: i32) -> (i32, i32) {
    %c0_i32 = arith.constant 0 : i32
    %c0_i32_0 = arith.constant 0 : i32
    return %arg0, %c0_i32 : i32, i32
  }
}

module attributes {stable_mosaic.version = 11 : i64} {
  func.func @_linear_add_ln_kernel(%arg0: i32, %arg1: memref<16x32xf32, #tpu.memory_space<vmem>>, %arg2: memref<32x32xbf16, #tpu.memory_space<vmem>>, %arg3: memref<1x32xf32, #tpu.memory_space<vmem>>, %arg4: memref<16x32xf32, #tpu.memory_space<vmem>>, %arg5: memref<1x32xf32, #tpu.memory_space<vmem>>, %arg6: memref<1x32xf32, #tpu.memory_space<vmem>>, %arg7: memref<16x32xf32, #tpu.memory_space<vmem>>) attributes {dimension_semantics = [#tpu.dimension_semantics<parallel>], iteration_bounds = array<i64: 1>, scalar_prefetch = 0 : i64, scratch_operands = 0 : i64, tpu.core_type = #tpu.core_type<tc>, window_params = [{transform_indices = @transform_0, window_bounds = array<i64: 16, 32>}, {pipeline_mode = #tpu.pipeline_mode<synchronous>, transform_indices = @transform_1, window_bounds = array<i64: 32, 32>}, {pipeline_mode = #tpu.pipeline_mode<synchronous>, transform_indices = @transform_2, window_bounds = array<i64: 1, 32>}, {transform_indices = @transform_3, window_bounds = array<i64: 16, 32>}, {pipeline_mode = #tpu.pipeline_mode<synchronous>, transform_indices = @transform_4, window_bounds = array<i64: 1, 32>}, {pipeline_mode = #tpu.pipeline_mode<synchronous>, transform_indices = @transform_5, window_bounds = array<i64: 1, 32>}, {transform_indices = @transform_6, window_bounds = array<i64: 16, 32>}]} {
    %c0 = arith.constant 0 : index
    %c0_0 = arith.constant 0 : index
    %0 = vector.load %arg1[%c0, %c0_0] : memref<16x32xf32, #tpu.memory_space<vmem>>, vector<16x32xf32>
    %1 = arith.truncf %0 : vector<16x32xf32> to vector<16x32xbf16>
    %c0_1 = arith.constant 0 : index
    %c0_2 = arith.constant 0 : index
    %2 = vector.load %arg2[%c0_1, %c0_2] : memref<32x32xbf16, #tpu.memory_space<vmem>>, vector<32x32xbf16>
    %cst = arith.constant dense<0.000000e+00> : vector<16x32xf32>
    %3 = tpu.matmul %1, %2, %cst {dimension_numbers = #tpu.dot_dimension_numbers<[1], [0], [0], [1], [0, 0, 1, 1], [], []>} : vector<16x32xbf16>, vector<32x32xbf16>, vector<16x32xf32> -> vector<16x32xf32>
    %c0_3 = arith.constant 0 : index
    %c0_4 = arith.constant 0 : index
    %4 = vector.load %arg3[%c0_3, %c0_4] : memref<1x32xf32, #tpu.memory_space<vmem>>, vector<1x32xf32>
    %5 = vector.broadcast %4 : vector<1x32xf32> to vector<16x32xf32>
    %6 = arith.addf %3, %5 : vector<16x32xf32>
    %c0_5 = arith.constant 0 : index
    %c0_6 = arith.constant 0 : index
    %7 = vector.load %arg4[%c0_5, %c0_6] : memref<16x32xf32, #tpu.memory_space<vmem>>, vector<16x32xf32>
    %8 = arith.addf %6, %7 : vector<16x32xf32>
    %cst_7 = arith.constant dense<0.000000e+00> : vector<16xf32>
    %9 = vector.multi_reduction <add>, %8, %cst_7 [1] : vector<16x32xf32> to vector<16xf32>
    %10 = vector.shape_cast %9 : vector<16xf32> to vector<16x1xf32>
    %cst_8 = arith.constant 3.200000e+01 : f32
    %11 = vector.broadcast %cst_8 : f32 to vector<16x1xf32>
    %12 = arith.divf %10, %11 : vector<16x1xf32>
    %13 = vector.broadcast %12 : vector<16x1xf32> to vector<16x32xf32>
    %14 = arith.subf %8, %13 : vector<16x32xf32>
    %15 = arith.mulf %14, %14 : vector<16x32xf32>
    %cst_9 = arith.constant dense<0.000000e+00> : vector<16xf32>
    %16 = vector.multi_reduction <add>, %15, %cst_9 [1] : vector<16x32xf32> to vector<16xf32>
    %17 = vector.shape_cast %16 : vector<16xf32> to vector<16x1xf32>
    %cst_10 = arith.constant 3.200000e+01 : f32
    %18 = vector.broadcast %cst_10 : f32 to vector<16x1xf32>
    %19 = arith.divf %17, %18 : vector<16x1xf32>
    %cst_11 = arith.constant 9.99999974E-6 : f32
    %20 = vector.broadcast %cst_11 : f32 to vector<16x1xf32>
    %21 = arith.addf %19, %20 : vector<16x1xf32>
    %22 = math.rsqrt %21 : vector<16x1xf32>
    %23 = vector.broadcast %22 : vector<16x1xf32> to vector<16x32xf32>
    %24 = arith.mulf %14, %23 : vector<16x32xf32>
    %c0_12 = arith.constant 0 : index
    %c0_13 = arith.constant 0 : index
    %25 = vector.load %arg5[%c0_12, %c0_13] : memref<1x32xf32, #tpu.memory_space<vmem>>, vector<1x32xf32>
    %26 = vector.broadcast %25 : vector<1x32xf32> to vector<16x32xf32>
    %27 = arith.mulf %24, %26 : vector<16x32xf32>
    %c0_14 = arith.constant 0 : index
    %c0_15 = arith.constant 0 : index
    %28 = vector.load %arg6[%c0_14, %c0_15] : memref<1x32xf32, #tpu.memory_space<vmem>>, vector<1x32xf32>
    %29 = vector.broadcast %28 : vector<1x32xf32> to vector<16x32xf32>
    %30 = arith.addf %27, %29 : vector<16x32xf32>
    %c0_16 = arith.constant 0 : index
    %c0_17 = arith.constant 0 : index
    %31 = vector.load %arg7[%c0_16, %c0_17] : memref<16x32xf32, #tpu.memory_space<vmem>>, vector<16x32xf32>
    tpu.vector_store %arg7[%c0_16, %c0_17], %30 {strides = array<i32>} : memref<16x32xf32, #tpu.memory_space<vmem>>, vector<16x32xf32>,
    return
  }
  func.func @transform_0(%arg0: i32) -> (i32, i32) {
    %c0_i32 = arith.constant 0 : i32
    %c0_i32_0 = arith.constant 0 : i32
    return %arg0, %c0_i32 : i32, i32
  }
  func.func @transform_1(%arg0: i32) -> (i32, i32) {
    %c0_i32 = arith.constant 0 : i32
    %c0_i32_0 = arith.constant 0 : i32
    %c0_i32_1 = arith.constant 0 : i32
    return %c0_i32, %c0_i32_0 : i32, i32
  }
  func.func @transform_2(%arg0: i32) -> (i32, i32) {
    %c0_i32 = arith.constant 0 : i32
    %c0_i32_0 = arith.constant 0 : i32
    %c0_i32_1 = arith.constant 0 : i32
    return %c0_i32, %c0_i32_0 : i32, i32
  }
  func.func @transform_3(%arg0: i32) -> (i32, i32) {
    %c0_i32 = arith.constant 0 : i32
    %c0_i32_0 = arith.constant 0 : i32
    return %arg0, %c0_i32 : i32, i32
  }
  func.func @transform_4(%arg0: i32) -> (i32, i32) {
    %c0_i32 = arith.constant 0 : i32
    %c0_i32_0 = arith.constant 0 : i32
    %c0_i32_1 = arith.constant 0 : i32
    return %c0_i32, %c0_i32_0 : i32, i32
  }
  func.func @transform_5(%arg0: i32) -> (i32, i32) {
    %c0_i32 = arith.constant 0 : i32
    %c0_i32_0 = arith.constant 0 : i32
    %c0_i32_1 = arith.constant 0 : i32
    return %c0_i32, %c0_i32_0 : i32, i32
  }
  func.func @transform_6(%arg0: i32) -> (i32, i32) {
    %c0_i32 = arith.constant 0 : i32
    %c0_i32_0 = arith.constant 0 : i32
    return %arg0, %c0_i32 : i32, i32
  }
}

module attributes {stable_mosaic.version = 11 : i64} {
  func.func @_mha_flash_kernel(%arg0: i32, %arg1: i32, %arg2: memref<1x8x32xf32, #tpu.memory_space<vmem>>, %arg3: memref<1x8x32xf32, #tpu.memory_space<vmem>>, %arg4: memref<1x8x32xf32, #tpu.memory_space<vmem>>, %arg5: memref<1x1x8x8xbf16, #tpu.memory_space<vmem>>, %arg6: memref<1x8x32xf32, #tpu.memory_space<vmem>>, %arg7: memref<4x8x1xf32, #tpu.memory_space<vmem>>, %arg8: memref<4x8x1xf32, #tpu.memory_space<vmem>>, %arg9: memref<4x8x8xf32, #tpu.memory_space<vmem>>) attributes {dimension_semantics = [#tpu.dimension_semantics<parallel>, #tpu.dimension_semantics<arbitrary>], iteration_bounds = array<i64: 2, 1>, scalar_prefetch = 0 : i64, scratch_operands = 3 : i64, tpu.core_type = #tpu.core_type<tc>, window_params = [{transform_indices = @transform_0, window_bounds = array<i64: 1, 8, 32>}, {transform_indices = @transform_1, window_bounds = array<i64: 1, 8, 32>}, {transform_indices = @transform_2, window_bounds = array<i64: 1, 8, 32>}, {transform_indices = @transform_3, window_bounds = array<i64: 1, 1, 8, 8>}, {transform_indices = @transform_4, window_bounds = array<i64: 1, 8, 32>}]} {
    %c0_i32 = arith.constant 0 : i32
    %0 = arith.cmpi eq, %arg1, %c0_i32 : i32
    %1 = arith.extui %0 : i1 to i32
    %c0_i32_0 = arith.constant 0 : i32
    %2 = arith.cmpi ne, %1, %c0_i32_0 : i32
    scf.if %2 {
      %cst_147 = arith.constant 0xFF800000 : f32
      %206 = vector.broadcast %cst_147 : f32 to vector<4x8x1xf32>
      %c0_148 = arith.constant 0 : index
      %c0_149 = arith.constant 0 : index
      %c0_150 = arith.constant 0 : index
      %207 = vector.load %arg7[%c0_148, %c0_149, %c0_150] : memref<4x8x1xf32, #tpu.memory_space<vmem>>, vector<4x8x1xf32>
      tpu.vector_store %arg7[%c0_148, %c0_149, %c0_150], %206 {strides = array<i32>} : memref<4x8x1xf32, #tpu.memory_space<vmem>>, vector<4x8x1xf32>,
      %cst_151 = arith.constant 0.000000e+00 : f32
      %208 = vector.broadcast %cst_151 : f32 to vector<4x8x1xf32>
      %c0_152 = arith.constant 0 : index
      %c0_153 = arith.constant 0 : index
      %c0_154 = arith.constant 0 : index
      %209 = vector.load %arg8[%c0_152, %c0_153, %c0_154] : memref<4x8x1xf32, #tpu.memory_space<vmem>>, vector<4x8x1xf32>
      tpu.vector_store %arg8[%c0_152, %c0_153, %c0_154], %208 {strides = array<i32>} : memref<4x8x1xf32, #tpu.memory_space<vmem>>, vector<4x8x1xf32>,
      %cst_155 = arith.constant 0.000000e+00 : f32
      %210 = vector.broadcast %cst_155 : f32 to vector<4x8x8xf32>
      %c0_156 = arith.constant 0 : index
      %c0_157 = arith.constant 0 : index
      %c0_158 = arith.constant 0 : index
      %211 = vector.load %arg9[%c0_156, %c0_157, %c0_158] : memref<4x8x8xf32, #tpu.memory_space<vmem>>, vector<4x8x8xf32>
      tpu.vector_store %arg9[%c0_156, %c0_157, %c0_158], %210 {strides = array<i32>} : memref<4x8x8xf32, #tpu.memory_space<vmem>>, vector<4x8x8xf32>,
    } else {
    }
    %c0 = arith.constant 0 : index
    %c0_1 = arith.constant 0 : index
    %c0_2 = arith.constant 0 : index
    %3 = vector.load %arg2[%c0, %c0_1, %c0_2] : memref<1x8x32xf32, #tpu.memory_space<vmem>>, vector<1x8x8xf32>
    %4 = vector.shape_cast %3 : vector<1x8x8xf32> to vector<8x8xf32>
    %5 = arith.truncf %4 : vector<8x8xf32> to vector<8x8xbf16>
    %c0_3 = arith.constant 0 : index
    %c0_4 = arith.constant 0 : index
    %c0_5 = arith.constant 0 : index
    %6 = vector.load %arg3[%c0_3, %c0_4, %c0_5] : memref<1x8x32xf32, #tpu.memory_space<vmem>>, vector<1x8x8xf32>
    %7 = vector.shape_cast %6 : vector<1x8x8xf32> to vector<8x8xf32>
    %8 = arith.truncf %7 : vector<8x8xf32> to vector<8x8xbf16>
    %c0_6 = arith.constant 0 : index
    %c0_7 = arith.constant 0 : index
    %c0_8 = arith.constant 0 : index
    %9 = vector.load %arg4[%c0_6, %c0_7, %c0_8] : memref<1x8x32xf32, #tpu.memory_space<vmem>>, vector<1x8x8xf32>
    %10 = vector.shape_cast %9 : vector<1x8x8xf32> to vector<8x8xf32>
    %11 = arith.truncf %10 : vector<8x8xf32> to vector<8x8xbf16>
    %cst = arith.constant dense<0.000000e+00> : vector<8x8xf32>
    %12 = tpu.matmul %5, %8, %cst {dimension_numbers = #tpu.dot_dimension_numbers<[1], [1], [0], [0], [0, 0, 1, 0], [], []>} : vector<8x8xbf16>, vector<8x8xbf16>, vector<8x8xf32> -> vector<8x8xf32>
    %cst_9 = arith.constant 0.353553385 : f32
    %13 = vector.broadcast %cst_9 : f32 to vector<8x8xf32>
    %14 = arith.mulf %12, %13 : vector<8x8xf32>
    %c0_10 = arith.constant 0 : index
    %c0_11 = arith.constant 0 : index
    %c0_12 = arith.constant 0 : index
    %c0_13 = arith.constant 0 : index
    %15 = vector.load %arg5[%c0_10, %c0_11, %c0_12, %c0_13] : memref<1x1x8x8xbf16, #tpu.memory_space<vmem>>, vector<1x1x8x8xbf16>
    %16 = vector.shape_cast %15 : vector<1x1x8x8xbf16> to vector<8x8xbf16>
    %cst_14 = arith.constant 0.000000e+00 : bf16
    %17 = vector.broadcast %cst_14 : bf16 to vector<8x8xbf16>
    %18 = arith.cmpf oeq, %16, %17 : vector<8x8xbf16>
    %cst_15 = arith.constant -1.000000e+09 : f32
    %19 = vector.broadcast %cst_15 : f32 to vector<8x8xf32>
    %20 = arith.select %18, %19, %14 : vector<8x8xi1>, vector<8x8xf32>
    %c0_16 = arith.constant 0 : index
    %c0_17 = arith.constant 0 : index
    %c0_18 = arith.constant 0 : index
    %21 = vector.load %arg7[%c0_16, %c0_17, %c0_18] : memref<4x8x1xf32, #tpu.memory_space<vmem>>, vector<1x8x1xf32>
    %22 = vector.shape_cast %21 : vector<1x8x1xf32> to vector<8x1xf32>
    %cst_19 = arith.constant dense<0xFF800000> : vector<8xf32>
    %23 = vector.multi_reduction <maximumf>, %20, %cst_19 [1] : vector<8x8xf32> to vector<8xf32>
    %24 = vector.shape_cast %23 : vector<8xf32> to vector<8x1xf32>
    %25 = arith.maximumf %22, %24 : vector<8x1xf32>
    %26 = arith.subf %22, %25 : vector<8x1xf32>
    %27 = math.exp %26 : vector<8x1xf32>
    %28 = vector.broadcast %25 : vector<8x1xf32> to vector<8x8xf32>
    %29 = arith.subf %20, %28 : vector<8x8xf32>
    %30 = math.exp %29 : vector<8x8xf32>
    %c0_20 = arith.constant 0 : index
    %c0_21 = arith.constant 0 : index
    %c0_22 = arith.constant 0 : index
    %31 = vector.load %arg8[%c0_20, %c0_21, %c0_22] : memref<4x8x1xf32, #tpu.memory_space<vmem>>, vector<1x8x1xf32>
    %32 = vector.shape_cast %31 : vector<1x8x1xf32> to vector<8x1xf32>
    %33 = arith.mulf %27, %32 : vector<8x1xf32>
    %cst_23 = arith.constant dense<0.000000e+00> : vector<8xf32>
    %34 = vector.multi_reduction <add>, %30, %cst_23 [1] : vector<8x8xf32> to vector<8xf32>
    %35 = vector.shape_cast %34 : vector<8xf32> to vector<8x1xf32>
    %36 = arith.addf %33, %35 : vector<8x1xf32>
    %c0_24 = arith.constant 0 : index
    %c0_25 = arith.constant 0 : index
    %c0_26 = arith.constant 0 : index
    %37 = vector.load %arg8[%c0_24, %c0_25, %c0_26] : memref<4x8x1xf32, #tpu.memory_space<vmem>>, vector<1x8x1xf32>
    %38 = vector.shape_cast %37 : vector<1x8x1xf32> to vector<8x1xf32>
    %39 = vector.shape_cast %36 : vector<8x1xf32> to vector<1x8x1xf32>
    tpu.vector_store %arg8[%c0_24, %c0_25, %c0_26], %39 {strides = array<i32>} : memref<4x8x1xf32, #tpu.memory_space<vmem>>, vector<1x8x1xf32>,
    %c0_27 = arith.constant 0 : index
    %c0_28 = arith.constant 0 : index
    %c0_29 = arith.constant 0 : index
    %40 = vector.load %arg9[%c0_27, %c0_28, %c0_29] : memref<4x8x8xf32, #tpu.memory_space<vmem>>, vector<1x8x8xf32>
    %41 = vector.shape_cast %40 : vector<1x8x8xf32> to vector<8x8xf32>
    %42 = vector.broadcast %27 : vector<8x1xf32> to vector<8x8xf32>
    %43 = arith.mulf %42, %41 : vector<8x8xf32>
    %44 = arith.truncf %30 : vector<8x8xf32> to vector<8x8xbf16>
    %cst_30 = arith.constant dense<0.000000e+00> : vector<8x8xf32>
    %45 = tpu.matmul %44, %11, %cst_30 {dimension_numbers = #tpu.dot_dimension_numbers<[1], [0], [0], [1], [0, 0, 1, 1], [], []>} : vector<8x8xbf16>, vector<8x8xbf16>, vector<8x8xf32> -> vector<8x8xf32>
    %46 = arith.addf %43, %45 : vector<8x8xf32>
    %c0_31 = arith.constant 0 : index
    %c0_32 = arith.constant 0 : index
    %c0_33 = arith.constant 0 : index
    %47 = vector.load %arg9[%c0_31, %c0_32, %c0_33] : memref<4x8x8xf32, #tpu.memory_space<vmem>>, vector<1x8x8xf32>
    %48 = vector.shape_cast %47 : vector<1x8x8xf32> to vector<8x8xf32>
    %49 = vector.shape_cast %46 : vector<8x8xf32> to vector<1x8x8xf32>
    tpu.vector_store %arg9[%c0_31, %c0_32, %c0_33], %49 {strides = array<i32>} : memref<4x8x8xf32, #tpu.memory_space<vmem>>, vector<1x8x8xf32>,
    %c0_34 = arith.constant 0 : index
    %c0_35 = arith.constant 0 : index
    %c0_36 = arith.constant 0 : index
    %50 = vector.load %arg7[%c0_34, %c0_35, %c0_36] : memref<4x8x1xf32, #tpu.memory_space<vmem>>, vector<1x8x1xf32>
    %51 = vector.shape_cast %50 : vector<1x8x1xf32> to vector<8x1xf32>
    %52 = vector.shape_cast %25 : vector<8x1xf32> to vector<1x8x1xf32>
    tpu.vector_store %arg7[%c0_34, %c0_35, %c0_36], %52 {strides = array<i32>} : memref<4x8x1xf32, #tpu.memory_space<vmem>>, vector<1x8x1xf32>,
    %c0_37 = arith.constant 0 : index
    %c0_38 = arith.constant 0 : index
    %c8 = arith.constant 8 : index
    %53 = vector.load %arg2[%c0_37, %c0_38, %c8] : memref<1x8x32xf32, #tpu.memory_space<vmem>>, vector<1x8x8xf32>
    %54 = vector.shape_cast %53 : vector<1x8x8xf32> to vector<8x8xf32>
    %55 = arith.truncf %54 : vector<8x8xf32> to vector<8x8xbf16>
    %c0_39 = arith.constant 0 : index
    %c0_40 = arith.constant 0 : index
    %c8_41 = arith.constant 8 : index
    %56 = vector.load %arg3[%c0_39, %c0_40, %c8_41] : memref<1x8x32xf32, #tpu.memory_space<vmem>>, vector<1x8x8xf32>
    %57 = vector.shape_cast %56 : vector<1x8x8xf32> to vector<8x8xf32>
    %58 = arith.truncf %57 : vector<8x8xf32> to vector<8x8xbf16>
    %c0_42 = arith.constant 0 : index
    %c0_43 = arith.constant 0 : index
    %c8_44 = arith.constant 8 : index
    %59 = vector.load %arg4[%c0_42, %c0_43, %c8_44] : memref<1x8x32xf32, #tpu.memory_space<vmem>>, vector<1x8x8xf32>
    %60 = vector.shape_cast %59 : vector<1x8x8xf32> to vector<8x8xf32>
    %61 = arith.truncf %60 : vector<8x8xf32> to vector<8x8xbf16>
    %cst_45 = arith.constant dense<0.000000e+00> : vector<8x8xf32>
    %62 = tpu.matmul %55, %58, %cst_45 {dimension_numbers = #tpu.dot_dimension_numbers<[1], [1], [0], [0], [0, 0, 1, 0], [], []>} : vector<8x8xbf16>, vector<8x8xbf16>, vector<8x8xf32> -> vector<8x8xf32>
    %cst_46 = arith.constant 0.353553385 : f32
    %63 = vector.broadcast %cst_46 : f32 to vector<8x8xf32>
    %64 = arith.mulf %62, %63 : vector<8x8xf32>
    %c0_47 = arith.constant 0 : index
    %c0_48 = arith.constant 0 : index
    %c0_49 = arith.constant 0 : index
    %c0_50 = arith.constant 0 : index
    %65 = vector.load %arg5[%c0_47, %c0_48, %c0_49, %c0_50] : memref<1x1x8x8xbf16, #tpu.memory_space<vmem>>, vector<1x1x8x8xbf16>
    %66 = vector.shape_cast %65 : vector<1x1x8x8xbf16> to vector<8x8xbf16>
    %cst_51 = arith.constant 0.000000e+00 : bf16
    %67 = vector.broadcast %cst_51 : bf16 to vector<8x8xbf16>
    %68 = arith.cmpf oeq, %66, %67 : vector<8x8xbf16>
    %cst_52 = arith.constant -1.000000e+09 : f32
    %69 = vector.broadcast %cst_52 : f32 to vector<8x8xf32>
    %70 = arith.select %68, %69, %64 : vector<8x8xi1>, vector<8x8xf32>
    %c1 = arith.constant 1 : index
    %c0_53 = arith.constant 0 : index
    %c0_54 = arith.constant 0 : index
    %71 = vector.load %arg7[%c1, %c0_53, %c0_54] : memref<4x8x1xf32, #tpu.memory_space<vmem>>, vector<1x8x1xf32>
    %72 = vector.shape_cast %71 : vector<1x8x1xf32> to vector<8x1xf32>
    %cst_55 = arith.constant dense<0xFF800000> : vector<8xf32>
    %73 = vector.multi_reduction <maximumf>, %70, %cst_55 [1] : vector<8x8xf32> to vector<8xf32>
    %74 = vector.shape_cast %73 : vector<8xf32> to vector<8x1xf32>
    %75 = arith.maximumf %72, %74 : vector<8x1xf32>
    %76 = arith.subf %72, %75 : vector<8x1xf32>
    %77 = math.exp %76 : vector<8x1xf32>
    %78 = vector.broadcast %75 : vector<8x1xf32> to vector<8x8xf32>
    %79 = arith.subf %70, %78 : vector<8x8xf32>
    %80 = math.exp %79 : vector<8x8xf32>
    %c1_56 = arith.constant 1 : index
    %c0_57 = arith.constant 0 : index
    %c0_58 = arith.constant 0 : index
    %81 = vector.load %arg8[%c1_56, %c0_57, %c0_58] : memref<4x8x1xf32, #tpu.memory_space<vmem>>, vector<1x8x1xf32>
    %82 = vector.shape_cast %81 : vector<1x8x1xf32> to vector<8x1xf32>
    %83 = arith.mulf %77, %82 : vector<8x1xf32>
    %cst_59 = arith.constant dense<0.000000e+00> : vector<8xf32>
    %84 = vector.multi_reduction <add>, %80, %cst_59 [1] : vector<8x8xf32> to vector<8xf32>
    %85 = vector.shape_cast %84 : vector<8xf32> to vector<8x1xf32>
    %86 = arith.addf %83, %85 : vector<8x1xf32>
    %c1_60 = arith.constant 1 : index
    %c0_61 = arith.constant 0 : index
    %c0_62 = arith.constant 0 : index
    %87 = vector.load %arg8[%c1_60, %c0_61, %c0_62] : memref<4x8x1xf32, #tpu.memory_space<vmem>>, vector<1x8x1xf32>
    %88 = vector.shape_cast %87 : vector<1x8x1xf32> to vector<8x1xf32>
    %89 = vector.shape_cast %86 : vector<8x1xf32> to vector<1x8x1xf32>
    tpu.vector_store %arg8[%c1_60, %c0_61, %c0_62], %89 {strides = array<i32>} : memref<4x8x1xf32, #tpu.memory_space<vmem>>, vector<1x8x1xf32>,
    %c1_63 = arith.constant 1 : index
    %c0_64 = arith.constant 0 : index
    %c0_65 = arith.constant 0 : index
    %90 = vector.load %arg9[%c1_63, %c0_64, %c0_65] : memref<4x8x8xf32, #tpu.memory_space<vmem>>, vector<1x8x8xf32>
    %91 = vector.shape_cast %90 : vector<1x8x8xf32> to vector<8x8xf32>
    %92 = vector.broadcast %77 : vector<8x1xf32> to vector<8x8xf32>
    %93 = arith.mulf %92, %91 : vector<8x8xf32>
    %94 = arith.truncf %80 : vector<8x8xf32> to vector<8x8xbf16>
    %cst_66 = arith.constant dense<0.000000e+00> : vector<8x8xf32>
    %95 = tpu.matmul %94, %61, %cst_66 {dimension_numbers = #tpu.dot_dimension_numbers<[1], [0], [0], [1], [0, 0, 1, 1], [], []>} : vector<8x8xbf16>, vector<8x8xbf16>, vector<8x8xf32> -> vector<8x8xf32>
    %96 = arith.addf %93, %95 : vector<8x8xf32>
    %c1_67 = arith.constant 1 : index
    %c0_68 = arith.constant 0 : index
    %c0_69 = arith.constant 0 : index
    %97 = vector.load %arg9[%c1_67, %c0_68, %c0_69] : memref<4x8x8xf32, #tpu.memory_space<vmem>>, vector<1x8x8xf32>
    %98 = vector.shape_cast %97 : vector<1x8x8xf32> to vector<8x8xf32>
    %99 = vector.shape_cast %96 : vector<8x8xf32> to vector<1x8x8xf32>
    tpu.vector_store %arg9[%c1_67, %c0_68, %c0_69], %99 {strides = array<i32>} : memref<4x8x8xf32, #tpu.memory_space<vmem>>, vector<1x8x8xf32>,
    %c1_70 = arith.constant 1 : index
    %c0_71 = arith.constant 0 : index
    %c0_72 = arith.constant 0 : index
    %100 = vector.load %arg7[%c1_70, %c0_71, %c0_72] : memref<4x8x1xf32, #tpu.memory_space<vmem>>, vector<1x8x1xf32>
    %101 = vector.shape_cast %100 : vector<1x8x1xf32> to vector<8x1xf32>
    %102 = vector.shape_cast %75 : vector<8x1xf32> to vector<1x8x1xf32>
    tpu.vector_store %arg7[%c1_70, %c0_71, %c0_72], %102 {strides = array<i32>} : memref<4x8x1xf32, #tpu.memory_space<vmem>>, vector<1x8x1xf32>,
    %c0_73 = arith.constant 0 : index
    %c0_74 = arith.constant 0 : index
    %c16 = arith.constant 16 : index
    %103 = vector.load %arg2[%c0_73, %c0_74, %c16] : memref<1x8x32xf32, #tpu.memory_space<vmem>>, vector<1x8x8xf32>
    %104 = vector.shape_cast %103 : vector<1x8x8xf32> to vector<8x8xf32>
    %105 = arith.truncf %104 : vector<8x8xf32> to vector<8x8xbf16>
    %c0_75 = arith.constant 0 : index
    %c0_76 = arith.constant 0 : index
    %c16_77 = arith.constant 16 : index
    %106 = vector.load %arg3[%c0_75, %c0_76, %c16_77] : memref<1x8x32xf32, #tpu.memory_space<vmem>>, vector<1x8x8xf32>
    %107 = vector.shape_cast %106 : vector<1x8x8xf32> to vector<8x8xf32>
    %108 = arith.truncf %107 : vector<8x8xf32> to vector<8x8xbf16>
    %c0_78 = arith.constant 0 : index
    %c0_79 = arith.constant 0 : index
    %c16_80 = arith.constant 16 : index
    %109 = vector.load %arg4[%c0_78, %c0_79, %c16_80] : memref<1x8x32xf32, #tpu.memory_space<vmem>>, vector<1x8x8xf32>
    %110 = vector.shape_cast %109 : vector<1x8x8xf32> to vector<8x8xf32>
    %111 = arith.truncf %110 : vector<8x8xf32> to vector<8x8xbf16>
    %cst_81 = arith.constant dense<0.000000e+00> : vector<8x8xf32>
    %112 = tpu.matmul %105, %108, %cst_81 {dimension_numbers = #tpu.dot_dimension_numbers<[1], [1], [0], [0], [0, 0, 1, 0], [], []>} : vector<8x8xbf16>, vector<8x8xbf16>, vector<8x8xf32> -> vector<8x8xf32>
    %cst_82 = arith.constant 0.353553385 : f32
    %113 = vector.broadcast %cst_82 : f32 to vector<8x8xf32>
    %114 = arith.mulf %112, %113 : vector<8x8xf32>
    %c0_83 = arith.constant 0 : index
    %c0_84 = arith.constant 0 : index
    %c0_85 = arith.constant 0 : index
    %c0_86 = arith.constant 0 : index
    %115 = vector.load %arg5[%c0_83, %c0_84, %c0_85, %c0_86] : memref<1x1x8x8xbf16, #tpu.memory_space<vmem>>, vector<1x1x8x8xbf16>
    %116 = vector.shape_cast %115 : vector<1x1x8x8xbf16> to vector<8x8xbf16>
    %cst_87 = arith.constant 0.000000e+00 : bf16
    %117 = vector.broadcast %cst_87 : bf16 to vector<8x8xbf16>
    %118 = arith.cmpf oeq, %116, %117 : vector<8x8xbf16>
    %cst_88 = arith.constant -1.000000e+09 : f32
    %119 = vector.broadcast %cst_88 : f32 to vector<8x8xf32>
    %120 = arith.select %118, %119, %114 : vector<8x8xi1>, vector<8x8xf32>
    %c2 = arith.constant 2 : index
    %c0_89 = arith.constant 0 : index
    %c0_90 = arith.constant 0 : index
    %121 = vector.load %arg7[%c2, %c0_89, %c0_90] : memref<4x8x1xf32, #tpu.memory_space<vmem>>, vector<1x8x1xf32>
    %122 = vector.shape_cast %121 : vector<1x8x1xf32> to vector<8x1xf32>
    %cst_91 = arith.constant dense<0xFF800000> : vector<8xf32>
    %123 = vector.multi_reduction <maximumf>, %120, %cst_91 [1] : vector<8x8xf32> to vector<8xf32>
    %124 = vector.shape_cast %123 : vector<8xf32> to vector<8x1xf32>
    %125 = arith.maximumf %122, %124 : vector<8x1xf32>
    %126 = arith.subf %122, %125 : vector<8x1xf32>
    %127 = math.exp %126 : vector<8x1xf32>
    %128 = vector.broadcast %125 : vector<8x1xf32> to vector<8x8xf32>
    %129 = arith.subf %120, %128 : vector<8x8xf32>
    %130 = math.exp %129 : vector<8x8xf32>
    %c2_92 = arith.constant 2 : index
    %c0_93 = arith.constant 0 : index
    %c0_94 = arith.constant 0 : index
    %131 = vector.load %arg8[%c2_92, %c0_93, %c0_94] : memref<4x8x1xf32, #tpu.memory_space<vmem>>, vector<1x8x1xf32>
    %132 = vector.shape_cast %131 : vector<1x8x1xf32> to vector<8x1xf32>
    %133 = arith.mulf %127, %132 : vector<8x1xf32>
    %cst_95 = arith.constant dense<0.000000e+00> : vector<8xf32>
    %134 = vector.multi_reduction <add>, %130, %cst_95 [1] : vector<8x8xf32> to vector<8xf32>
    %135 = vector.shape_cast %134 : vector<8xf32> to vector<8x1xf32>
    %136 = arith.addf %133, %135 : vector<8x1xf32>
    %c2_96 = arith.constant 2 : index
    %c0_97 = arith.constant 0 : index
    %c0_98 = arith.constant 0 : index
    %137 = vector.load %arg8[%c2_96, %c0_97, %c0_98] : memref<4x8x1xf32, #tpu.memory_space<vmem>>, vector<1x8x1xf32>
    %138 = vector.shape_cast %137 : vector<1x8x1xf32> to vector<8x1xf32>
    %139 = vector.shape_cast %136 : vector<8x1xf32> to vector<1x8x1xf32>
    tpu.vector_store %arg8[%c2_96, %c0_97, %c0_98], %139 {strides = array<i32>} : memref<4x8x1xf32, #tpu.memory_space<vmem>>, vector<1x8x1xf32>,
    %c2_99 = arith.constant 2 : index
    %c0_100 = arith.constant 0 : index
    %c0_101 = arith.constant 0 : index
    %140 = vector.load %arg9[%c2_99, %c0_100, %c0_101] : memref<4x8x8xf32, #tpu.memory_space<vmem>>, vector<1x8x8xf32>
    %141 = vector.shape_cast %140 : vector<1x8x8xf32> to vector<8x8xf32>
    %142 = vector.broadcast %127 : vector<8x1xf32> to vector<8x8xf32>
    %143 = arith.mulf %142, %141 : vector<8x8xf32>
    %144 = arith.truncf %130 : vector<8x8xf32> to vector<8x8xbf16>
    %cst_102 = arith.constant dense<0.000000e+00> : vector<8x8xf32>
    %145 = tpu.matmul %144, %111, %cst_102 {dimension_numbers = #tpu.dot_dimension_numbers<[1], [0], [0], [1], [0, 0, 1, 1], [], []>} : vector<8x8xbf16>, vector<8x8xbf16>, vector<8x8xf32> -> vector<8x8xf32>
    %146 = arith.addf %143, %145 : vector<8x8xf32>
    %c2_103 = arith.constant 2 : index
    %c0_104 = arith.constant 0 : index
    %c0_105 = arith.constant 0 : index
    %147 = vector.load %arg9[%c2_103, %c0_104, %c0_105] : memref<4x8x8xf32, #tpu.memory_space<vmem>>, vector<1x8x8xf32>
    %148 = vector.shape_cast %147 : vector<1x8x8xf32> to vector<8x8xf32>
    %149 = vector.shape_cast %146 : vector<8x8xf32> to vector<1x8x8xf32>
    tpu.vector_store %arg9[%c2_103, %c0_104, %c0_105], %149 {strides = array<i32>} : memref<4x8x8xf32, #tpu.memory_space<vmem>>, vector<1x8x8xf32>,
    %c2_106 = arith.constant 2 : index
    %c0_107 = arith.constant 0 : index
    %c0_108 = arith.constant 0 : index
    %150 = vector.load %arg7[%c2_106, %c0_107, %c0_108] : memref<4x8x1xf32, #tpu.memory_space<vmem>>, vector<1x8x1xf32>
    %151 = vector.shape_cast %150 : vector<1x8x1xf32> to vector<8x1xf32>
    %152 = vector.shape_cast %125 : vector<8x1xf32> to vector<1x8x1xf32>
    tpu.vector_store %arg7[%c2_106, %c0_107, %c0_108], %152 {strides = array<i32>} : memref<4x8x1xf32, #tpu.memory_space<vmem>>, vector<1x8x1xf32>,
    %c0_109 = arith.constant 0 : index
    %c0_110 = arith.constant 0 : index
    %c24 = arith.constant 24 : index
    %153 = vector.load %arg2[%c0_109, %c0_110, %c24] : memref<1x8x32xf32, #tpu.memory_space<vmem>>, vector<1x8x8xf32>
    %154 = vector.shape_cast %153 : vector<1x8x8xf32> to vector<8x8xf32>
    %155 = arith.truncf %154 : vector<8x8xf32> to vector<8x8xbf16>
    %c0_111 = arith.constant 0 : index
    %c0_112 = arith.constant 0 : index
    %c24_113 = arith.constant 24 : index
    %156 = vector.load %arg3[%c0_111, %c0_112, %c24_113] : memref<1x8x32xf32, #tpu.memory_space<vmem>>, vector<1x8x8xf32>
    %157 = vector.shape_cast %156 : vector<1x8x8xf32> to vector<8x8xf32>
    %158 = arith.truncf %157 : vector<8x8xf32> to vector<8x8xbf16>
    %c0_114 = arith.constant 0 : index
    %c0_115 = arith.constant 0 : index
    %c24_116 = arith.constant 24 : index
    %159 = vector.load %arg4[%c0_114, %c0_115, %c24_116] : memref<1x8x32xf32, #tpu.memory_space<vmem>>, vector<1x8x8xf32>
    %160 = vector.shape_cast %159 : vector<1x8x8xf32> to vector<8x8xf32>
    %161 = arith.truncf %160 : vector<8x8xf32> to vector<8x8xbf16>
    %cst_117 = arith.constant dense<0.000000e+00> : vector<8x8xf32>
    %162 = tpu.matmul %155, %158, %cst_117 {dimension_numbers = #tpu.dot_dimension_numbers<[1], [1], [0], [0], [0, 0, 1, 0], [], []>} : vector<8x8xbf16>, vector<8x8xbf16>, vector<8x8xf32> -> vector<8x8xf32>
    %cst_118 = arith.constant 0.353553385 : f32
    %163 = vector.broadcast %cst_118 : f32 to vector<8x8xf32>
    %164 = arith.mulf %162, %163 : vector<8x8xf32>
    %c0_119 = arith.constant 0 : index
    %c0_120 = arith.constant 0 : index
    %c0_121 = arith.constant 0 : index
    %c0_122 = arith.constant 0 : index
    %165 = vector.load %arg5[%c0_119, %c0_120, %c0_121, %c0_122] : memref<1x1x8x8xbf16, #tpu.memory_space<vmem>>, vector<1x1x8x8xbf16>
    %166 = vector.shape_cast %165 : vector<1x1x8x8xbf16> to vector<8x8xbf16>
    %cst_123 = arith.constant 0.000000e+00 : bf16
    %167 = vector.broadcast %cst_123 : bf16 to vector<8x8xbf16>
    %168 = arith.cmpf oeq, %166, %167 : vector<8x8xbf16>
    %cst_124 = arith.constant -1.000000e+09 : f32
    %169 = vector.broadcast %cst_124 : f32 to vector<8x8xf32>
    %170 = arith.select %168, %169, %164 : vector<8x8xi1>, vector<8x8xf32>
    %c3 = arith.constant 3 : index
    %c0_125 = arith.constant 0 : index
    %c0_126 = arith.constant 0 : index
    %171 = vector.load %arg7[%c3, %c0_125, %c0_126] : memref<4x8x1xf32, #tpu.memory_space<vmem>>, vector<1x8x1xf32>
    %172 = vector.shape_cast %171 : vector<1x8x1xf32> to vector<8x1xf32>
    %cst_127 = arith.constant dense<0xFF800000> : vector<8xf32>
    %173 = vector.multi_reduction <maximumf>, %170, %cst_127 [1] : vector<8x8xf32> to vector<8xf32>
    %174 = vector.shape_cast %173 : vector<8xf32> to vector<8x1xf32>
    %175 = arith.maximumf %172, %174 : vector<8x1xf32>
    %176 = arith.subf %172, %175 : vector<8x1xf32>
    %177 = math.exp %176 : vector<8x1xf32>
    %178 = vector.broadcast %175 : vector<8x1xf32> to vector<8x8xf32>
    %179 = arith.subf %170, %178 : vector<8x8xf32>
    %180 = math.exp %179 : vector<8x8xf32>
    %c3_128 = arith.constant 3 : index
    %c0_129 = arith.constant 0 : index
    %c0_130 = arith.constant 0 : index
    %181 = vector.load %arg8[%c3_128, %c0_129, %c0_130] : memref<4x8x1xf32, #tpu.memory_space<vmem>>, vector<1x8x1xf32>
    %182 = vector.shape_cast %181 : vector<1x8x1xf32> to vector<8x1xf32>
    %183 = arith.mulf %177, %182 : vector<8x1xf32>
    %cst_131 = arith.constant dense<0.000000e+00> : vector<8xf32>
    %184 = vector.multi_reduction <add>, %180, %cst_131 [1] : vector<8x8xf32> to vector<8xf32>
    %185 = vector.shape_cast %184 : vector<8xf32> to vector<8x1xf32>
    %186 = arith.addf %183, %185 : vector<8x1xf32>
    %c3_132 = arith.constant 3 : index
    %c0_133 = arith.constant 0 : index
    %c0_134 = arith.constant 0 : index
    %187 = vector.load %arg8[%c3_132, %c0_133, %c0_134] : memref<4x8x1xf32, #tpu.memory_space<vmem>>, vector<1x8x1xf32>
    %188 = vector.shape_cast %187 : vector<1x8x1xf32> to vector<8x1xf32>
    %189 = vector.shape_cast %186 : vector<8x1xf32> to vector<1x8x1xf32>
    tpu.vector_store %arg8[%c3_132, %c0_133, %c0_134], %189 {strides = array<i32>} : memref<4x8x1xf32, #tpu.memory_space<vmem>>, vector<1x8x1xf32>,
    %c3_135 = arith.constant 3 : index
    %c0_136 = arith.constant 0 : index
    %c0_137 = arith.constant 0 : index
    %190 = vector.load %arg9[%c3_135, %c0_136, %c0_137] : memref<4x8x8xf32, #tpu.memory_space<vmem>>, vector<1x8x8xf32>
    %191 = vector.shape_cast %190 : vector<1x8x8xf32> to vector<8x8xf32>
    %192 = vector.broadcast %177 : vector<8x1xf32> to vector<8x8xf32>
    %193 = arith.mulf %192, %191 : vector<8x8xf32>
    %194 = arith.truncf %180 : vector<8x8xf32> to vector<8x8xbf16>
    %cst_138 = arith.constant dense<0.000000e+00> : vector<8x8xf32>
    %195 = tpu.matmul %194, %161, %cst_138 {dimension_numbers = #tpu.dot_dimension_numbers<[1], [0], [0], [1], [0, 0, 1, 1], [], []>} : vector<8x8xbf16>, vector<8x8xbf16>, vector<8x8xf32> -> vector<8x8xf32>
    %196 = arith.addf %193, %195 : vector<8x8xf32>
    %c3_139 = arith.constant 3 : index
    %c0_140 = arith.constant 0 : index
    %c0_141 = arith.constant 0 : index
    %197 = vector.load %arg9[%c3_139, %c0_140, %c0_141] : memref<4x8x8xf32, #tpu.memory_space<vmem>>, vector<1x8x8xf32>
    %198 = vector.shape_cast %197 : vector<1x8x8xf32> to vector<8x8xf32>
    %199 = vector.shape_cast %196 : vector<8x8xf32> to vector<1x8x8xf32>
    tpu.vector_store %arg9[%c3_139, %c0_140, %c0_141], %199 {strides = array<i32>} : memref<4x8x8xf32, #tpu.memory_space<vmem>>, vector<1x8x8xf32>,
    %c3_142 = arith.constant 3 : index
    %c0_143 = arith.constant 0 : index
    %c0_144 = arith.constant 0 : index
    %200 = vector.load %arg7[%c3_142, %c0_143, %c0_144] : memref<4x8x1xf32, #tpu.memory_space<vmem>>, vector<1x8x1xf32>
    %201 = vector.shape_cast %200 : vector<1x8x1xf32> to vector<8x1xf32>
    %202 = vector.shape_cast %175 : vector<8x1xf32> to vector<1x8x1xf32>
    tpu.vector_store %arg7[%c3_142, %c0_143, %c0_144], %202 {strides = array<i32>} : memref<4x8x1xf32, #tpu.memory_space<vmem>>, vector<1x8x1xf32>,
    %c0_i32_145 = arith.constant 0 : i32
    %203 = arith.cmpi eq, %arg1, %c0_i32_145 : i32
    %204 = arith.extui %203 : i1 to i32
    %c0_i32_146 = arith.constant 0 : i32
    %205 = arith.cmpi ne, %204, %c0_i32_146 : i32
    scf.if %205 {
      %c0_147 = arith.constant 0 : index
      %c0_148 = arith.constant 0 : index
      %c0_149 = arith.constant 0 : index
      %206 = vector.load %arg8[%c0_147, %c0_148, %c0_149] : memref<4x8x1xf32, #tpu.memory_space<vmem>>, vector<1x8x1xf32>
      %207 = vector.shape_cast %206 : vector<1x8x1xf32> to vector<8x1xf32>
      %208 = tpu.reciprocal %207 {approx = true} : vector<8x1xf32> -> vector<8x1xf32>
      %c0_150 = arith.constant 0 : index
      %c0_151 = arith.constant 0 : index
      %c0_152 = arith.constant 0 : index
      %209 = vector.load %arg9[%c0_150, %c0_151, %c0_152] : memref<4x8x8xf32, #tpu.memory_space<vmem>>, vector<1x8x8xf32>
      %210 = vector.shape_cast %209 : vector<1x8x8xf32> to vector<8x8xf32>
      %211 = vector.broadcast %208 : vector<8x1xf32> to vector<8x8xf32>
      %212 = arith.mulf %210, %211 : vector<8x8xf32>
      %c0_153 = arith.constant 0 : index
      %c0_154 = arith.constant 0 : index
      %c0_155 = arith.constant 0 : index
      %213 = vector.load %arg6[%c0_153, %c0_154, %c0_155] : memref<1x8x32xf32, #tpu.memory_space<vmem>>, vector<1x8x8xf32>
      %214 = vector.shape_cast %213 : vector<1x8x8xf32> to vector<8x8xf32>
      %215 = vector.shape_cast %212 : vector<8x8xf32> to vector<1x8x8xf32>
      tpu.vector_store %arg6[%c0_153, %c0_154, %c0_155], %215 {strides = array<i32>} : memref<1x8x32xf32, #tpu.memory_space<vmem>>, vector<1x8x8xf32>,
      %c1_156 = arith.constant 1 : index
      %c0_157 = arith.constant 0 : index
      %c0_158 = arith.constant 0 : index
      %216 = vector.load %arg8[%c1_156, %c0_157, %c0_158] : memref<4x8x1xf32, #tpu.memory_space<vmem>>, vector<1x8x1xf32>
      %217 = vector.shape_cast %216 : vector<1x8x1xf32> to vector<8x1xf32>
      %218 = tpu.reciprocal %217 {approx = true} : vector<8x1xf32> -> vector<8x1xf32>
      %c1_159 = arith.constant 1 : index
      %c0_160 = arith.constant 0 : index
      %c0_161 = arith.constant 0 : index
      %219 = vector.load %arg9[%c1_159, %c0_160, %c0_161] : memref<4x8x8xf32, #tpu.memory_space<vmem>>, vector<1x8x8xf32>
      %220 = vector.shape_cast %219 : vector<1x8x8xf32> to vector<8x8xf32>
      %221 = vector.broadcast %218 : vector<8x1xf32> to vector<8x8xf32>
      %222 = arith.mulf %220, %221 : vector<8x8xf32>
      %c0_162 = arith.constant 0 : index
      %c0_163 = arith.constant 0 : index
      %c8_164 = arith.constant 8 : index
      %223 = vector.load %arg6[%c0_162, %c0_163, %c8_164] : memref<1x8x32xf32, #tpu.memory_space<vmem>>, vector<1x8x8xf32>
      %224 = vector.shape_cast %223 : vector<1x8x8xf32> to vector<8x8xf32>
      %225 = vector.shape_cast %222 : vector<8x8xf32> to vector<1x8x8xf32>
      tpu.vector_store %arg6[%c0_162, %c0_163, %c8_164], %225 {strides = array<i32>} : memref<1x8x32xf32, #tpu.memory_space<vmem>>, vector<1x8x8xf32>,
      %c2_165 = arith.constant 2 : index
      %c0_166 = arith.constant 0 : index
      %c0_167 = arith.constant 0 : index
      %226 = vector.load %arg8[%c2_165, %c0_166, %c0_167] : memref<4x8x1xf32, #tpu.memory_space<vmem>>, vector<1x8x1xf32>
      %227 = vector.shape_cast %226 : vector<1x8x1xf32> to vector<8x1xf32>
      %228 = tpu.reciprocal %227 {approx = true} : vector<8x1xf32> -> vector<8x1xf32>
      %c2_168 = arith.constant 2 : index
      %c0_169 = arith.constant 0 : index
      %c0_170 = arith.constant 0 : index
      %229 = vector.load %arg9[%c2_168, %c0_169, %c0_170] : memref<4x8x8xf32, #tpu.memory_space<vmem>>, vector<1x8x8xf32>
      %230 = vector.shape_cast %229 : vector<1x8x8xf32> to vector<8x8xf32>
      %231 = vector.broadcast %228 : vector<8x1xf32> to vector<8x8xf32>
      %232 = arith.mulf %230, %231 : vector<8x8xf32>
      %c0_171 = arith.constant 0 : index
      %c0_172 = arith.constant 0 : index
      %c16_173 = arith.constant 16 : index
      %233 = vector.load %arg6[%c0_171, %c0_172, %c16_173] : memref<1x8x32xf32, #tpu.memory_space<vmem>>, vector<1x8x8xf32>
      %234 = vector.shape_cast %233 : vector<1x8x8xf32> to vector<8x8xf32>
      %235 = vector.shape_cast %232 : vector<8x8xf32> to vector<1x8x8xf32>
      tpu.vector_store %arg6[%c0_171, %c0_172, %c16_173], %235 {strides = array<i32>} : memref<1x8x32xf32, #tpu.memory_space<vmem>>, vector<1x8x8xf32>,
      %c3_174 = arith.constant 3 : index
      %c0_175 = arith.constant 0 : index
      %c0_176 = arith.constant 0 : index
      %236 = vector.load %arg8[%c3_174, %c0_175, %c0_176] : memref<4x8x1xf32, #tpu.memory_space<vmem>>, vector<1x8x1xf32>
      %237 = vector.shape_cast %236 : vector<1x8x1xf32> to vector<8x1xf32>
      %238 = tpu.reciprocal %237 {approx = true} : vector<8x1xf32> -> vector<8x1xf32>
      %c3_177 = arith.constant 3 : index
      %c0_178 = arith.constant 0 : index
      %c0_179 = arith.constant 0 : index
      %239 = vector.load %arg9[%c3_177, %c0_178, %c0_179] : memref<4x8x8xf32, #tpu.memory_space<vmem>>, vector<1x8x8xf32>
      %240 = vector.shape_cast %239 : vector<1x8x8xf32> to vector<8x8xf32>
      %241 = vector.broadcast %238 : vector<8x1xf32> to vector<8x8xf32>
      %242 = arith.mulf %240, %241 : vector<8x8xf32>
      %c0_180 = arith.constant 0 : index
      %c0_181 = arith.constant 0 : index
      %c24_182 = arith.constant 24 : index
      %243 = vector.load %arg6[%c0_180, %c0_181, %c24_182] : memref<1x8x32xf32, #tpu.memory_space<vmem>>, vector<1x8x8xf32>
      %244 = vector.shape_cast %243 : vector<1x8x8xf32> to vector<8x8xf32>
      %245 = vector.shape_cast %242 : vector<8x8xf32> to vector<1x8x8xf32>
      tpu.vector_store %arg6[%c0_180, %c0_181, %c24_182], %245 {strides = array<i32>} : memref<1x8x32xf32, #tpu.memory_space<vmem>>, vector<1x8x8xf32>,
    } else {
    }
    return
  }
  func.func @transform_0(%arg0: i32, %arg1: i32) -> (i32, i32, i32) {
    %c0_i32 = arith.constant 0 : i32
    %c0_i32_0 = arith.constant 0 : i32
    %c0_i32_1 = arith.constant 0 : i32
    return %arg0, %c0_i32, %c0_i32_0 : i32, i32, i32
  }
  func.func @transform_1(%arg0: i32, %arg1: i32) -> (i32, i32, i32) {
    %c0_i32 = arith.constant 0 : i32
    %c0_i32_0 = arith.constant 0 : i32
    return %arg0, %arg1, %c0_i32 : i32, i32, i32
  }
  func.func @transform_2(%arg0: i32, %arg1: i32) -> (i32, i32, i32) {
    %c0_i32 = arith.constant 0 : i32
    %c0_i32_0 = arith.constant 0 : i32
    return %arg0, %arg1, %c0_i32 : i32, i32, i32
  }
  func.func @transform_3(%arg0: i32, %arg1: i32) -> (i32, i32, i32, i32) {
    %c0_i32 = arith.constant 0 : i32
    %c0_i32_0 = arith.constant 0 : i32
    %c0_i32_1 = arith.constant 0 : i32
    %c0_i32_2 = arith.constant 0 : i32
    return %c0_i32, %c0_i32_0, %c0_i32_1, %arg1 : i32, i32, i32, i32
  }
  func.func @transform_4(%arg0: i32, %arg1: i32) -> (i32, i32, i32) {
    %c0_i32 = arith.constant 0 : i32
    %c0_i32_0 = arith.constant 0 : i32
    %c0_i32_1 = arith.constant 0 : i32
    return %arg0, %c0_i32, %c0_i32_0 : i32, i32, i32
  }
}

module attributes {stable_mosaic.version = 11 : i64} {
  func.func @_linear_kernel(%arg0: i32, %arg1: memref<16x32xf32, #tpu.memory_space<vmem>>, %arg2: memref<32x64xbf16, #tpu.memory_space<vmem>>, %arg3: memref<1x64xf32, #tpu.memory_space<vmem>>, %arg4: memref<16x64xf32, #tpu.memory_space<vmem>>) attributes {dimension_semantics = [#tpu.dimension_semantics<parallel>], iteration_bounds = array<i64: 1>, scalar_prefetch = 0 : i64, scratch_operands = 0 : i64, tpu.core_type = #tpu.core_type<tc>, window_params = [{transform_indices = @transform_0, window_bounds = array<i64: 16, 32>}, {pipeline_mode = #tpu.pipeline_mode<synchronous>, transform_indices = @transform_1, window_bounds = array<i64: 32, 64>}, {pipeline_mode = #tpu.pipeline_mode<synchronous>, transform_indices = @transform_2, window_bounds = array<i64: 1, 64>}, {transform_indices = @transform_3, window_bounds = array<i64: 16, 64>}]} {
    %c0 = arith.constant 0 : index
    %c0_0 = arith.constant 0 : index
    %0 = vector.load %arg1[%c0, %c0_0] : memref<16x32xf32, #tpu.memory_space<vmem>>, vector<16x32xf32>
    %1 = arith.truncf %0 : vector<16x32xf32> to vector<16x32xbf16>
    %c0_1 = arith.constant 0 : index
    %c0_2 = arith.constant 0 : index
    %2 = vector.load %arg2[%c0_1, %c0_2] : memref<32x64xbf16, #tpu.memory_space<vmem>>, vector<32x64xbf16>
    %cst = arith.constant dense<0.000000e+00> : vector<16x64xf32>
    %3 = tpu.matmul %1, %2, %cst {dimension_numbers = #tpu.dot_dimension_numbers<[1], [0], [0], [1], [0, 0, 1, 1], [], []>} : vector<16x32xbf16>, vector<32x64xbf16>, vector<16x64xf32> -> vector<16x64xf32>
    %c0_3 = arith.constant 0 : index
    %c0_4 = arith.constant 0 : index
    %4 = vector.load %arg3[%c0_3, %c0_4] : memref<1x64xf32, #tpu.memory_space<vmem>>, vector<1x64xf32>
    %5 = vector.broadcast %4 : vector<1x64xf32> to vector<16x64xf32>
    %6 = arith.addf %3, %5 : vector<16x64xf32>
    %c0_5 = arith.constant 0 : index
    %c0_6 = arith.constant 0 : index
    %7 = vector.load %arg4[%c0_5, %c0_6] : memref<16x64xf32, #tpu.memory_space<vmem>>, vector<16x64xf32>
    tpu.vector_store %arg4[%c0_5, %c0_6], %6 {strides = array<i32>} : memref<16x64xf32, #tpu.memory_space<vmem>>, vector<16x64xf32>,
    return
  }
  func.func @transform_0(%arg0: i32) -> (i32, i32) {
    %c0_i32 = arith.constant 0 : i32
    %c0_i32_0 = arith.constant 0 : i32
    return %arg0, %c0_i32 : i32, i32
  }
  func.func @transform_1(%arg0: i32) -> (i32, i32) {
    %c0_i32 = arith.constant 0 : i32
    %c0_i32_0 = arith.constant 0 : i32
    %c0_i32_1 = arith.constant 0 : i32
    return %c0_i32, %c0_i32_0 : i32, i32
  }
  func.func @transform_2(%arg0: i32) -> (i32, i32) {
    %c0_i32 = arith.constant 0 : i32
    %c0_i32_0 = arith.constant 0 : i32
    %c0_i32_1 = arith.constant 0 : i32
    return %c0_i32, %c0_i32_0 : i32, i32
  }
  func.func @transform_3(%arg0: i32) -> (i32, i32) {
    %c0_i32 = arith.constant 0 : i32
    %c0_i32_0 = arith.constant 0 : i32
    return %arg0, %c0_i32 : i32, i32
  }
}

module attributes {stable_mosaic.version = 11 : i64} {
  func.func @_mha_flash_kernel(%arg0: i32, %arg1: i32, %arg2: memref<1x8x32xf32, #tpu.memory_space<vmem>>, %arg3: memref<1x8x32xf32, #tpu.memory_space<vmem>>, %arg4: memref<1x8x32xf32, #tpu.memory_space<vmem>>, %arg5: memref<1x8x32xf32, #tpu.memory_space<vmem>>, %arg6: memref<4x8x1xf32, #tpu.memory_space<vmem>>, %arg7: memref<4x8x1xf32, #tpu.memory_space<vmem>>, %arg8: memref<4x8x8xf32, #tpu.memory_space<vmem>>) attributes {dimension_semantics = [#tpu.dimension_semantics<parallel>, #tpu.dimension_semantics<arbitrary>], iteration_bounds = array<i64: 2, 1>, scalar_prefetch = 0 : i64, scratch_operands = 3 : i64, tpu.core_type = #tpu.core_type<tc>, window_params = [{transform_indices = @transform_0, window_bounds = array<i64: 1, 8, 32>}, {transform_indices = @transform_1, window_bounds = array<i64: 1, 8, 32>}, {transform_indices = @transform_2, window_bounds = array<i64: 1, 8, 32>}, {transform_indices = @transform_3, window_bounds = array<i64: 1, 8, 32>}]} {
    %c0_i32 = arith.constant 0 : i32
    %0 = arith.cmpi eq, %arg1, %c0_i32 : i32
    %1 = arith.extui %0 : i1 to i32
    %c0_i32_0 = arith.constant 0 : i32
    %2 = arith.cmpi ne, %1, %c0_i32_0 : i32
    scf.if %2 {
      %cst_123 = arith.constant 0xFF800000 : f32
      %182 = vector.broadcast %cst_123 : f32 to vector<4x8x1xf32>
      %c0_124 = arith.constant 0 : index
      %c0_125 = arith.constant 0 : index
      %c0_126 = arith.constant 0 : index
      %183 = vector.load %arg6[%c0_124, %c0_125, %c0_126] : memref<4x8x1xf32, #tpu.memory_space<vmem>>, vector<4x8x1xf32>
      tpu.vector_store %arg6[%c0_124, %c0_125, %c0_126], %182 {strides = array<i32>} : memref<4x8x1xf32, #tpu.memory_space<vmem>>, vector<4x8x1xf32>,
      %cst_127 = arith.constant 0.000000e+00 : f32
      %184 = vector.broadcast %cst_127 : f32 to vector<4x8x1xf32>
      %c0_128 = arith.constant 0 : index
      %c0_129 = arith.constant 0 : index
      %c0_130 = arith.constant 0 : index
      %185 = vector.load %arg7[%c0_128, %c0_129, %c0_130] : memref<4x8x1xf32, #tpu.memory_space<vmem>>, vector<4x8x1xf32>
      tpu.vector_store %arg7[%c0_128, %c0_129, %c0_130], %184 {strides = array<i32>} : memref<4x8x1xf32, #tpu.memory_space<vmem>>, vector<4x8x1xf32>,
      %cst_131 = arith.constant 0.000000e+00 : f32
      %186 = vector.broadcast %cst_131 : f32 to vector<4x8x8xf32>
      %c0_132 = arith.constant 0 : index
      %c0_133 = arith.constant 0 : index
      %c0_134 = arith.constant 0 : index
      %187 = vector.load %arg8[%c0_132, %c0_133, %c0_134] : memref<4x8x8xf32, #tpu.memory_space<vmem>>, vector<4x8x8xf32>
      tpu.vector_store %arg8[%c0_132, %c0_133, %c0_134], %186 {strides = array<i32>} : memref<4x8x8xf32, #tpu.memory_space<vmem>>, vector<4x8x8xf32>,
    } else {
    }
    %c0 = arith.constant 0 : index
    %c0_1 = arith.constant 0 : index
    %c0_2 = arith.constant 0 : index
    %3 = vector.load %arg2[%c0, %c0_1, %c0_2] : memref<1x8x32xf32, #tpu.memory_space<vmem>>, vector<1x8x8xf32>
    %4 = vector.shape_cast %3 : vector<1x8x8xf32> to vector<8x8xf32>
    %5 = arith.truncf %4 : vector<8x8xf32> to vector<8x8xbf16>
    %c0_3 = arith.constant 0 : index
    %c0_4 = arith.constant 0 : index
    %c0_5 = arith.constant 0 : index
    %6 = vector.load %arg3[%c0_3, %c0_4, %c0_5] : memref<1x8x32xf32, #tpu.memory_space<vmem>>, vector<1x8x8xf32>
    %7 = vector.shape_cast %6 : vector<1x8x8xf32> to vector<8x8xf32>
    %8 = arith.truncf %7 : vector<8x8xf32> to vector<8x8xbf16>
    %c0_6 = arith.constant 0 : index
    %c0_7 = arith.constant 0 : index
    %c0_8 = arith.constant 0 : index
    %9 = vector.load %arg4[%c0_6, %c0_7, %c0_8] : memref<1x8x32xf32, #tpu.memory_space<vmem>>, vector<1x8x8xf32>
    %10 = vector.shape_cast %9 : vector<1x8x8xf32> to vector<8x8xf32>
    %11 = arith.truncf %10 : vector<8x8xf32> to vector<8x8xbf16>
    %cst = arith.constant dense<0.000000e+00> : vector<8x8xf32>
    %12 = tpu.matmul %5, %8, %cst {dimension_numbers = #tpu.dot_dimension_numbers<[1], [1], [0], [0], [0, 0, 1, 0], [], []>} : vector<8x8xbf16>, vector<8x8xbf16>, vector<8x8xf32> -> vector<8x8xf32>
    %cst_9 = arith.constant 0.353553385 : f32
    %13 = vector.broadcast %cst_9 : f32 to vector<8x8xf32>
    %14 = arith.mulf %12, %13 : vector<8x8xf32>
    %c0_10 = arith.constant 0 : index
    %c0_11 = arith.constant 0 : index
    %c0_12 = arith.constant 0 : index
    %15 = vector.load %arg6[%c0_10, %c0_11, %c0_12] : memref<4x8x1xf32, #tpu.memory_space<vmem>>, vector<1x8x1xf32>
    %16 = vector.shape_cast %15 : vector<1x8x1xf32> to vector<8x1xf32>
    %cst_13 = arith.constant dense<0xFF800000> : vector<8xf32>
    %17 = vector.multi_reduction <maximumf>, %14, %cst_13 [1] : vector<8x8xf32> to vector<8xf32>
    %18 = vector.shape_cast %17 : vector<8xf32> to vector<8x1xf32>
    %19 = arith.maximumf %16, %18 : vector<8x1xf32>
    %20 = arith.subf %16, %19 : vector<8x1xf32>
    %21 = math.exp %20 : vector<8x1xf32>
    %22 = vector.broadcast %19 : vector<8x1xf32> to vector<8x8xf32>
    %23 = arith.subf %14, %22 : vector<8x8xf32>
    %24 = math.exp %23 : vector<8x8xf32>
    %c0_14 = arith.constant 0 : index
    %c0_15 = arith.constant 0 : index
    %c0_16 = arith.constant 0 : index
    %25 = vector.load %arg7[%c0_14, %c0_15, %c0_16] : memref<4x8x1xf32, #tpu.memory_space<vmem>>, vector<1x8x1xf32>
    %26 = vector.shape_cast %25 : vector<1x8x1xf32> to vector<8x1xf32>
    %27 = arith.mulf %21, %26 : vector<8x1xf32>
    %cst_17 = arith.constant dense<0.000000e+00> : vector<8xf32>
    %28 = vector.multi_reduction <add>, %24, %cst_17 [1] : vector<8x8xf32> to vector<8xf32>
    %29 = vector.shape_cast %28 : vector<8xf32> to vector<8x1xf32>
    %30 = arith.addf %27, %29 : vector<8x1xf32>
    %c0_18 = arith.constant 0 : index
    %c0_19 = arith.constant 0 : index
    %c0_20 = arith.constant 0 : index
    %31 = vector.load %arg7[%c0_18, %c0_19, %c0_20] : memref<4x8x1xf32, #tpu.memory_space<vmem>>, vector<1x8x1xf32>
    %32 = vector.shape_cast %31 : vector<1x8x1xf32> to vector<8x1xf32>
    %33 = vector.shape_cast %30 : vector<8x1xf32> to vector<1x8x1xf32>
    tpu.vector_store %arg7[%c0_18, %c0_19, %c0_20], %33 {strides = array<i32>} : memref<4x8x1xf32, #tpu.memory_space<vmem>>, vector<1x8x1xf32>,
    %c0_21 = arith.constant 0 : index
    %c0_22 = arith.constant 0 : index
    %c0_23 = arith.constant 0 : index
    %34 = vector.load %arg8[%c0_21, %c0_22, %c0_23] : memref<4x8x8xf32, #tpu.memory_space<vmem>>, vector<1x8x8xf32>
    %35 = vector.shape_cast %34 : vector<1x8x8xf32> to vector<8x8xf32>
    %36 = vector.broadcast %21 : vector<8x1xf32> to vector<8x8xf32>
    %37 = arith.mulf %36, %35 : vector<8x8xf32>
    %38 = arith.truncf %24 : vector<8x8xf32> to vector<8x8xbf16>
    %cst_24 = arith.constant dense<0.000000e+00> : vector<8x8xf32>
    %39 = tpu.matmul %38, %11, %cst_24 {dimension_numbers = #tpu.dot_dimension_numbers<[1], [0], [0], [1], [0, 0, 1, 1], [], []>} : vector<8x8xbf16>, vector<8x8xbf16>, vector<8x8xf32> -> vector<8x8xf32>
    %40 = arith.addf %37, %39 : vector<8x8xf32>
    %c0_25 = arith.constant 0 : index
    %c0_26 = arith.constant 0 : index
    %c0_27 = arith.constant 0 : index
    %41 = vector.load %arg8[%c0_25, %c0_26, %c0_27] : memref<4x8x8xf32, #tpu.memory_space<vmem>>, vector<1x8x8xf32>
    %42 = vector.shape_cast %41 : vector<1x8x8xf32> to vector<8x8xf32>
    %43 = vector.shape_cast %40 : vector<8x8xf32> to vector<1x8x8xf32>
    tpu.vector_store %arg8[%c0_25, %c0_26, %c0_27], %43 {strides = array<i32>} : memref<4x8x8xf32, #tpu.memory_space<vmem>>, vector<1x8x8xf32>,
    %c0_28 = arith.constant 0 : index
    %c0_29 = arith.constant 0 : index
    %c0_30 = arith.constant 0 : index
    %44 = vector.load %arg6[%c0_28, %c0_29, %c0_30] : memref<4x8x1xf32, #tpu.memory_space<vmem>>, vector<1x8x1xf32>
    %45 = vector.shape_cast %44 : vector<1x8x1xf32> to vector<8x1xf32>
    %46 = vector.shape_cast %19 : vector<8x1xf32> to vector<1x8x1xf32>
    tpu.vector_store %arg6[%c0_28, %c0_29, %c0_30], %46 {strides = array<i32>} : memref<4x8x1xf32, #tpu.memory_space<vmem>>, vector<1x8x1xf32>,
    %c0_31 = arith.constant 0 : index
    %c0_32 = arith.constant 0 : index
    %c8 = arith.constant 8 : index
    %47 = vector.load %arg2[%c0_31, %c0_32, %c8] : memref<1x8x32xf32, #tpu.memory_space<vmem>>, vector<1x8x8xf32>
    %48 = vector.shape_cast %47 : vector<1x8x8xf32> to vector<8x8xf32>
    %49 = arith.truncf %48 : vector<8x8xf32> to vector<8x8xbf16>
    %c0_33 = arith.constant 0 : index
    %c0_34 = arith.constant 0 : index
    %c8_35 = arith.constant 8 : index
    %50 = vector.load %arg3[%c0_33, %c0_34, %c8_35] : memref<1x8x32xf32, #tpu.memory_space<vmem>>, vector<1x8x8xf32>
    %51 = vector.shape_cast %50 : vector<1x8x8xf32> to vector<8x8xf32>
    %52 = arith.truncf %51 : vector<8x8xf32> to vector<8x8xbf16>
    %c0_36 = arith.constant 0 : index
    %c0_37 = arith.constant 0 : index
    %c8_38 = arith.constant 8 : index
    %53 = vector.load %arg4[%c0_36, %c0_37, %c8_38] : memref<1x8x32xf32, #tpu.memory_space<vmem>>, vector<1x8x8xf32>
    %54 = vector.shape_cast %53 : vector<1x8x8xf32> to vector<8x8xf32>
    %55 = arith.truncf %54 : vector<8x8xf32> to vector<8x8xbf16>
    %cst_39 = arith.constant dense<0.000000e+00> : vector<8x8xf32>
    %56 = tpu.matmul %49, %52, %cst_39 {dimension_numbers = #tpu.dot_dimension_numbers<[1], [1], [0], [0], [0, 0, 1, 0], [], []>} : vector<8x8xbf16>, vector<8x8xbf16>, vector<8x8xf32> -> vector<8x8xf32>
    %cst_40 = arith.constant 0.353553385 : f32
    %57 = vector.broadcast %cst_40 : f32 to vector<8x8xf32>
    %58 = arith.mulf %56, %57 : vector<8x8xf32>
    %c1 = arith.constant 1 : index
    %c0_41 = arith.constant 0 : index
    %c0_42 = arith.constant 0 : index
    %59 = vector.load %arg6[%c1, %c0_41, %c0_42] : memref<4x8x1xf32, #tpu.memory_space<vmem>>, vector<1x8x1xf32>
    %60 = vector.shape_cast %59 : vector<1x8x1xf32> to vector<8x1xf32>
    %cst_43 = arith.constant dense<0xFF800000> : vector<8xf32>
    %61 = vector.multi_reduction <maximumf>, %58, %cst_43 [1] : vector<8x8xf32> to vector<8xf32>
    %62 = vector.shape_cast %61 : vector<8xf32> to vector<8x1xf32>
    %63 = arith.maximumf %60, %62 : vector<8x1xf32>
    %64 = arith.subf %60, %63 : vector<8x1xf32>
    %65 = math.exp %64 : vector<8x1xf32>
    %66 = vector.broadcast %63 : vector<8x1xf32> to vector<8x8xf32>
    %67 = arith.subf %58, %66 : vector<8x8xf32>
    %68 = math.exp %67 : vector<8x8xf32>
    %c1_44 = arith.constant 1 : index
    %c0_45 = arith.constant 0 : index
    %c0_46 = arith.constant 0 : index
    %69 = vector.load %arg7[%c1_44, %c0_45, %c0_46] : memref<4x8x1xf32, #tpu.memory_space<vmem>>, vector<1x8x1xf32>
    %70 = vector.shape_cast %69 : vector<1x8x1xf32> to vector<8x1xf32>
    %71 = arith.mulf %65, %70 : vector<8x1xf32>
    %cst_47 = arith.constant dense<0.000000e+00> : vector<8xf32>
    %72 = vector.multi_reduction <add>, %68, %cst_47 [1] : vector<8x8xf32> to vector<8xf32>
    %73 = vector.shape_cast %72 : vector<8xf32> to vector<8x1xf32>
    %74 = arith.addf %71, %73 : vector<8x1xf32>
    %c1_48 = arith.constant 1 : index
    %c0_49 = arith.constant 0 : index
    %c0_50 = arith.constant 0 : index
    %75 = vector.load %arg7[%c1_48, %c0_49, %c0_50] : memref<4x8x1xf32, #tpu.memory_space<vmem>>, vector<1x8x1xf32>
    %76 = vector.shape_cast %75 : vector<1x8x1xf32> to vector<8x1xf32>
    %77 = vector.shape_cast %74 : vector<8x1xf32> to vector<1x8x1xf32>
    tpu.vector_store %arg7[%c1_48, %c0_49, %c0_50], %77 {strides = array<i32>} : memref<4x8x1xf32, #tpu.memory_space<vmem>>, vector<1x8x1xf32>,
    %c1_51 = arith.constant 1 : index
    %c0_52 = arith.constant 0 : index
    %c0_53 = arith.constant 0 : index
    %78 = vector.load %arg8[%c1_51, %c0_52, %c0_53] : memref<4x8x8xf32, #tpu.memory_space<vmem>>, vector<1x8x8xf32>
    %79 = vector.shape_cast %78 : vector<1x8x8xf32> to vector<8x8xf32>
    %80 = vector.broadcast %65 : vector<8x1xf32> to vector<8x8xf32>
    %81 = arith.mulf %80, %79 : vector<8x8xf32>
    %82 = arith.truncf %68 : vector<8x8xf32> to vector<8x8xbf16>
    %cst_54 = arith.constant dense<0.000000e+00> : vector<8x8xf32>
    %83 = tpu.matmul %82, %55, %cst_54 {dimension_numbers = #tpu.dot_dimension_numbers<[1], [0], [0], [1], [0, 0, 1, 1], [], []>} : vector<8x8xbf16>, vector<8x8xbf16>, vector<8x8xf32> -> vector<8x8xf32>
    %84 = arith.addf %81, %83 : vector<8x8xf32>
    %c1_55 = arith.constant 1 : index
    %c0_56 = arith.constant 0 : index
    %c0_57 = arith.constant 0 : index
    %85 = vector.load %arg8[%c1_55, %c0_56, %c0_57] : memref<4x8x8xf32, #tpu.memory_space<vmem>>, vector<1x8x8xf32>
    %86 = vector.shape_cast %85 : vector<1x8x8xf32> to vector<8x8xf32>
    %87 = vector.shape_cast %84 : vector<8x8xf32> to vector<1x8x8xf32>
    tpu.vector_store %arg8[%c1_55, %c0_56, %c0_57], %87 {strides = array<i32>} : memref<4x8x8xf32, #tpu.memory_space<vmem>>, vector<1x8x8xf32>,
    %c1_58 = arith.constant 1 : index
    %c0_59 = arith.constant 0 : index
    %c0_60 = arith.constant 0 : index
    %88 = vector.load %arg6[%c1_58, %c0_59, %c0_60] : memref<4x8x1xf32, #tpu.memory_space<vmem>>, vector<1x8x1xf32>
    %89 = vector.shape_cast %88 : vector<1x8x1xf32> to vector<8x1xf32>
    %90 = vector.shape_cast %63 : vector<8x1xf32> to vector<1x8x1xf32>
    tpu.vector_store %arg6[%c1_58, %c0_59, %c0_60], %90 {strides = array<i32>} : memref<4x8x1xf32, #tpu.memory_space<vmem>>, vector<1x8x1xf32>,
    %c0_61 = arith.constant 0 : index
    %c0_62 = arith.constant 0 : index
    %c16 = arith.constant 16 : index
    %91 = vector.load %arg2[%c0_61, %c0_62, %c16] : memref<1x8x32xf32, #tpu.memory_space<vmem>>, vector<1x8x8xf32>
    %92 = vector.shape_cast %91 : vector<1x8x8xf32> to vector<8x8xf32>
    %93 = arith.truncf %92 : vector<8x8xf32> to vector<8x8xbf16>
    %c0_63 = arith.constant 0 : index
    %c0_64 = arith.constant 0 : index
    %c16_65 = arith.constant 16 : index
    %94 = vector.load %arg3[%c0_63, %c0_64, %c16_65] : memref<1x8x32xf32, #tpu.memory_space<vmem>>, vector<1x8x8xf32>
    %95 = vector.shape_cast %94 : vector<1x8x8xf32> to vector<8x8xf32>
    %96 = arith.truncf %95 : vector<8x8xf32> to vector<8x8xbf16>
    %c0_66 = arith.constant 0 : index
    %c0_67 = arith.constant 0 : index
    %c16_68 = arith.constant 16 : index
    %97 = vector.load %arg4[%c0_66, %c0_67, %c16_68] : memref<1x8x32xf32, #tpu.memory_space<vmem>>, vector<1x8x8xf32>
    %98 = vector.shape_cast %97 : vector<1x8x8xf32> to vector<8x8xf32>
    %99 = arith.truncf %98 : vector<8x8xf32> to vector<8x8xbf16>
    %cst_69 = arith.constant dense<0.000000e+00> : vector<8x8xf32>
    %100 = tpu.matmul %93, %96, %cst_69 {dimension_numbers = #tpu.dot_dimension_numbers<[1], [1], [0], [0], [0, 0, 1, 0], [], []>} : vector<8x8xbf16>, vector<8x8xbf16>, vector<8x8xf32> -> vector<8x8xf32>
    %cst_70 = arith.constant 0.353553385 : f32
    %101 = vector.broadcast %cst_70 : f32 to vector<8x8xf32>
    %102 = arith.mulf %100, %101 : vector<8x8xf32>
    %c2 = arith.constant 2 : index
    %c0_71 = arith.constant 0 : index
    %c0_72 = arith.constant 0 : index
    %103 = vector.load %arg6[%c2, %c0_71, %c0_72] : memref<4x8x1xf32, #tpu.memory_space<vmem>>, vector<1x8x1xf32>
    %104 = vector.shape_cast %103 : vector<1x8x1xf32> to vector<8x1xf32>
    %cst_73 = arith.constant dense<0xFF800000> : vector<8xf32>
    %105 = vector.multi_reduction <maximumf>, %102, %cst_73 [1] : vector<8x8xf32> to vector<8xf32>
    %106 = vector.shape_cast %105 : vector<8xf32> to vector<8x1xf32>
    %107 = arith.maximumf %104, %106 : vector<8x1xf32>
    %108 = arith.subf %104, %107 : vector<8x1xf32>
    %109 = math.exp %108 : vector<8x1xf32>
    %110 = vector.broadcast %107 : vector<8x1xf32> to vector<8x8xf32>
    %111 = arith.subf %102, %110 : vector<8x8xf32>
    %112 = math.exp %111 : vector<8x8xf32>
    %c2_74 = arith.constant 2 : index
    %c0_75 = arith.constant 0 : index
    %c0_76 = arith.constant 0 : index
    %113 = vector.load %arg7[%c2_74, %c0_75, %c0_76] : memref<4x8x1xf32, #tpu.memory_space<vmem>>, vector<1x8x1xf32>
    %114 = vector.shape_cast %113 : vector<1x8x1xf32> to vector<8x1xf32>
    %115 = arith.mulf %109, %114 : vector<8x1xf32>
    %cst_77 = arith.constant dense<0.000000e+00> : vector<8xf32>
    %116 = vector.multi_reduction <add>, %112, %cst_77 [1] : vector<8x8xf32> to vector<8xf32>
    %117 = vector.shape_cast %116 : vector<8xf32> to vector<8x1xf32>
    %118 = arith.addf %115, %117 : vector<8x1xf32>
    %c2_78 = arith.constant 2 : index
    %c0_79 = arith.constant 0 : index
    %c0_80 = arith.constant 0 : index
    %119 = vector.load %arg7[%c2_78, %c0_79, %c0_80] : memref<4x8x1xf32, #tpu.memory_space<vmem>>, vector<1x8x1xf32>
    %120 = vector.shape_cast %119 : vector<1x8x1xf32> to vector<8x1xf32>
    %121 = vector.shape_cast %118 : vector<8x1xf32> to vector<1x8x1xf32>
    tpu.vector_store %arg7[%c2_78, %c0_79, %c0_80], %121 {strides = array<i32>} : memref<4x8x1xf32, #tpu.memory_space<vmem>>, vector<1x8x1xf32>,
    %c2_81 = arith.constant 2 : index
    %c0_82 = arith.constant 0 : index
    %c0_83 = arith.constant 0 : index
    %122 = vector.load %arg8[%c2_81, %c0_82, %c0_83] : memref<4x8x8xf32, #tpu.memory_space<vmem>>, vector<1x8x8xf32>
    %123 = vector.shape_cast %122 : vector<1x8x8xf32> to vector<8x8xf32>
    %124 = vector.broadcast %109 : vector<8x1xf32> to vector<8x8xf32>
    %125 = arith.mulf %124, %123 : vector<8x8xf32>
    %126 = arith.truncf %112 : vector<8x8xf32> to vector<8x8xbf16>
    %cst_84 = arith.constant dense<0.000000e+00> : vector<8x8xf32>
    %127 = tpu.matmul %126, %99, %cst_84 {dimension_numbers = #tpu.dot_dimension_numbers<[1], [0], [0], [1], [0, 0, 1, 1], [], []>} : vector<8x8xbf16>, vector<8x8xbf16>, vector<8x8xf32> -> vector<8x8xf32>
    %128 = arith.addf %125, %127 : vector<8x8xf32>
    %c2_85 = arith.constant 2 : index
    %c0_86 = arith.constant 0 : index
    %c0_87 = arith.constant 0 : index
    %129 = vector.load %arg8[%c2_85, %c0_86, %c0_87] : memref<4x8x8xf32, #tpu.memory_space<vmem>>, vector<1x8x8xf32>
    %130 = vector.shape_cast %129 : vector<1x8x8xf32> to vector<8x8xf32>
    %131 = vector.shape_cast %128 : vector<8x8xf32> to vector<1x8x8xf32>
    tpu.vector_store %arg8[%c2_85, %c0_86, %c0_87], %131 {strides = array<i32>} : memref<4x8x8xf32, #tpu.memory_space<vmem>>, vector<1x8x8xf32>,
    %c2_88 = arith.constant 2 : index
    %c0_89 = arith.constant 0 : index
    %c0_90 = arith.constant 0 : index
    %132 = vector.load %arg6[%c2_88, %c0_89, %c0_90] : memref<4x8x1xf32, #tpu.memory_space<vmem>>, vector<1x8x1xf32>
    %133 = vector.shape_cast %132 : vector<1x8x1xf32> to vector<8x1xf32>
    %134 = vector.shape_cast %107 : vector<8x1xf32> to vector<1x8x1xf32>
    tpu.vector_store %arg6[%c2_88, %c0_89, %c0_90], %134 {strides = array<i32>} : memref<4x8x1xf32, #tpu.memory_space<vmem>>, vector<1x8x1xf32>,
    %c0_91 = arith.constant 0 : index
    %c0_92 = arith.constant 0 : index
    %c24 = arith.constant 24 : index
    %135 = vector.load %arg2[%c0_91, %c0_92, %c24] : memref<1x8x32xf32, #tpu.memory_space<vmem>>, vector<1x8x8xf32>
    %136 = vector.shape_cast %135 : vector<1x8x8xf32> to vector<8x8xf32>
    %137 = arith.truncf %136 : vector<8x8xf32> to vector<8x8xbf16>
    %c0_93 = arith.constant 0 : index
    %c0_94 = arith.constant 0 : index
    %c24_95 = arith.constant 24 : index
    %138 = vector.load %arg3[%c0_93, %c0_94, %c24_95] : memref<1x8x32xf32, #tpu.memory_space<vmem>>, vector<1x8x8xf32>
    %139 = vector.shape_cast %138 : vector<1x8x8xf32> to vector<8x8xf32>
    %140 = arith.truncf %139 : vector<8x8xf32> to vector<8x8xbf16>
    %c0_96 = arith.constant 0 : index
    %c0_97 = arith.constant 0 : index
    %c24_98 = arith.constant 24 : index
    %141 = vector.load %arg4[%c0_96, %c0_97, %c24_98] : memref<1x8x32xf32, #tpu.memory_space<vmem>>, vector<1x8x8xf32>
    %142 = vector.shape_cast %141 : vector<1x8x8xf32> to vector<8x8xf32>
    %143 = arith.truncf %142 : vector<8x8xf32> to vector<8x8xbf16>
    %cst_99 = arith.constant dense<0.000000e+00> : vector<8x8xf32>
    %144 = tpu.matmul %137, %140, %cst_99 {dimension_numbers = #tpu.dot_dimension_numbers<[1], [1], [0], [0], [0, 0, 1, 0], [], []>} : vector<8x8xbf16>, vector<8x8xbf16>, vector<8x8xf32> -> vector<8x8xf32>
    %cst_100 = arith.constant 0.353553385 : f32
    %145 = vector.broadcast %cst_100 : f32 to vector<8x8xf32>
    %146 = arith.mulf %144, %145 : vector<8x8xf32>
    %c3 = arith.constant 3 : index
    %c0_101 = arith.constant 0 : index
    %c0_102 = arith.constant 0 : index
    %147 = vector.load %arg6[%c3, %c0_101, %c0_102] : memref<4x8x1xf32, #tpu.memory_space<vmem>>, vector<1x8x1xf32>
    %148 = vector.shape_cast %147 : vector<1x8x1xf32> to vector<8x1xf32>
    %cst_103 = arith.constant dense<0xFF800000> : vector<8xf32>
    %149 = vector.multi_reduction <maximumf>, %146, %cst_103 [1] : vector<8x8xf32> to vector<8xf32>
    %150 = vector.shape_cast %149 : vector<8xf32> to vector<8x1xf32>
    %151 = arith.maximumf %148, %150 : vector<8x1xf32>
    %152 = arith.subf %148, %151 : vector<8x1xf32>
    %153 = math.exp %152 : vector<8x1xf32>
    %154 = vector.broadcast %151 : vector<8x1xf32> to vector<8x8xf32>
    %155 = arith.subf %146, %154 : vector<8x8xf32>
    %156 = math.exp %155 : vector<8x8xf32>
    %c3_104 = arith.constant 3 : index
    %c0_105 = arith.constant 0 : index
    %c0_106 = arith.constant 0 : index
    %157 = vector.load %arg7[%c3_104, %c0_105, %c0_106] : memref<4x8x1xf32, #tpu.memory_space<vmem>>, vector<1x8x1xf32>
    %158 = vector.shape_cast %157 : vector<1x8x1xf32> to vector<8x1xf32>
    %159 = arith.mulf %153, %158 : vector<8x1xf32>
    %cst_107 = arith.constant dense<0.000000e+00> : vector<8xf32>
    %160 = vector.multi_reduction <add>, %156, %cst_107 [1] : vector<8x8xf32> to vector<8xf32>
    %161 = vector.shape_cast %160 : vector<8xf32> to vector<8x1xf32>
    %162 = arith.addf %159, %161 : vector<8x1xf32>
    %c3_108 = arith.constant 3 : index
    %c0_109 = arith.constant 0 : index
    %c0_110 = arith.constant 0 : index
    %163 = vector.load %arg7[%c3_108, %c0_109, %c0_110] : memref<4x8x1xf32, #tpu.memory_space<vmem>>, vector<1x8x1xf32>
    %164 = vector.shape_cast %163 : vector<1x8x1xf32> to vector<8x1xf32>
    %165 = vector.shape_cast %162 : vector<8x1xf32> to vector<1x8x1xf32>
    tpu.vector_store %arg7[%c3_108, %c0_109, %c0_110], %165 {strides = array<i32>} : memref<4x8x1xf32, #tpu.memory_space<vmem>>, vector<1x8x1xf32>,
    %c3_111 = arith.constant 3 : index
    %c0_112 = arith.constant 0 : index
    %c0_113 = arith.constant 0 : index
    %166 = vector.load %arg8[%c3_111, %c0_112, %c0_113] : memref<4x8x8xf32, #tpu.memory_space<vmem>>, vector<1x8x8xf32>
    %167 = vector.shape_cast %166 : vector<1x8x8xf32> to vector<8x8xf32>
    %168 = vector.broadcast %153 : vector<8x1xf32> to vector<8x8xf32>
    %169 = arith.mulf %168, %167 : vector<8x8xf32>
    %170 = arith.truncf %156 : vector<8x8xf32> to vector<8x8xbf16>
    %cst_114 = arith.constant dense<0.000000e+00> : vector<8x8xf32>
    %171 = tpu.matmul %170, %143, %cst_114 {dimension_numbers = #tpu.dot_dimension_numbers<[1], [0], [0], [1], [0, 0, 1, 1], [], []>} : vector<8x8xbf16>, vector<8x8xbf16>, vector<8x8xf32> -> vector<8x8xf32>
    %172 = arith.addf %169, %171 : vector<8x8xf32>
    %c3_115 = arith.constant 3 : index
    %c0_116 = arith.constant 0 : index
    %c0_117 = arith.constant 0 : index
    %173 = vector.load %arg8[%c3_115, %c0_116, %c0_117] : memref<4x8x8xf32, #tpu.memory_space<vmem>>, vector<1x8x8xf32>
    %174 = vector.shape_cast %173 : vector<1x8x8xf32> to vector<8x8xf32>
    %175 = vector.shape_cast %172 : vector<8x8xf32> to vector<1x8x8xf32>
    tpu.vector_store %arg8[%c3_115, %c0_116, %c0_117], %175 {strides = array<i32>} : memref<4x8x8xf32, #tpu.memory_space<vmem>>, vector<1x8x8xf32>,
    %c3_118 = arith.constant 3 : index
    %c0_119 = arith.constant 0 : index
    %c0_120 = arith.constant 0 : index
    %176 = vector.load %arg6[%c3_118, %c0_119, %c0_120] : memref<4x8x1xf32, #tpu.memory_space<vmem>>, vector<1x8x1xf32>
    %177 = vector.shape_cast %176 : vector<1x8x1xf32> to vector<8x1xf32>
    %178 = vector.shape_cast %151 : vector<8x1xf32> to vector<1x8x1xf32>
    tpu.vector_store %arg6[%c3_118, %c0_119, %c0_120], %178 {strides = array<i32>} : memref<4x8x1xf32, #tpu.memory_space<vmem>>, vector<1x8x1xf32>,
    %c0_i32_121 = arith.constant 0 : i32
    %179 = arith.cmpi eq, %arg1, %c0_i32_121 : i32
    %180 = arith.extui %179 : i1 to i32
    %c0_i32_122 = arith.constant 0 : i32
    %181 = arith.cmpi ne, %180, %c0_i32_122 : i32
    scf.if %181 {
      %c0_123 = arith.constant 0 : index
      %c0_124 = arith.constant 0 : index
      %c0_125 = arith.constant 0 : index
      %182 = vector.load %arg7[%c0_123, %c0_124, %c0_125] : memref<4x8x1xf32, #tpu.memory_space<vmem>>, vector<1x8x1xf32>
      %183 = vector.shape_cast %182 : vector<1x8x1xf32> to vector<8x1xf32>
      %184 = tpu.reciprocal %183 {approx = true} : vector<8x1xf32> -> vector<8x1xf32>
      %c0_126 = arith.constant 0 : index
      %c0_127 = arith.constant 0 : index
      %c0_128 = arith.constant 0 : index
      %185 = vector.load %arg8[%c0_126, %c0_127, %c0_128] : memref<4x8x8xf32, #tpu.memory_space<vmem>>, vector<1x8x8xf32>
      %186 = vector.shape_cast %185 : vector<1x8x8xf32> to vector<8x8xf32>
      %187 = vector.broadcast %184 : vector<8x1xf32> to vector<8x8xf32>
      %188 = arith.mulf %186, %187 : vector<8x8xf32>
      %c0_129 = arith.constant 0 : index
      %c0_130 = arith.constant 0 : index
      %c0_131 = arith.constant 0 : index
      %189 = vector.load %arg5[%c0_129, %c0_130, %c0_131] : memref<1x8x32xf32, #tpu.memory_space<vmem>>, vector<1x8x8xf32>
      %190 = vector.shape_cast %189 : vector<1x8x8xf32> to vector<8x8xf32>
      %191 = vector.shape_cast %188 : vector<8x8xf32> to vector<1x8x8xf32>
      tpu.vector_store %arg5[%c0_129, %c0_130, %c0_131], %191 {strides = array<i32>} : memref<1x8x32xf32, #tpu.memory_space<vmem>>, vector<1x8x8xf32>,
      %c1_132 = arith.constant 1 : index
      %c0_133 = arith.constant 0 : index
      %c0_134 = arith.constant 0 : index
      %192 = vector.load %arg7[%c1_132, %c0_133, %c0_134] : memref<4x8x1xf32, #tpu.memory_space<vmem>>, vector<1x8x1xf32>
      %193 = vector.shape_cast %192 : vector<1x8x1xf32> to vector<8x1xf32>
      %194 = tpu.reciprocal %193 {approx = true} : vector<8x1xf32> -> vector<8x1xf32>
      %c1_135 = arith.constant 1 : index
      %c0_136 = arith.constant 0 : index
      %c0_137 = arith.constant 0 : index
      %195 = vector.load %arg8[%c1_135, %c0_136, %c0_137] : memref<4x8x8xf32, #tpu.memory_space<vmem>>, vector<1x8x8xf32>
      %196 = vector.shape_cast %195 : vector<1x8x8xf32> to vector<8x8xf32>
      %197 = vector.broadcast %194 : vector<8x1xf32> to vector<8x8xf32>
      %198 = arith.mulf %196, %197 : vector<8x8xf32>
      %c0_138 = arith.constant 0 : index
      %c0_139 = arith.constant 0 : index
      %c8_140 = arith.constant 8 : index
      %199 = vector.load %arg5[%c0_138, %c0_139, %c8_140] : memref<1x8x32xf32, #tpu.memory_space<vmem>>, vector<1x8x8xf32>
      %200 = vector.shape_cast %199 : vector<1x8x8xf32> to vector<8x8xf32>
      %201 = vector.shape_cast %198 : vector<8x8xf32> to vector<1x8x8xf32>
      tpu.vector_store %arg5[%c0_138, %c0_139, %c8_140], %201 {strides = array<i32>} : memref<1x8x32xf32, #tpu.memory_space<vmem>>, vector<1x8x8xf32>,
      %c2_141 = arith.constant 2 : index
      %c0_142 = arith.constant 0 : index
      %c0_143 = arith.constant 0 : index
      %202 = vector.load %arg7[%c2_141, %c0_142, %c0_143] : memref<4x8x1xf32, #tpu.memory_space<vmem>>, vector<1x8x1xf32>
      %203 = vector.shape_cast %202 : vector<1x8x1xf32> to vector<8x1xf32>
      %204 = tpu.reciprocal %203 {approx = true} : vector<8x1xf32> -> vector<8x1xf32>
      %c2_144 = arith.constant 2 : index
      %c0_145 = arith.constant 0 : index
      %c0_146 = arith.constant 0 : index
      %205 = vector.load %arg8[%c2_144, %c0_145, %c0_146] : memref<4x8x8xf32, #tpu.memory_space<vmem>>, vector<1x8x8xf32>
      %206 = vector.shape_cast %205 : vector<1x8x8xf32> to vector<8x8xf32>
      %207 = vector.broadcast %204 : vector<8x1xf32> to vector<8x8xf32>
      %208 = arith.mulf %206, %207 : vector<8x8xf32>
      %c0_147 = arith.constant 0 : index
      %c0_148 = arith.constant 0 : index
      %c16_149 = arith.constant 16 : index
      %209 = vector.load %arg5[%c0_147, %c0_148, %c16_149] : memref<1x8x32xf32, #tpu.memory_space<vmem>>, vector<1x8x8xf32>
      %210 = vector.shape_cast %209 : vector<1x8x8xf32> to vector<8x8xf32>
      %211 = vector.shape_cast %208 : vector<8x8xf32> to vector<1x8x8xf32>
      tpu.vector_store %arg5[%c0_147, %c0_148, %c16_149], %211 {strides = array<i32>} : memref<1x8x32xf32, #tpu.memory_space<vmem>>, vector<1x8x8xf32>,
      %c3_150 = arith.constant 3 : index
      %c0_151 = arith.constant 0 : index
      %c0_152 = arith.constant 0 : index
      %212 = vector.load %arg7[%c3_150, %c0_151, %c0_152] : memref<4x8x1xf32, #tpu.memory_space<vmem>>, vector<1x8x1xf32>
      %213 = vector.shape_cast %212 : vector<1x8x1xf32> to vector<8x1xf32>
      %214 = tpu.reciprocal %213 {approx = true} : vector<8x1xf32> -> vector<8x1xf32>
      %c3_153 = arith.constant 3 : index
      %c0_154 = arith.constant 0 : index
      %c0_155 = arith.constant 0 : index
      %215 = vector.load %arg8[%c3_153, %c0_154, %c0_155] : memref<4x8x8xf32, #tpu.memory_space<vmem>>, vector<1x8x8xf32>
      %216 = vector.shape_cast %215 : vector<1x8x8xf32> to vector<8x8xf32>
      %217 = vector.broadcast %214 : vector<8x1xf32> to vector<8x8xf32>
      %218 = arith.mulf %216, %217 : vector<8x8xf32>
      %c0_156 = arith.constant 0 : index
      %c0_157 = arith.constant 0 : index
      %c24_158 = arith.constant 24 : index
      %219 = vector.load %arg5[%c0_156, %c0_157, %c24_158] : memref<1x8x32xf32, #tpu.memory_space<vmem>>, vector<1x8x8xf32>
      %220 = vector.shape_cast %219 : vector<1x8x8xf32> to vector<8x8xf32>
      %221 = vector.shape_cast %218 : vector<8x8xf32> to vector<1x8x8xf32>
      tpu.vector_store %arg5[%c0_156, %c0_157, %c24_158], %221 {strides = array<i32>} : memref<1x8x32xf32, #tpu.memory_space<vmem>>, vector<1x8x8xf32>,
    } else {
    }
    return
  }
  func.func @transform_0(%arg0: i32, %arg1: i32) -> (i32, i32, i32) {
    %c0_i32 = arith.constant 0 : i32
    %c0_i32_0 = arith.constant 0 : i32
    %c0_i32_1 = arith.constant 0 : i32
    return %arg0, %c0_i32, %c0_i32_0 : i32, i32, i32
  }
  func.func @transform_1(%arg0: i32, %arg1: i32) -> (i32, i32, i32) {
    %c0_i32 = arith.constant 0 : i32
    %c0_i32_0 = arith.constant 0 : i32
    return %arg0, %arg1, %c0_i32 : i32, i32, i32
  }
  func.func @transform_2(%arg0: i32, %arg1: i32) -> (i32, i32, i32) {
    %c0_i32 = arith.constant 0 : i32
    %c0_i32_0 = arith.constant 0 : i32
    return %arg0, %arg1, %c0_i32 : i32, i32, i32
  }
  func.func @transform_3(%arg0: i32, %arg1: i32) -> (i32, i32, i32) {
    %c0_i32 = arith.constant 0 : i32
    %c0_i32_0 = arith.constant 0 : i32
    %c0_i32_1 = arith.constant 0 : i32
    return %arg0, %c0_i32, %c0_i32_0 : i32, i32, i32
  }
}

module attributes {stable_mosaic.version = 11 : i64} {
  func.func @_ffn_add_ln_kernel(%arg0: i32, %arg1: i32, %arg2: memref<16x32xf32, #tpu.memory_space<vmem>>, %arg3: memref<32x64xbf16, #tpu.memory_space<vmem>>, %arg4: memref<1x64xf32, #tpu.memory_space<vmem>>, %arg5: memref<64x32xbf16, #tpu.memory_space<vmem>>, %arg6: memref<1x32xf32, #tpu.memory_space<vmem>>, %arg7: memref<1x32xf32, #tpu.memory_space<vmem>>, %arg8: memref<1x32xf32, #tpu.memory_space<vmem>>, %arg9: memref<16x32xf32, #tpu.memory_space<vmem>>, %arg10: memref<16x32xf32, #tpu.memory_space<vmem>>) attributes {dimension_semantics = [#tpu.dimension_semantics<parallel>, #tpu.dimension_semantics<arbitrary>], iteration_bounds = array<i64: 1, 1>, scalar_prefetch = 0 : i64, scratch_operands = 1 : i64, tpu.core_type = #tpu.core_type<tc>, window_params = [{transform_indices = @transform_0, window_bounds = array<i64: 16, 32>}, {transform_indices = @transform_1, window_bounds = array<i64: 32, 64>}, {transform_indices = @transform_2, window_bounds = array<i64: 1, 64>}, {transform_indices = @transform_3, window_bounds = array<i64: 64, 32>}, {pipeline_mode = #tpu.pipeline_mode<synchronous>, transform_indices = @transform_4, window_bounds = array<i64: 1, 32>}, {pipeline_mode = #tpu.pipeline_mode<synchronous>, transform_indices = @transform_5, window_bounds = array<i64: 1, 32>}, {pipeline_mode = #tpu.pipeline_mode<synchronous>, transform_indices = @transform_6, window_bounds = array<i64: 1, 32>}, {transform_indices = @transform_7, window_bounds = array<i64: 16, 32>}]} {
    %c0_i32 = arith.constant 0 : i32
    %0 = arith.cmpi eq, %arg1, %c0_i32 : i32
    %1 = arith.extui %0 : i1 to i32
    %c0_i32_0 = arith.constant 0 : i32
    %2 = arith.cmpi ne, %1, %c0_i32_0 : i32
    scf.if %2 {
      %cst_16 = arith.constant 0.000000e+00 : f32
      %21 = vector.broadcast %cst_16 : f32 to vector<16x32xf32>
      %c0_17 = arith.constant 0 : index
      %c0_18 = arith.constant 0 : index
      %22 = vector.load %arg10[%c0_17, %c0_18] : memref<16x32xf32, #tpu.memory_space<vmem>>, vector<16x32xf32>
      tpu.vector_store %arg10[%c0_17, %c0_18], %21 {strides = array<i32>} : memref<16x32xf32, #tpu.memory_space<vmem>>, vector<16x32xf32>,
    } else {
    }
    %c0 = arith.constant 0 : index
    %c0_1 = arith.constant 0 : index
    %3 = vector.load %arg2[%c0, %c0_1] : memref<16x32xf32, #tpu.memory_space<vmem>>, vector<16x32xf32>
    %4 = arith.truncf %3 : vector<16x32xf32> to vector<16x32xbf16>
    %c0_2 = arith.constant 0 : index
    %c0_3 = arith.constant 0 : index
    %5 = vector.load %arg3[%c0_2, %c0_3] : memref<32x64xbf16, #tpu.memory_space<vmem>>, vector<32x64xbf16>
    %cst = arith.constant dense<0.000000e+00> : vector<16x64xf32>
    %6 = tpu.matmul %4, %5, %cst {dimension_numbers = #tpu.dot_dimension_numbers<[1], [0], [0], [1], [0, 0, 1, 1], [], []>} : vector<16x32xbf16>, vector<32x64xbf16>, vector<16x64xf32> -> vector<16x64xf32>
    %c0_4 = arith.constant 0 : index
    %c0_5 = arith.constant 0 : index
    %7 = vector.load %arg4[%c0_4, %c0_5] : memref<1x64xf32, #tpu.memory_space<vmem>>, vector<1x64xf32>
    %8 = vector.broadcast %7 : vector<1x64xf32> to vector<16x64xf32>
    %9 = arith.addf %6, %8 : vector<16x64xf32>
    %cst_6 = arith.constant 0.000000e+00 : f32
    %10 = vector.broadcast %cst_6 : f32 to vector<16x64xf32>
    %11 = arith.maximumf %9, %10 : vector<16x64xf32>
    %c0_7 = arith.constant 0 : index
    %c0_8 = arith.constant 0 : index
    %12 = vector.load %arg10[%c0_7, %c0_8] : memref<16x32xf32, #tpu.memory_space<vmem>>, vector<16x32xf32>
    %13 = arith.truncf %11 : vector<16x64xf32> to vector<16x64xbf16>
    %c0_9 = arith.constant 0 : index
    %c0_10 = arith.constant 0 : index
    %14 = vector.load %arg5[%c0_9, %c0_10] : memref<64x32xbf16, #tpu.memory_space<vmem>>, vector<64x32xbf16>
    %cst_11 = arith.constant dense<0.000000e+00> : vector<16x32xf32>
    %15 = tpu.matmul %13, %14, %cst_11 {dimension_numbers = #tpu.dot_dimension_numbers<[1], [0], [0], [1], [0, 0, 1, 1], [], []>} : vector<16x64xbf16>, vector<64x32xbf16>, vector<16x32xf32> -> vector<16x32xf32>
    %16 = arith.addf %12, %15 : vector<16x32xf32>
    %c0_12 = arith.constant 0 : index
    %c0_13 = arith.constant 0 : index
    %17 = vector.load %arg10[%c0_12, %c0_13] : memref<16x32xf32, #tpu.memory_space<vmem>>, vector<16x32xf32>
    tpu.vector_store %arg10[%c0_12, %c0_13], %16 {strides = array<i32>} : memref<16x32xf32, #tpu.memory_space<vmem>>, vector<16x32xf32>,
    %c0_i32_14 = arith.constant 0 : i32
    %18 = arith.cmpi eq, %arg1, %c0_i32_14 : i32
    %19 = arith.extui %18 : i1 to i32
    %c0_i32_15 = arith.constant 0 : i32
    %20 = arith.cmpi ne, %19, %c0_i32_15 : i32
    scf.if %20 {
      %c0_16 = arith.constant 0 : index
      %c0_17 = arith.constant 0 : index
      %21 = vector.load %arg10[%c0_16, %c0_17] : memref<16x32xf32, #tpu.memory_space<vmem>>, vector<16x32xf32>
      %c0_18 = arith.constant 0 : index
      %c0_19 = arith.constant 0 : index
      %22 = vector.load %arg6[%c0_18, %c0_19] : memref<1x32xf32, #tpu.memory_space<vmem>>, vector<1x32xf32>
      %23 = vector.broadcast %22 : vector<1x32xf32> to vector<16x32xf32>
      %24 = arith.addf %21, %23 : vector<16x32xf32>
      %c0_20 = arith.constant 0 : index
      %c0_21 = arith.constant 0 : index
      %25 = vector.load %arg2[%c0_20, %c0_21] : memref<16x32xf32, #tpu.memory_space<vmem>>, vector<16x32xf32>
      %26 = arith.addf %24, %25 : vector<16x32xf32>
      %cst_22 = arith.constant dense<0.000000e+00> : vector<16xf32>
      %27 = vector.multi_reduction <add>, %26, %cst_22 [1] : vector<16x32xf32> to vector<16xf32>
      %28 = vector.shape_cast %27 : vector<16xf32> to vector<16x1xf32>
      %cst_23 = arith.constant 3.200000e+01 : f32
      %29 = vector.broadcast %cst_23 : f32 to vector<16x1xf32>
      %30 = arith.divf %28, %29 : vector<16x1xf32>
      %31 = vector.broadcast %30 : vector<16x1xf32> to vector<16x32xf32>
      %32 = arith.subf %26, %31 : vector<16x32xf32>
      %33 = arith.mulf %32, %32 : vector<16x32xf32>
      %cst_24 = arith.constant dense<0.000000e+00> : vector<16xf32>
      %34 = vector.multi_reduction <add>, %33, %cst_24 [1] : vector<16x32xf32> to vector<16xf32>
      %35 = vector.shape_cast %34 : vector<16xf32> to vector<16x1xf32>
      %cst_25 = arith.constant 3.200000e+01 : f32
      %36 = vector.broadcast %cst_25 : f32 to vector<16x1xf32>
      %37 = arith.divf %35, %36 : vector<16x1xf32>
      %cst_26 = arith.constant 9.99999974E-6 : f32
      %38 = vector.broadcast %cst_26 : f32 to vector<16x1xf32>
      %39 = arith.addf %37, %38 : vector<16x1xf32>
      %40 = math.rsqrt %39 : vector<16x1xf32>
      %41 = vector.broadcast %40 : vector<16x1xf32> to vector<16x32xf32>
      %42 = arith.mulf %32, %41 : vector<16x32xf32>
      %c0_27 = arith.constant 0 : index
      %c0_28 = arith.constant 0 : index
      %43 = vector.load %arg7[%c0_27, %c0_28] : memref<1x32xf32, #tpu.memory_space<vmem>>, vector<1x32xf32>
      %44 = vector.broadcast %43 : vector<1x32xf32> to vector<16x32xf32>
      %45 = arith.mulf %42, %44 : vector<16x32xf32>
      %c0_29 = arith.constant 0 : index
      %c0_30 = arith.constant 0 : index
      %46 = vector.load %arg8[%c0_29, %c0_30] : memref<1x32xf32, #tpu.memory_space<vmem>>, vector<1x32xf32>
      %47 = vector.broadcast %46 : vector<1x32xf32> to vector<16x32xf32>
      %48 = arith.addf %45, %47 : vector<16x32xf32>
      %c0_31 = arith.constant 0 : index
      %c0_32 = arith.constant 0 : index
      %49 = vector.load %arg9[%c0_31, %c0_32] : memref<16x32xf32, #tpu.memory_space<vmem>>, vector<16x32xf32>
      tpu.vector_store %arg9[%c0_31, %c0_32], %48 {strides = array<i32>} : memref<16x32xf32, #tpu.memory_space<vmem>>, vector<16x32xf32>,
    } else {
    }
    return
  }
  func.func @transform_0(%arg0: i32, %arg1: i32) -> (i32, i32) {
    %c0_i32 = arith.constant 0 : i32
    %c0_i32_0 = arith.constant 0 : i32
    return %arg0, %c0_i32 : i32, i32
  }
  func.func @transform_1(%arg0: i32, %arg1: i32) -> (i32, i32) {
    %c0_i32 = arith.constant 0 : i32
    %c0_i32_0 = arith.constant 0 : i32
    return %c0_i32, %arg1 : i32, i32
  }
  func.func @transform_2(%arg0: i32, %arg1: i32) -> (i32, i32) {
    %c0_i32 = arith.constant 0 : i32
    %c0_i32_0 = arith.constant 0 : i32
    return %c0_i32, %arg1 : i32, i32
  }
  func.func @transform_3(%arg0: i32, %arg1: i32) -> (i32, i32) {
    %c0_i32 = arith.constant 0 : i32
    %c0_i32_0 = arith.constant 0 : i32
    return %arg1, %c0_i32 : i32, i32
  }
  func.func @transform_4(%arg0: i32, %arg1: i32) -> (i32, i32) {
    %c0_i32 = arith.constant 0 : i32
    %c0_i32_0 = arith.constant 0 : i32
    %c0_i32_1 = arith.constant 0 : i32
    return %c0_i32, %c0_i32_0 : i32, i32
  }
  func.func @transform_5(%arg0: i32, %arg1: i32) -> (i32, i32) {
    %c0_i32 = arith.constant 0 : i32
    %c0_i32_0 = arith.constant 0 : i32
    %c0_i32_1 = arith.constant 0 : i32
    return %c0_i32, %c0_i32_0 : i32, i32
  }
  func.func @transform_6(%arg0: i32, %arg1: i32) -> (i32, i32) {
    %c0_i32 = arith.constant 0 : i32
    %c0_i32_0 = arith.constant 0 : i32
    %c0_i32_1 = arith.constant 0 : i32
    return %c0_i32, %c0_i32_0 : i32, i32
  }
  func.func @transform_7(%arg0: i32, %arg1: i32) -> (i32, i32) {
    %c0_i32 = arith.constant 0 : i32
    %c0_i32_0 = arith.constant 0 : i32
    return %arg0, %c0_i32 : i32, i32
  }
}

module attributes {stable_mosaic.version = 11 : i64} {
  func.func @_ffn_add_ln_kernel(%arg0: i32, %arg1: i32, %arg2: memref<16x32xf32, #tpu.memory_space<vmem>>, %arg3: memref<32x64xbf16, #tpu.memory_space<vmem>>, %arg4: memref<1x64xf32, #tpu.memory_space<vmem>>, %arg5: memref<64x32xbf16, #tpu.memory_space<vmem>>, %arg6: memref<1x32xf32, #tpu.memory_space<vmem>>, %arg7: memref<1x32xf32, #tpu.memory_space<vmem>>, %arg8: memref<1x32xf32, #tpu.memory_space<vmem>>, %arg9: memref<16x32xf32, #tpu.memory_space<vmem>>, %arg10: memref<16x32xf32, #tpu.memory_space<vmem>>) attributes {dimension_semantics = [#tpu.dimension_semantics<parallel>, #tpu.dimension_semantics<arbitrary>], iteration_bounds = array<i64: 1, 1>, scalar_prefetch = 0 : i64, scratch_operands = 1 : i64, tpu.core_type = #tpu.core_type<tc>, window_params = [{transform_indices = @transform_0, window_bounds = array<i64: 16, 32>}, {transform_indices = @transform_1, window_bounds = array<i64: 32, 64>}, {transform_indices = @transform_2, window_bounds = array<i64: 1, 64>}, {transform_indices = @transform_3, window_bounds = array<i64: 64, 32>}, {pipeline_mode = #tpu.pipeline_mode<synchronous>, transform_indices = @transform_4, window_bounds = array<i64: 1, 32>}, {pipeline_mode = #tpu.pipeline_mode<synchronous>, transform_indices = @transform_5, window_bounds = array<i64: 1, 32>}, {pipeline_mode = #tpu.pipeline_mode<synchronous>, transform_indices = @transform_6, window_bounds = array<i64: 1, 32>}, {transform_indices = @transform_7, window_bounds = array<i64: 16, 32>}]} {
    %c0_i32 = arith.constant 0 : i32
    %0 = arith.cmpi eq, %arg1, %c0_i32 : i32
    %1 = arith.extui %0 : i1 to i32
    %c0_i32_0 = arith.constant 0 : i32
    %2 = arith.cmpi ne, %1, %c0_i32_0 : i32
    scf.if %2 {
      %cst_16 = arith.constant 0.000000e+00 : f32
      %21 = vector.broadcast %cst_16 : f32 to vector<16x32xf32>
      %c0_17 = arith.constant 0 : index
      %c0_18 = arith.constant 0 : index
      %22 = vector.load %arg10[%c0_17, %c0_18] : memref<16x32xf32, #tpu.memory_space<vmem>>, vector<16x32xf32>
      tpu.vector_store %arg10[%c0_17, %c0_18], %21 {strides = array<i32>} : memref<16x32xf32, #tpu.memory_space<vmem>>, vector<16x32xf32>,
    } else {
    }
    %c0 = arith.constant 0 : index
    %c0_1 = arith.constant 0 : index
    %3 = vector.load %arg2[%c0, %c0_1] : memref<16x32xf32, #tpu.memory_space<vmem>>, vector<16x32xf32>
    %4 = arith.truncf %3 : vector<16x32xf32> to vector<16x32xbf16>
    %c0_2 = arith.constant 0 : index
    %c0_3 = arith.constant 0 : index
    %5 = vector.load %arg3[%c0_2, %c0_3] : memref<32x64xbf16, #tpu.memory_space<vmem>>, vector<32x64xbf16>
    %cst = arith.constant dense<0.000000e+00> : vector<16x64xf32>
    %6 = tpu.matmul %4, %5, %cst {dimension_numbers = #tpu.dot_dimension_numbers<[1], [0], [0], [1], [0, 0, 1, 1], [], []>} : vector<16x32xbf16>, vector<32x64xbf16>, vector<16x64xf32> -> vector<16x64xf32>
    %c0_4 = arith.constant 0 : index
    %c0_5 = arith.constant 0 : index
    %7 = vector.load %arg4[%c0_4, %c0_5] : memref<1x64xf32, #tpu.memory_space<vmem>>, vector<1x64xf32>
    %8 = vector.broadcast %7 : vector<1x64xf32> to vector<16x64xf32>
    %9 = arith.addf %6, %8 : vector<16x64xf32>
    %cst_6 = arith.constant 0.000000e+00 : f32
    %10 = vector.broadcast %cst_6 : f32 to vector<16x64xf32>
    %11 = arith.maximumf %9, %10 : vector<16x64xf32>
    %c0_7 = arith.constant 0 : index
    %c0_8 = arith.constant 0 : index
    %12 = vector.load %arg10[%c0_7, %c0_8] : memref<16x32xf32, #tpu.memory_space<vmem>>, vector<16x32xf32>
    %13 = arith.truncf %11 : vector<16x64xf32> to vector<16x64xbf16>
    %c0_9 = arith.constant 0 : index
    %c0_10 = arith.constant 0 : index
    %14 = vector.load %arg5[%c0_9, %c0_10] : memref<64x32xbf16, #tpu.memory_space<vmem>>, vector<64x32xbf16>
    %cst_11 = arith.constant dense<0.000000e+00> : vector<16x32xf32>
    %15 = tpu.matmul %13, %14, %cst_11 {dimension_numbers = #tpu.dot_dimension_numbers<[1], [0], [0], [1], [0, 0, 1, 1], [], []>} : vector<16x64xbf16>, vector<64x32xbf16>, vector<16x32xf32> -> vector<16x32xf32>
    %16 = arith.addf %12, %15 : vector<16x32xf32>
    %c0_12 = arith.constant 0 : index
    %c0_13 = arith.constant 0 : index
    %17 = vector.load %arg10[%c0_12, %c0_13] : memref<16x32xf32, #tpu.memory_space<vmem>>, vector<16x32xf32>
    tpu.vector_store %arg10[%c0_12, %c0_13], %16 {strides = array<i32>} : memref<16x32xf32, #tpu.memory_space<vmem>>, vector<16x32xf32>,
    %c0_i32_14 = arith.constant 0 : i32
    %18 = arith.cmpi eq, %arg1, %c0_i32_14 : i32
    %19 = arith.extui %18 : i1 to i32
    %c0_i32_15 = arith.constant 0 : i32
    %20 = arith.cmpi ne, %19, %c0_i32_15 : i32
    scf.if %20 {
      %c0_16 = arith.constant 0 : index
      %c0_17 = arith.constant 0 : index
      %21 = vector.load %arg10[%c0_16, %c0_17] : memref<16x32xf32, #tpu.memory_space<vmem>>, vector<16x32xf32>
      %c0_18 = arith.constant 0 : index
      %c0_19 = arith.constant 0 : index
      %22 = vector.load %arg6[%c0_18, %c0_19] : memref<1x32xf32, #tpu.memory_space<vmem>>, vector<1x32xf32>
      %23 = vector.broadcast %22 : vector<1x32xf32> to vector<16x32xf32>
      %24 = arith.addf %21, %23 : vector<16x32xf32>
      %c0_20 = arith.constant 0 : index
      %c0_21 = arith.constant 0 : index
      %25 = vector.load %arg2[%c0_20, %c0_21] : memref<16x32xf32, #tpu.memory_space<vmem>>, vector<16x32xf32>
      %26 = arith.addf %24, %25 : vector<16x32xf32>
      %cst_22 = arith.constant dense<0.000000e+00> : vector<16xf32>
      %27 = vector.multi_reduction <add>, %26, %cst_22 [1] : vector<16x32xf32> to vector<16xf32>
      %28 = vector.shape_cast %27 : vector<16xf32> to vector<16x1xf32>
      %cst_23 = arith.constant 3.200000e+01 : f32
      %29 = vector.broadcast %cst_23 : f32 to vector<16x1xf32>
      %30 = arith.divf %28, %29 : vector<16x1xf32>
      %31 = vector.broadcast %30 : vector<16x1xf32> to vector<16x32xf32>
      %32 = arith.subf %26, %31 : vector<16x32xf32>
      %33 = arith.mulf %32, %32 : vector<16x32xf32>
      %cst_24 = arith.constant dense<0.000000e+00> : vector<16xf32>
      %34 = vector.multi_reduction <add>, %33, %cst_24 [1] : vector<16x32xf32> to vector<16xf32>
      %35 = vector.shape_cast %34 : vector<16xf32> to vector<16x1xf32>
      %cst_25 = arith.constant 3.200000e+01 : f32
      %36 = vector.broadcast %cst_25 : f32 to vector<16x1xf32>
      %37 = arith.divf %35, %36 : vector<16x1xf32>
      %cst_26 = arith.constant 9.99999974E-6 : f32
      %38 = vector.broadcast %cst_26 : f32 to vector<16x1xf32>
      %39 = arith.addf %37, %38 : vector<16x1xf32>
      %40 = math.rsqrt %39 : vector<16x1xf32>
      %41 = vector.broadcast %40 : vector<16x1xf32> to vector<16x32xf32>
      %42 = arith.mulf %32, %41 : vector<16x32xf32>
      %c0_27 = arith.constant 0 : index
      %c0_28 = arith.constant 0 : index
      %43 = vector.load %arg7[%c0_27, %c0_28] : memref<1x32xf32, #tpu.memory_space<vmem>>, vector<1x32xf32>
      %44 = vector.broadcast %43 : vector<1x32xf32> to vector<16x32xf32>
      %45 = arith.mulf %42, %44 : vector<16x32xf32>
      %c0_29 = arith.constant 0 : index
      %c0_30 = arith.constant 0 : index
      %46 = vector.load %arg8[%c0_29, %c0_30] : memref<1x32xf32, #tpu.memory_space<vmem>>, vector<1x32xf32>
      %47 = vector.broadcast %46 : vector<1x32xf32> to vector<16x32xf32>
      %48 = arith.addf %45, %47 : vector<16x32xf32>
      %c0_31 = arith.constant 0 : index
      %c0_32 = arith.constant 0 : index
      %49 = vector.load %arg9[%c0_31, %c0_32] : memref<16x32xf32, #tpu.memory_space<vmem>>, vector<16x32xf32>
      tpu.vector_store %arg9[%c0_31, %c0_32], %48 {strides = array<i32>} : memref<16x32xf32, #tpu.memory_space<vmem>>, vector<16x32xf32>,
    } else {
    }
    return
  }
  func.func @transform_0(%arg0: i32, %arg1: i32) -> (i32, i32) {
    %c0_i32 = arith.constant 0 : i32
    %c0_i32_0 = arith.constant 0 : i32
    return %arg0, %c0_i32 : i32, i32
  }
  func.func @transform_1(%arg0: i32, %arg1: i32) -> (i32, i32) {
    %c0_i32 = arith.constant 0 : i32
    %c0_i32_0 = arith.constant 0 : i32
    return %c0_i32, %arg1 : i32, i32
  }
  func.func @transform_2(%arg0: i32, %arg1: i32) -> (i32, i32) {
    %c0_i32 = arith.constant 0 : i32
    %c0_i32_0 = arith.constant 0 : i32
    return %c0_i32, %arg1 : i32, i32
  }
  func.func @transform_3(%arg0: i32, %arg1: i32) -> (i32, i32) {
    %c0_i32 = arith.constant 0 : i32
    %c0_i32_0 = arith.constant 0 : i32
    return %arg1, %c0_i32 : i32, i32
  }
  func.func @transform_4(%arg0: i32, %arg1: i32) -> (i32, i32) {
    %c0_i32 = arith.constant 0 : i32
    %c0_i32_0 = arith.constant 0 : i32
    %c0_i32_1 = arith.constant 0 : i32
    return %c0_i32, %c0_i32_0 : i32, i32
  }
  func.func @transform_5(%arg0: i32, %arg1: i32) -> (i32, i32) {
    %c0_i32 = arith.constant 0 : i32
    %c0_i32_0 = arith.constant 0 : i32
    %c0_i32_1 = arith.constant 0 : i32
    return %c0_i32, %c0_i32_0 : i32, i32
  }
  func.func @transform_6(%arg0: i32, %arg1: i32) -> (i32, i32) {
    %c0_i32 = arith.constant 0 : i32
    %c0_i32_0 = arith.constant 0 : i32
    %c0_i32_1 = arith.constant 0 : i32
    return %c0_i32, %c0_i32_0 : i32, i32
  }
  func.func @transform_7(%arg0: i32, %arg1: i32) -> (i32, i32) {
    %c0_i32 = arith.constant 0 : i32
    %c0_i32_0 = arith.constant 0 : i32
    return %arg0, %c0_i32 : i32, i32
  }
}

</mosaic_0001>

<llo_original>
// kernel: decoder_forward.18
$region0: #{decoder_forward.18}
  #allocation0 [shape = 'u32[]', space=smem, size = 0x4, offset = 0x4, fixed_abs, tag = 'smem constant byte address 0x4 - core index']
  #allocation1 [shape = 'u32[72,128]{1,0:T(1,128)}', space=vmem, size = 0x9000, scoped, tag = 'internal scratch']
  %s0 = inlined_call_operand.vmem [shape: f32[16,32], index: 0, kind: input, shape index: {}]
  %s1 = inlined_call_operand.vmem [shape: bf16[32,32], index: 1, kind: input, shape index: {}]
  %s2 = inlined_call_operand.vmem [shape: f32[1,32], index: 2, kind: input, shape index: {}]
  %s3 = inlined_call_operand.vmem [shape: f32[16,32], index: 3, kind: input, shape index: {}]
  %s4 = inlined_call_operand.vmem [shape: f32[1,32], index: 4, kind: input, shape index: {}]
  %s5 = inlined_call_operand.vmem [shape: f32[1,32], index: 5, kind: input, shape index: {}]
  %s6 = inlined_call_operand.vmem [shape: f32[16,32], index: 6, kind: output, shape index: {}]
  %s7 = sld [smem:[#allocation0]]
  $region34: #{decoder_forward.18} parent=0
    _
  %s9 = ssub.s32 1, %s7
  %s10 = scalar_select 0, %s9, %s7
  // Predicated region
  $region2: #{decoder_forward.18} parent=0 // pred_check
    _
  $region3: #{decoder_forward.18} parent=0 // pred_check_branch
    %12 = sbr.rel (0) target = $region5
  $region4: #{decoder_forward.18} parent=0 // pred_region
    _
  $region5: #{decoder_forward.18} parent=0 // pred_fallthru
    _
  // Predicated region
  $region6: #{decoder_forward.18} parent=0 // pred_check
    _
  $region7: #{decoder_forward.18} parent=0 // pred_check_branch
    %14 = sbr.rel (0) target = $region9
  $region8: #{decoder_forward.18} parent=0 // pred_region
    _
  $region9: #{decoder_forward.18} parent=0 // pred_fallthru
    _
  // Predicated region
  $region10: #{decoder_forward.18} parent=0 // pred_check
    _
  $region11: #{decoder_forward.18} parent=0 // pred_check_branch
    %16 = sbr.rel (0) target = $region13
  $region12: #{decoder_forward.18} parent=0 // pred_region
    _
  $region13: #{decoder_forward.18} parent=0 // pred_fallthru
    _
  // Predicated region
  $region14: #{decoder_forward.18} parent=0 // pred_check
    _
  $region15: #{decoder_forward.18} parent=0 // pred_check_branch
    %18 = sbr.rel (0) target = $region17
  $region16: #{decoder_forward.18} parent=0 // pred_region
    _
  $region17: #{decoder_forward.18} parent=0 // pred_fallthru
    _
  // Predicated region
  $region18: #{decoder_forward.18} parent=0 // pred_check
    _
  $region19: #{decoder_forward.18} parent=0 // pred_check_branch
    %20 = sbr.rel (0) target = $region21
  $region20: #{decoder_forward.18} parent=0 // pred_region
    _
  $region21: #{decoder_forward.18} parent=0 // pred_fallthru
    _
  // Predicated region
  $region22: #{decoder_forward.18} parent=0 // pred_check
    _
  $region23: #{decoder_forward.18} parent=0 // pred_check_branch
    %22 = sbr.rel (0) target = $region25
  $region24: #{decoder_forward.18} parent=0 // pred_region
    _
  $region25: #{decoder_forward.18} parent=0 // pred_fallthru
    _
  %v24 = vld [vmem:[%s0] sm:$0xff]
  %v25 = vld [vmem:[%s0 + $0x8] sm:$0xff]
  %v26 = vpack.c.bf16 %v25, %v24
  %v27 = vld [vmem:[%s1] sm:$0xf]
  %v28 = vld [vmem:[%s1 + $0x4] sm:$0xf]
  %v29 = vld [vmem:[%s1 + $0x8] sm:$0xf]
  %v30 = vld [vmem:[%s1 + $0xc] sm:$0xf]
  %v31 = vld [vmem:[%s2] sm:$0x1]
  %v33 = vperm.slane %v31, 0
  %v39 = vunpack.c.l.b16 %v27
  %v40 = vunpack.c.l.b16 %v28
  %v41 = vunpack.c.l.b16 %v29
  %v42 = vunpack.c.l.b16 %v30
  %v43 = vpack.c.b16 %v40, %v39
  %v44 = vpack.c.b16 %v42, %v41
  %vm47 = vcmask 261120
  %v49 = vsel %vm47, %v26, 0
  %51 = vmatpush.bf16.msra.mxu0 0
  %52 = vmatpush.bf16.msra.mxu0 0
  %53 = vmatpush.bf16.msra.mxu0 0
  %54 = vmatpush.bf16.msra.mxu0 0
  %55 = vmatpush.bf16.msra.mxu0 0
  %56 = vmatpush.bf16.msra.mxu0 0
  %57 = vmatpush.bf16.msra.mxu0 %v44
  %58 = vmatpush.bf16.msra.mxu0 %v43
  %59 = vmatmul.bf16.gmra.mxu0 %v49
  %v60 = vpop.f32.mrf.mxu0
  %v61 = vadd.f32 %v33, %v60
  %v62 = vpop.f32.mrf.mxu0
  %v63 = vadd.f32 %v33, %v62
  %64 = vdwg.mxu0
  %v65 = vld [vmem:[%s3] sm:$0xff]
  %v66 = vld [vmem:[%s3 + $0x8] sm:$0xff]
  %v67 = vadd.f32 %v61, %v65
  %v68 = vadd.f32 %v63, %v66
  %v69 = vsel %vm47, %v67, 0.0
  %70 = vadd.xlane.f32.xlu0 %v69
  %v71 = vpop.xlane.xlu0 %70
  %v72 = vsel %vm47, %v68, 0.0
  %73 = vadd.xlane.f32.xlu0 %v72
  %v74 = vpop.xlane.xlu0 %73
  %v75 = vrcp.pop 32.0
  %v76 = vmul.f32 32.0, %v75
  %v77 = vsub.f32 1.0, %v76
  %v78 = vmul.f32 %v75, %v77
  %v79 = vadd.f32 %v75, %v78
  %vm80 = vweird.f32 %v75
  %v81 = vsel %vm80, %v75, %v79
  %v82 = vmul.f32 %v71, %v81
  %v83 = vmul.f32 %v74, %v81
  %v84 = vsub.f32 %v67, %v82
  %v85 = vsub.f32 %v68, %v83
  %v86 = vmul.f32 %v84, %v84
  %v87 = vmul.f32 %v85, %v85
  %v88 = vsel %vm47, %v86, 0.0
  %89 = vadd.xlane.f32.xlu0 %v88
  %v90 = vpop.xlane.xlu0 %89
  %v91 = vsel %vm47, %v87, 0.0
  %92 = vadd.xlane.f32.xlu0 %v91
  %v93 = vpop.xlane.xlu0 %92
  %v94 = vmul.f32 %v90, %v81
  %v95 = vmul.f32 %v93, %v81
  %v96 = vadd.f32 %v94, 1e-05
  %v97 = vadd.f32 %v95, 1e-05
  %v98 = vrsqrt.pop %v96
  %v99 = vmul.f32 %v98, %v96
  %v100 = vmul.f32 %v99, %v98
  %v101 = vmul.f32 0.5, %v100
  %v102 = vsub.f32 1.5, %v101
  %v103 = vmul.f32 %v98, %v102
  %vm104 = vweird.f32 %v96
  %vm105 = vweird.f32 %v98
  %vm106 = vmor %vm104, %vm105
  %v107 = vsel %vm106, %v98, %v103
  %v108 = vrsqrt.pop %v97
  %v109 = vmul.f32 %v108, %v97
  %v110 = vmul.f32 %v109, %v108
  %v111 = vmul.f32 0.5, %v110
  %v112 = vsub.f32 1.5, %v111
  %v113 = vmul.f32 %v108, %v112
  %vm114 = vweird.f32 %v97
  %vm115 = vweird.f32 %v108
  %vm116 = vmor %vm114, %vm115
  %v117 = vsel %vm116, %v108, %v113
  %v118 = vmul.f32 %v84, %v107
  %v119 = vmul.f32 %v85, %v117
  %v120 = vld [vmem:[%s4] sm:$0x1]
  %v122 = vperm.slane %v120, 0
  %v124 = vmul.f32 %v118, %v122
  %v125 = vmul.f32 %v119, %v122
  %v126 = vld [vmem:[%s5] sm:$0x1]
  %v128 = vperm.slane %v126, 0
  %v130 = vadd.f32 %v124, %v128
  %v131 = vadd.f32 %v125, %v128
  %132 = vst.msk [vmem:[%s6] sm:$0xff] %vm47, %v130
  %133 = vst.msk [vmem:[%s6 + $0x8] sm:$0xff] %vm47, %v131
  // Predicated region
  $region26: #{decoder_forward.18} parent=0 // pred_check
    _
  $region27: #{decoder_forward.18} parent=0 // pred_check_branch
    %135 = sbr.rel (0) target = $region29
  $region28: #{decoder_forward.18} parent=0 // pred_region
    _
  $region29: #{decoder_forward.18} parent=0 // pred_fallthru
    _
  // Predicated region
  $region30: #{decoder_forward.18} parent=0 // pred_check
    _
  $region31: #{decoder_forward.18} parent=0 // pred_check_branch
    %137 = sbr.rel (0) target = $region33
  $region32: #{decoder_forward.18} parent=0 // pred_region
    _
  $region33: #{decoder_forward.18} parent=0 // pred_fallthru
    _

// kernel: decoder_forward.16
$region0: #{decoder_forward.16}
  #allocation0 [shape = 'u32[]', space=smem, size = 0x4, offset = 0x4, fixed_abs, tag = 'smem constant byte address 0x4 - core index']
  #allocation1 [shape = 'u32[72,128]{1,0:T(1,128)}', space=vmem, size = 0x9000, scoped, tag = 'internal scratch']
  %s0 = inlined_call_operand.vmem [shape: f32[16,32], index: 0, kind: input, shape index: {}]
  %s1 = inlined_call_operand.vmem [shape: bf16[32,96], index: 1, kind: input, shape index: {}]
  %s2 = inlined_call_operand.vmem [shape: f32[1,96], index: 2, kind: input, shape index: {}]
  %s3 = inlined_call_operand.vmem [shape: f32[16,96], index: 3, kind: output, shape index: {}]
  %s4 = sld [smem:[#allocation0]]
  $region22: #{decoder_forward.16} parent=0
    _
  %s6 = ssub.s32 1, %s4
  %s7 = scalar_select 0, %s6, %s4
  // Predicated region
  $region2: #{decoder_forward.16} parent=0 // pred_check
    _
  $region3: #{decoder_forward.16} parent=0 // pred_check_branch
    %9 = sbr.rel (0) target = $region5
  $region4: #{decoder_forward.16} parent=0 // pred_region
    _
  $region5: #{decoder_forward.16} parent=0 // pred_fallthru
    _
  // Predicated region
  $region6: #{decoder_forward.16} parent=0 // pred_check
    _
  $region7: #{decoder_forward.16} parent=0 // pred_check_branch
    %11 = sbr.rel (0) target = $region9
  $region8: #{decoder_forward.16} parent=0 // pred_region
    _
  $region9: #{decoder_forward.16} parent=0 // pred_fallthru
    _
  // Predicated region
  $region10: #{decoder_forward.16} parent=0 // pred_check
    _
  $region11: #{decoder_forward.16} parent=0 // pred_check_branch
    %13 = sbr.rel (0) target = $region13
  $region12: #{decoder_forward.16} parent=0 // pred_region
    _
  $region13: #{decoder_forward.16} parent=0 // pred_fallthru
    _
  %v15 = vld [vmem:[%s0] sm:$0xff]
  %v16 = vld [vmem:[%s0 + $0x8] sm:$0xff]
  %v17 = vpack.c.bf16 %v16, %v15
  %v18 = vld [vmem:[%s1] sm:$0xf]
  %v19 = vld [vmem:[%s1 + $0x4] sm:$0xf]
  %v20 = vld [vmem:[%s1 + $0x8] sm:$0xf]
  %v21 = vld [vmem:[%s1 + $0xc] sm:$0xf]
  %v22 = vld [vmem:[%s2] sm:$0x1]
  %v24 = vperm.slane %v22, 0
  %v30 = vunpack.c.l.b16 %v18
  %v31 = vunpack.c.l.b16 %v19
  %v32 = vunpack.c.l.b16 %v20
  %v33 = vunpack.c.l.b16 %v21
  %v34 = vpack.c.b16 %v31, %v30
  %v35 = vpack.c.b16 %v33, %v32
  %vm38 = vcmask 261120
  %v40 = vsel %vm38, %v17, 0
  %42 = vmatpush.bf16.msra.mxu0 0
  %43 = vmatpush.bf16.msra.mxu0 0
  %44 = vmatpush.bf16.msra.mxu0 0
  %45 = vmatpush.bf16.msra.mxu0 0
  %46 = vmatpush.bf16.msra.mxu0 0
  %47 = vmatpush.bf16.msra.mxu0 0
  %48 = vmatpush.bf16.msra.mxu0 %v35
  %49 = vmatpush.bf16.msra.mxu0 %v34
  %50 = vmatmul.bf16.gmra.mxu0 %v40
  %v51 = vpop.f32.mrf.mxu0
  %v52 = vadd.f32 %v24, %v51
  %v53 = vpop.f32.mrf.mxu0
  %v54 = vadd.f32 %v24, %v53
  %55 = vdwg.mxu0
  %vm56 = vcmask 785408
  %57 = vst.msk [vmem:[%s3] sm:$0xff] %vm56, %v52
  %58 = vst.msk [vmem:[%s3 + $0x8] sm:$0xff] %vm56, %v54
  // Predicated region
  $region14: #{decoder_forward.16} parent=0 // pred_check
    _
  $region15: #{decoder_forward.16} parent=0 // pred_check_branch
    %60 = sbr.rel (0) target = $region17
  $region16: #{decoder_forward.16} parent=0 // pred_region
    _
  $region17: #{decoder_forward.16} parent=0 // pred_fallthru
    _
  // Predicated region
  $region18: #{decoder_forward.16} parent=0 // pred_check
    _
  $region19: #{decoder_forward.16} parent=0 // pred_check_branch
    %62 = sbr.rel (0) target = $region21
  $region20: #{decoder_forward.16} parent=0 // pred_region
    _
  $region21: #{decoder_forward.16} parent=0 // pred_fallthru
    _

// kernel: decoder_forward.19
$region0: #{decoder_forward.19}
  #allocation0 [shape = 'u32[]', space=smem, size = 0x4, offset = 0x4, fixed_abs, tag = 'smem constant byte address 0x4 - core index']
  #allocation1 [shape = 'u32[72,128]{1,0:T(1,128)}', space=vmem, size = 0x9000, scoped, tag = 'internal scratch']
  %s0 = inlined_call_operand.vmem [shape: f32[16,32], index: 0, kind: input, shape index: {}]
  %s1 = inlined_call_operand.vmem [shape: bf16[32,32], index: 1, kind: input, shape index: {}]
  %s2 = inlined_call_operand.vmem [shape: f32[1,32], index: 2, kind: input, shape index: {}]
  %s3 = inlined_call_operand.vmem [shape: f32[16,32], index: 3, kind: output, shape index: {}]
  %s4 = sld [smem:[#allocation0]]
  $region22: #{decoder_forward.19} parent=0
    _
  %s6 = ssub.s32 1, %s4
  %s7 = scalar_select 0, %s6, %s4
  // Predicated region
  $region2: #{decoder_forward.19} parent=0 // pred_check
    _
  $region3: #{decoder_forward.19} parent=0 // pred_check_branch
    %9 = sbr.rel (0) target = $region5
  $region4: #{decoder_forward.19} parent=0 // pred_region
    _
  $region5: #{decoder_forward.19} parent=0 // pred_fallthru
    _
  // Predicated region
  $region6: #{decoder_forward.19} parent=0 // pred_check
    _
  $region7: #{decoder_forward.19} parent=0 // pred_check_branch
    %11 = sbr.rel (0) target = $region9
  $region8: #{decoder_forward.19} parent=0 // pred_region
    _
  $region9: #{decoder_forward.19} parent=0 // pred_fallthru
    _
  // Predicated region
  $region10: #{decoder_forward.19} parent=0 // pred_check
    _
  $region11: #{decoder_forward.19} parent=0 // pred_check_branch
    %13 = sbr.rel (0) target = $region13
  $region12: #{decoder_forward.19} parent=0 // pred_region
    _
  $region13: #{decoder_forward.19} parent=0 // pred_fallthru
    _
  %v15 = vld [vmem:[%s0] sm:$0xff]
  %v16 = vld [vmem:[%s0 + $0x8] sm:$0xff]
  %v17 = vpack.c.bf16 %v16, %v15
  %v18 = vld [vmem:[%s1] sm:$0xf]
  %v19 = vld [vmem:[%s1 + $0x4] sm:$0xf]
  %v20 = vld [vmem:[%s1 + $0x8] sm:$0xf]
  %v21 = vld [vmem:[%s1 + $0xc] sm:$0xf]
  %v22 = vld [vmem:[%s2] sm:$0x1]
  %v24 = vperm.slane %v22, 0
  %v30 = vunpack.c.l.b16 %v18
  %v31 = vunpack.c.l.b16 %v19
  %v32 = vunpack.c.l.b16 %v20
  %v33 = vunpack.c.l.b16 %v21
  %v34 = vpack.c.b16 %v31, %v30
  %v35 = vpack.c.b16 %v33, %v32
  %vm38 = vcmask 261120
  %v40 = vsel %vm38, %v17, 0
  %42 = vmatpush.bf16.msra.mxu0 0
  %43 = vmatpush.bf16.msra.mxu0 0
  %44 = vmatpush.bf16.msra.mxu0 0
  %45 = vmatpush.bf16.msra.mxu0 0
  %46 = vmatpush.bf16.msra.mxu0 0
  %47 = vmatpush.bf16.msra.mxu0 0
  %48 = vmatpush.bf16.msra.mxu0 %v35
  %49 = vmatpush.bf16.msra.mxu0 %v34
  %50 = vmatmul.bf16.gmra.mxu0 %v40
  %v51 = vpop.f32.mrf.mxu0
  %v52 = vadd.f32 %v24, %v51
  %v53 = vpop.f32.mrf.mxu0
  %v54 = vadd.f32 %v24, %v53
  %55 = vdwg.mxu0
  %56 = vst.msk [vmem:[%s3] sm:$0xff] %vm38, %v52
  %57 = vst.msk [vmem:[%s3 + $0x8] sm:$0xff] %vm38, %v54
  // Predicated region
  $region14: #{decoder_forward.19} parent=0 // pred_check
    _
  $region15: #{decoder_forward.19} parent=0 // pred_check_branch
    %59 = sbr.rel (0) target = $region17
  $region16: #{decoder_forward.19} parent=0 // pred_region
    _
  $region17: #{decoder_forward.19} parent=0 // pred_fallthru
    _
  // Predicated region
  $region18: #{decoder_forward.19} parent=0 // pred_check
    _
  $region19: #{decoder_forward.19} parent=0 // pred_check_branch
    %61 = sbr.rel (0) target = $region21
  $region20: #{decoder_forward.19} parent=0 // pred_region
    _
  $region21: #{decoder_forward.19} parent=0 // pred_fallthru
    _

// kernel: decoder_forward.17
$region0: #{decoder_forward.17}
  #allocation0 [shape = 'u32[]', space=smem, size = 0x4, offset = 0x4, fixed_abs, tag = 'smem constant byte address 0x4 - core index']
  #allocation1 [shape = 'u32[72,128]{1,0:T(1,128)}', space=vmem, size = 0x9000, scoped, tag = 'internal scratch']
  #allocation2 [shape = 'f32[4,8,1]{2,1,0:T(8,128)}', space=vmem, size = 0x4000, scoped, tag = 'scratch operand']
  #allocation3 [shape = 'f32[4,8,1]{2,1,0:T(8,128)}', space=vmem, size = 0x4000, scoped, tag = 'scratch operand']
  #allocation4 [shape = 'f32[4,8,8]{2,1,0:T(8,128)}', space=vmem, size = 0x4000, scoped, tag = 'scratch operand']
  %s0 = inlined_call_operand.vmem [shape: f32[2,8,32], index: 0, kind: input, shape index: {}]
  %s1 = inlined_call_operand.vmem [shape: f32[2,8,32], index: 1, kind: input, shape index: {}]
  %s2 = inlined_call_operand.vmem [shape: f32[2,8,32], index: 2, kind: input, shape index: {}]
  %s3 = inlined_call_operand.vmem [shape: bf16[1,1,8,8], index: 3, kind: input, shape index: {}]
  %s4 = inlined_call_operand.vmem [shape: f32[2,8,32], index: 4, kind: output, shape index: {}]
  %s5 = sld [smem:[#allocation0]]
  $region57: #{decoder_forward.17} parent=0
    _
  %s7 = ssub.s32 1, %s5
  %s8 = scalar_select 0, %s7, %s5
  loop: start=0, step=1, limit=4
  $region2: #{decoder_forward.17} parent=0 // loop_pre_header
    _
  $region3: #{decoder_forward.17} parent=0 // loop_header
    %s10 = sphi 0, %s14
    %p11 = scmp.ge.s32.totalorder %s10, 4
    %s17 = sphi 0, %s29
    %s18 = sphi 0, %s25
    %s19 = sphi 0, %s17
    %s20 = sphi 0, %s18
    %s21 = sphi 0, %s19
    %s22 = sphi 0, %s20
    %s32 = sphi 0, %s34
    %s35 = sphi 0, %s32
    %s36 = sphi 0, %s35
    %s52 = sphi 0, %s36
    %s60 = sphi 0, %s62
    %s63 = sphi 0, %s60
    %s64 = sphi 0, %s63
    %s80 = sphi 0, %s64
    %s88 = sphi 0, %s90
    %s91 = sphi 0, %s88
    %s92 = sphi 0, %s91
    %s108 = sphi 0, %s92
    %s114 = sphi 0, %s116
    %s117 = sphi 0, %s114
    %s118 = sphi 0, %s117
    %s134 = sphi 0, %s118
    %s140 = sphi 0, %s142
    %s143 = sphi 0, %s140
    %s144 = sphi 0, %s143
    %s160 = sphi 0, %s144
  $region4: #{decoder_forward.17} parent=0 // loop_header_branch
    %13 = sbr.rel (%p11) target = $region8
  $region5: #{decoder_forward.17} parent=0 // loop_body
    %s15 = ssub.s32 %s10, 1
    %s16 = ssub.s32 %s10, 2
    %s23 = sadd.s32 1, %s18
    %p24 = scmp.ge.s32.totalorder %s23, 1
    %s25 = scalar_select %p24, 0, %s23
    %s26 = sadd.s32 1, %s17
    %s27 = scalar_select %p24, %s26, %s17
    %p28 = scmp.ge.s32.totalorder %s27, 2
    %s29 = scalar_select %p28, 0, %s27
    %s30 = ssub.s32 %s17, %s29
    %p31 = scmp.eq.s32.totalorder %s30, 0
    %s33 = sadd.s32 %s32, 1
    %s34 = scalar_select %p31, %s32, %s33
    %p37 = pneg %p31
    %p38 = scmp.eq.s32.totalorder %s10, 1
    %p39 = por %p37, %p38
    %p40 = scmp.ne.s32.totalorder %s32, %s35
    %p41 = scmp.eq.s32.totalorder %s10, 0
    %p42 = por %p40, %p41
    %p43 = scmp.ne.s32.totalorder %s32, %s35
    %p44 = scmp.eq.s32.totalorder %s15, 1
    %p45 = por %p43, %p44
    %p46 = scmp.ne.s32.totalorder %s35, %s36
    %p47 = scmp.eq.s32.totalorder %s15, 0
    %p48 = por %p46, %p47
    %p49 = scmp.ne.s32.totalorder %s35, %s36
    %p50 = scmp.eq.s32.totalorder %s16, 1
    %p51 = por %p49, %p50
    %p53 = scmp.ne.s32.totalorder %s36, %s52
    %p54 = scmp.eq.s32.totalorder %s16, 0
    %p55 = por %p53, %p54
    %s56 = ssub.s32 %s17, %s29
    %s57 = ssub.s32 %s18, %s25
    %s58 = sor.u32 %s56, %s57
    %p59 = scmp.eq.s32.totalorder %s58, 0
    %s61 = sadd.s32 %s60, 1
    %s62 = scalar_select %p59, %s60, %s61
    %p65 = pneg %p59
    %p66 = scmp.eq.s32.totalorder %s10, 1
    %p67 = por %p65, %p66
    %p68 = scmp.ne.s32.totalorder %s60, %s63
    %p69 = scmp.eq.s32.totalorder %s10, 0
    %p70 = por %p68, %p69
    %p71 = scmp.ne.s32.totalorder %s60, %s63
    %p72 = scmp.eq.s32.totalorder %s15, 1
    %p73 = por %p71, %p72
    %p74 = scmp.ne.s32.totalorder %s63, %s64
    %p75 = scmp.eq.s32.totalorder %s15, 0
    %p76 = por %p74, %p75
    %p77 = scmp.ne.s32.totalorder %s63, %s64
    %p78 = scmp.eq.s32.totalorder %s16, 1
    %p79 = por %p77, %p78
    %p81 = scmp.ne.s32.totalorder %s64, %s80
    %p82 = scmp.eq.s32.totalorder %s16, 0
    %p83 = por %p81, %p82
    %s84 = ssub.s32 %s17, %s29
    %s85 = ssub.s32 %s18, %s25
    %s86 = sor.u32 %s84, %s85
    %p87 = scmp.eq.s32.totalorder %s86, 0
    %s89 = sadd.s32 %s88, 1
    %s90 = scalar_select %p87, %s88, %s89
    %p93 = pneg %p87
    %p94 = scmp.eq.s32.totalorder %s10, 1
    %p95 = por %p93, %p94
    %p96 = scmp.ne.s32.totalorder %s88, %s91
    %p97 = scmp.eq.s32.totalorder %s10, 0
    %p98 = por %p96, %p97
    %p99 = scmp.ne.s32.totalorder %s88, %s91
    %p100 = scmp.eq.s32.totalorder %s15, 1
    %p101 = por %p99, %p100
    %p102 = scmp.ne.s32.totalorder %s91, %s92
    %p103 = scmp.eq.s32.totalorder %s15, 0
    %p104 = por %p102, %p103
    %p105 = scmp.ne.s32.totalorder %s91, %s92
    %p106 = scmp.eq.s32.totalorder %s16, 1
    %p107 = por %p105, %p106
    %p109 = scmp.ne.s32.totalorder %s92, %s108
    %p110 = scmp.eq.s32.totalorder %s16, 0
    %p111 = por %p109, %p110
    %s112 = ssub.s32 %s18, %s25
    %p113 = scmp.eq.s32.totalorder %s112, 0
    %s115 = sadd.s32 %s114, 1
    %s116 = scalar_select %p113, %s114, %s115
    %p119 = pneg %p113
    %p120 = scmp.eq.s32.totalorder %s10, 1
    %p121 = por %p119, %p120
    %p122 = scmp.ne.s32.totalorder %s114, %s117
    %p123 = scmp.eq.s32.totalorder %s10, 0
    %p124 = por %p122, %p123
    %p125 = scmp.ne.s32.totalorder %s114, %s117
    %p126 = scmp.eq.s32.totalorder %s15, 1
    %p127 = por %p125, %p126
    %p128 = scmp.ne.s32.totalorder %s117, %s118
    %p129 = scmp.eq.s32.totalorder %s15, 0
    %p130 = por %p128, %p129
    %p131 = scmp.ne.s32.totalorder %s117, %s118
    %p132 = scmp.eq.s32.totalorder %s16, 1
    %p133 = por %p131, %p132
    %p135 = scmp.ne.s32.totalorder %s118, %s134
    %p136 = scmp.eq.s32.totalorder %s16, 0
    %p137 = por %p135, %p136
    %s138 = ssub.s32 %s17, %s29
    %p139 = scmp.eq.s32.totalorder %s138, 0
    %s141 = sadd.s32 %s140, 1
    %s142 = scalar_select %p139, %s140, %s141
    %p145 = pneg %p139
    %p146 = scmp.eq.s32.totalorder %s10, 1
    %p147 = por %p145, %p146
    %p148 = scmp.ne.s32.totalorder %s140, %s143
    %p149 = scmp.eq.s32.totalorder %s10, 0
    %p150 = por %p148, %p149
    %p151 = scmp.ne.s32.totalorder %s140, %s143
    %p152 = scmp.eq.s32.totalorder %s15, 1
    %p153 = por %p151, %p152
    %p154 = scmp.ne.s32.totalorder %s143, %s144
    %p155 = scmp.eq.s32.totalorder %s15, 0
    %p156 = por %p154, %p155
    %p157 = scmp.ne.s32.totalorder %s143, %s144
    %p158 = scmp.eq.s32.totalorder %s16, 1
    %p159 = por %p157, %p158
    %p161 = scmp.ne.s32.totalorder %s144, %s160
    %p162 = scmp.eq.s32.totalorder %s16, 0
    %p163 = por %p161, %p162
    %p164 = scmp.le.s32.totalorder 1, %s10
    %p165 = scmp.lt.s32.totalorder %s10, 3
    %p166 = pnand %p164, %p165
    %p167 = pneg %p166
    // Predicated region
    $region9: #{decoder_forward.17} parent=5 // pred_check
      _
    $region10: #{decoder_forward.17} parent=5 // pred_check_branch
      %169 = sbr.rel (%p166) target = $region12
    $region11: #{decoder_forward.17} parent=5 // pred_region
      %s170 = ssub.s32 %s10, 1
      // Predicated region
      $region13: #{decoder_forward.17} parent=11 // pred_check
        %p171 = pneg %p130
      $region14: #{decoder_forward.17} parent=11 // pred_check_branch
        %173 = sbr.rel (%p171) target = $region16
      $region15: #{decoder_forward.17} parent=11 // pred_region
        %p174 = scmp.lt.s32.totalorder %s20, 0
        %s175 = scalar_select %p174, %s20, 0
        %s176 = smul.addr %s175, 4
        %s177 = scalar_lea.vmem %s3, %s176
      $region16: #{decoder_forward.17} parent=11 // pred_fallthru
        _
    $region12: #{decoder_forward.17} parent=5 // pred_fallthru
      _
    %p178 = scmp.lt.s32.totalorder %s10, 2
    // Predicated region
    $region17: #{decoder_forward.17} parent=5 // pred_check
      %p179 = pneg %p178
    $region18: #{decoder_forward.17} parent=5 // pred_check_branch
      %181 = sbr.rel (%p179) target = $region20
    $region19: #{decoder_forward.17} parent=5 // pred_region
      // Predicated region
      $region21: #{decoder_forward.17} parent=19 // pred_check
        %p182 = pneg %p42
      $region22: #{decoder_forward.17} parent=19 // pred_check_branch
        %184 = sbr.rel (%p182) target = $region24
      $region23: #{decoder_forward.17} parent=19 // pred_region
        %p185 = scmp.lt.s32.totalorder %s17, 1
        %s186 = scalar_select %p185, %s17, 1
        %s187 = smul.addr %s186, 8
        %s188 = scalar_lea.vmem %s0, %s187
      $region24: #{decoder_forward.17} parent=19 // pred_fallthru
        _
      // Predicated region
      $region25: #{decoder_forward.17} parent=19 // pred_check
        %p189 = pneg %p70
      $region26: #{decoder_forward.17} parent=19 // pred_check_branch
        %191 = sbr.rel (%p189) target = $region28
      $region27: #{decoder_forward.17} parent=19 // pred_region
        %p192 = scmp.lt.s32.totalorder %s17, 1
        %s193 = scalar_select %p192, %s17, 1
        %p194 = scmp.lt.s32.totalorder %s18, 0
        %s195 = scalar_select %p194, %s18, 0
        %s196 = sadd.s32 %s195, %s193
        %s197 = smul.addr %s196, 8
        %s198 = scalar_lea.vmem %s1, %s197
      $region28: #{decoder_forward.17} parent=19 // pred_fallthru
        _
      // Predicated region
      $region29: #{decoder_forward.17} parent=19 // pred_check
        %p199 = pneg %p98
      $region30: #{decoder_forward.17} parent=19 // pred_check_branch
        %201 = sbr.rel (%p199) target = $region32
      $region31: #{decoder_forward.17} parent=19 // pred_region
        %p202 = scmp.lt.s32.totalorder %s17, 1
        %s203 = scalar_select %p202, %s17, 1
        %p204 = scmp.lt.s32.totalorder %s18, 0
        %s205 = scalar_select %p204, %s18, 0
        %s206 = sadd.s32 %s205, %s203
        %s207 = smul.addr %s206, 8
        %s208 = scalar_lea.vmem %s2, %s207
      $region32: #{decoder_forward.17} parent=19 // pred_fallthru
        _
    $region20: #{decoder_forward.17} parent=5 // pred_fallthru
      _
    %p209 = scmp.le.s32.totalorder 1, %s10
    %p210 = scmp.lt.s32.totalorder %s10, 3
    %p211 = pnand %p209, %p210
    %p212 = pneg %p211
    // Predicated region
    $region33: #{decoder_forward.17} parent=5 // pred_check
      _
    $region34: #{decoder_forward.17} parent=5 // pred_check_branch
      %214 = sbr.rel (%p211) target = $region36
    $region35: #{decoder_forward.17} parent=5 // pred_region
      %s215 = ssub.s32 %s10, 1
      %p216 = scmp.lt.s32.totalorder %s19, 1
      %s217 = scalar_select %p216, %s19, 1
      %s218 = smul.addr %s217, 8
      %s219 = scalar_lea.vmem %s0, %s218
      %p220 = pneg %p48
      %p221 = pneg %p45
      %p222 = scmp.lt.s32.totalorder %s19, 1
      %s223 = scalar_select %p222, %s19, 1
      %p224 = scmp.lt.s32.totalorder %s20, 0
      %s225 = scalar_select %p224, %s20, 0
      %s226 = sadd.s32 %s225, %s223
      %s227 = smul.addr %s226, 8
      %s228 = scalar_lea.vmem %s1, %s227
      %p229 = pneg %p76
      %p230 = pneg %p73
      %p231 = scmp.lt.s32.totalorder %s19, 1
      %s232 = scalar_select %p231, %s19, 1
      %p233 = scmp.lt.s32.totalorder %s20, 0
      %s234 = scalar_select %p233, %s20, 0
      %s235 = sadd.s32 %s234, %s232
      %s236 = smul.addr %s235, 8
      %s237 = scalar_lea.vmem %s2, %s236
      %p238 = pneg %p104
      %p239 = pneg %p101
      %p240 = scmp.lt.s32.totalorder %s20, 0
      %s241 = scalar_select %p240, %s20, 0
      %s242 = smul.addr %s241, 4
      %s243 = scalar_lea.vmem %s3, %s242
      %p244 = pneg %p130
      %p245 = pneg %p127
      %p246 = pneg %p156
      %p247 = pneg %p153
      %p248 = scmp.lt.s32.totalorder %s19, 1
      %s249 = scalar_select %p248, %s19, 1
      %s250 = smul.addr %s249, 8
      %s251 = scalar_lea.vmem %s4, %s250
      %p252 = scmp.lt.s32.totalorder %s19, 1
      %s253 = scalar_select %p252, %s19, 1
      %s254 = smul.addr %s253, 8
      %s255 = scalar_lea.vmem %s0, %s254
      %p256 = scmp.lt.s32.totalorder %s19, 1
      %s257 = scalar_select %p256, %s19, 1
      %p258 = scmp.lt.s32.totalorder %s20, 0
      %s259 = scalar_select %p258, %s20, 0
      %s260 = sadd.s32 %s259, %s257
      %s261 = smul.addr %s260, 8
      %s262 = scalar_lea.vmem %s1, %s261
      %p263 = scmp.lt.s32.totalorder %s19, 1
      %s264 = scalar_select %p263, %s19, 1
      %p265 = scmp.lt.s32.totalorder %s20, 0
      %s266 = scalar_select %p265, %s20, 0
      %s267 = sadd.s32 %s266, %s264
      %s268 = smul.addr %s267, 8
      %s269 = scalar_lea.vmem %s2, %s268
      %p270 = scmp.lt.s32.totalorder %s20, 0
      %s271 = scalar_select %p270, %s20, 0
      %s272 = smul.addr %s271, 4
      %s273 = scalar_lea.vmem %s3, %s272
      %p274 = scmp.lt.s32.totalorder %s19, 1
      %s275 = scalar_select %p274, %s19, 1
      %s276 = smul.addr %s275, 8
      %s277 = scalar_lea.vmem %s4, %s276
      %p279 = scmp.eq.s32.totalorder %s20, 0
      // Predicated region
      $region37: #{decoder_forward.17} parent=35 // pred_check
        %p280 = pneg %p279
      $region38: #{decoder_forward.17} parent=35 // pred_check_branch
        %282 = sbr.rel (%p280) target = $region40
      $region39: #{decoder_forward.17} parent=35 // pred_region
        %vm283 = vcmask 7168
        %284 = vst.msk [vmem:[#allocation2] sm:$0xff] %vm283, -inf
        %285 = vst.msk [vmem:[#allocation2 + $0x8] sm:$0xff] %vm283, -inf
        %286 = vst.msk [vmem:[#allocation2 + $0x10] sm:$0xff] %vm283, -inf
        %287 = vst.msk [vmem:[#allocation2 + $0x18] sm:$0xff] %vm283, -inf
        %288 = vst.msk [vmem:[#allocation3] sm:$0xff] %vm283, 0.0
        %289 = vst.msk [vmem:[#allocation3 + $0x8] sm:$0xff] %vm283, 0.0
        %290 = vst.msk [vmem:[#allocation3 + $0x10] sm:$0xff] %vm283, 0.0
        %291 = vst.msk [vmem:[#allocation3 + $0x18] sm:$0xff] %vm283, 0.0
        %vm292 = vcmask 64512
        %293 = vst.msk [vmem:[#allocation4] sm:$0xff] %vm292, 0.0
        %294 = vst.msk [vmem:[#allocation4 + $0x8] sm:$0xff] %vm292, 0.0
        %295 = vst.msk [vmem:[#allocation4 + $0x10] sm:$0xff] %vm292, 0.0
        %296 = vst.msk [vmem:[#allocation4 + $0x18] sm:$0xff] %vm292, 0.0
      $region40: #{decoder_forward.17} parent=35 // pred_fallthru
        _
      %v297 = vld [vmem:[%s255] sm:$0xff]
      %v298 = vpack.c.bf16 %v297, %v297
      %v299 = vld [vmem:[%s262] sm:$0xff]
      %v300 = vpack.c.bf16 %v299, %v299
      %v301 = vld [vmem:[%s269] sm:$0xff]
      %v302 = vpack.c.bf16 %v301, %v301
      %vm303 = vcmask 64512
      %v305 = vsel %vm303, %v298, 0
      %v308 = vsel %vm303, %v300, 0
      %310 = vmatpush.bf16.xpose.msra.mxu0 0
      %311 = vmatpush.bf16.xpose.msra.mxu0 0
      %312 = vmatpush.bf16.xpose.msra.mxu0 0
      %313 = vmatpush.bf16.xpose.msra.mxu0 0
      %314 = vmatpush.bf16.xpose.msra.mxu0 0
      %315 = vmatpush.bf16.xpose.msra.mxu0 0
      %316 = vmatpush.bf16.xpose.msra.mxu0 0
      %317 = vmatpush.bf16.xpose.msra.mxu0 %v308
      %318 = vmatmul.bf16.gmra.mxu0 %v305
      %v319 = vpop.f32.mrf.mxu0
      %v320 = vadd.f32 0.0, %v319
      %v321 = vpop.f32.mrf.mxu0
      %322 = vdwg.mxu0
      %v323 = vmul.f32 %v320, 0.35355338
      %v324 = vld [vmem:[%s273] sm:$0xf]
      %v325 = vunpack.c.l.bf16 %v324
      %vm326 = vcmp.eq.f32.partialorder %v325, 0.0
      %v327 = vsel %vm326, -1e+09, %v323
      %v328 = vld [vmem:[#allocation2] sm:$0xff]
      %v329 = vsel %vm303, %v327, -inf
      %330 = vmax.xlane.f32.xlu0 %v329
      %v331 = vpop.xlane.xlu0 %330
      %v332 = vmax.f32 %v328, %v331
      %v333 = vsub.f32 %v328, %v332
      %v334 = vmul.f32 %v333, 1.442695
      %v335 = vpow.pop %v334
      %337 = vset.pattern.permute.xlu0 0
      %338 = vperm.xlu0 %337, %v332
      %v339 = vpop.permute.xlu0 %338
      %v341 = vsub.f32 %v327, %v339
      %v342 = vmul.f32 %v341, 1.442695
      %v343 = vpow.pop %v342
      %v344 = vld [vmem:[#allocation3] sm:$0xff]
      %v345 = vmul.f32 %v335, %v344
      %v346 = vsel %vm303, %v343, 0.0
      %347 = vadd.xlane.f32.xlu0 %v346
      %v348 = vpop.xlane.xlu0 %347
      %v349 = vadd.f32 %v345, %v348
      %vm350 = vcmask 7168
      %351 = vst.msk [vmem:[#allocation3] sm:$0xff] %vm350, %v349
      %v352 = vld [vmem:[#allocation4] sm:$0xff]
      %354 = vset.pattern.permute.xlu0 0
      %355 = vperm.xlu0 %354, %v335
      %v356 = vpop.permute.xlu0 %355
      %v358 = vmul.f32 %v356, %v352
      %v359 = vpack.c.bf16 %v343, %v343
      %v361 = vsel %vm303, %v359, 0
      %vm363 = vcmask 1043456
      %v365 = vsel %vm363, %v302, 0
      %367 = vmatpush.bf16.msra.mxu0 0
      %368 = vmatpush.bf16.msra.mxu0 0
      %369 = vmatpush.bf16.msra.mxu0 0
      %370 = vmatpush.bf16.msra.mxu0 0
      %371 = vmatpush.bf16.msra.mxu0 0
      %372 = vmatpush.bf16.msra.mxu0 0
      %373 = vmatpush.bf16.msra.mxu0 0
      %374 = vmatpush.bf16.msra.mxu0 %v365
      %375 = vmatmul.bf16.gmra.mxu0 %v361
      %v376 = vpop.f32.mrf.mxu0
      %v377 = vadd.f32 0.0, %v376
      %v378 = vpop.f32.mrf.mxu0
      %379 = vdwg.mxu0
      %v380 = vadd.f32 %v358, %v377
      %381 = vst.msk [vmem:[#allocation4] sm:$0xff] %vm303, %v380
      %382 = vst.msk [vmem:[#allocation2] sm:$0xff] %vm350, %v332
      %v383 = vld [vmem:[%s255] sm:$0xff]
      %v384 = vpack.c.bf16 %v383, %v383
      %v385 = vld [vmem:[%s262] sm:$0xff]
      %v386 = vpack.c.bf16 %v385, %v385
      %v387 = vld [vmem:[%s269] sm:$0xff]
      %v388 = vpack.c.bf16 %v387, %v387
      %390 = vrot.lane.b32.xlu0 %v384, 120
      %v391 = vpop.permute.xlu0 %390
      %393 = vrot.lane.b32.xlu0 %v386, 120
      %v394 = vpop.permute.xlu0 %393
      %v396 = vsel %vm303, %v391, 0
      %v399 = vsel %vm303, %v394, 0
      %401 = vmatpush.bf16.xpose.msra.mxu0 0
      %402 = vmatpush.bf16.xpose.msra.mxu0 0
      %403 = vmatpush.bf16.xpose.msra.mxu0 0
      %404 = vmatpush.bf16.xpose.msra.mxu0 0
      %405 = vmatpush.bf16.xpose.msra.mxu0 0
      %406 = vmatpush.bf16.xpose.msra.mxu0 0
      %407 = vmatpush.bf16.xpose.msra.mxu0 0
      %408 = vmatpush.bf16.xpose.msra.mxu0 %v399
      %409 = vmatmul.bf16.gmra.mxu0 %v396
      %v410 = vpop.f32.mrf.mxu0
      %v411 = vadd.f32 0.0, %v410
      %v412 = vpop.f32.mrf.mxu0
      %413 = vdwg.mxu0
      %v414 = vmul.f32 %v411, 0.35355338
      %v415 = vld [vmem:[%s273] sm:$0xf]
      %v416 = vunpack.c.l.bf16 %v415
      %vm417 = vcmp.eq.f32.partialorder %v416, 0.0
      %v418 = vsel %vm417, -1e+09, %v414
      %s419 = scalar_lea.vmem [#allocation2], 8
      %v420 = vld [vmem:[%s419] sm:$0xff]
      %v421 = vsel %vm303, %v418, -inf
      %422 = vmax.xlane.f32.xlu0 %v421
      %v423 = vpop.xlane.xlu0 %422
      %v424 = vmax.f32 %v420, %v423
      %v425 = vsub.f32 %v420, %v424
      %v426 = vmul.f32 %v425, 1.442695
      %v427 = vpow.pop %v426
      %429 = vset.pattern.permute.xlu0 0
      %430 = vperm.xlu0 %429, %v424
      %v431 = vpop.permute.xlu0 %430
      %v433 = vsub.f32 %v418, %v431
      %v434 = vmul.f32 %v433, 1.442695
      %v435 = vpow.pop %v434
      %s436 = scalar_lea.vmem [#allocation3], 8
      %v437 = vld [vmem:[%s436] sm:$0xff]
      %v438 = vmul.f32 %v427, %v437
      %v439 = vsel %vm303, %v435, 0.0
      %440 = vadd.xlane.f32.xlu0 %v439
      %v441 = vpop.xlane.xlu0 %440
      %v442 = vadd.f32 %v438, %v441
      %443 = vst.msk [vmem:[%s436] sm:$0xff] %vm350, %v442
      %s444 = scalar_lea.vmem [#allocation4], 8
      %v445 = vld [vmem:[%s444] sm:$0xff]
      %447 = vset.pattern.permute.xlu0 0
      %448 = vperm.xlu0 %447, %v427
      %v449 = vpop.permute.xlu0 %448
      %v451 = vmul.f32 %v449, %v445
      %v452 = vpack.c.bf16 %v435, %v435
      %454 = vrot.lane.b32.xlu0 %v388, 120
      %v455 = vpop.permute.xlu0 %454
      %v457 = vsel %vm303, %v452, 0
      %v460 = vsel %vm363, %v455, 0
      %462 = vmatpush.bf16.msra.mxu0 0
      %463 = vmatpush.bf16.msra.mxu0 0
      %464 = vmatpush.bf16.msra.mxu0 0
      %465 = vmatpush.bf16.msra.mxu0 0
      %466 = vmatpush.bf16.msra.mxu0 0
      %467 = vmatpush.bf16.msra.mxu0 0
      %468 = vmatpush.bf16.msra.mxu0 0
      %469 = vmatpush.bf16.msra.mxu0 %v460
      %470 = vmatmul.bf16.gmra.mxu0 %v457
      %v471 = vpop.f32.mrf.mxu0
      %v472 = vadd.f32 0.0, %v471
      %v473 = vpop.f32.mrf.mxu0
      %474 = vdwg.mxu0
      %v475 = vadd.f32 %v451, %v472
      %476 = vst.msk [vmem:[%s444] sm:$0xff] %vm303, %v475
      %477 = vst.msk [vmem:[%s419] sm:$0xff] %vm350, %v424
      %v478 = vld [vmem:[%s255] sm:$0xff]
      %v479 = vpack.c.bf16 %v478, %v478
      %v480 = vld [vmem:[%s262] sm:$0xff]
      %v481 = vpack.c.bf16 %v480, %v480
      %v482 = vld [vmem:[%s269] sm:$0xff]
      %v483 = vpack.c.bf16 %v482, %v482
      %485 = vrot.lane.b32.xlu0 %v479, 112
      %v486 = vpop.permute.xlu0 %485
      %488 = vrot.lane.b32.xlu0 %v481, 112
      %v489 = vpop.permute.xlu0 %488
      %v491 = vsel %vm303, %v486, 0
      %v494 = vsel %vm303, %v489, 0
      %496 = vmatpush.bf16.xpose.msra.mxu0 0
      %497 = vmatpush.bf16.xpose.msra.mxu0 0
      %498 = vmatpush.bf16.xpose.msra.mxu0 0
      %499 = vmatpush.bf16.xpose.msra.mxu0 0
      %500 = vmatpush.bf16.xpose.msra.mxu0 0
      %501 = vmatpush.bf16.xpose.msra.mxu0 0
      %502 = vmatpush.bf16.xpose.msra.mxu0 0
      %503 = vmatpush.bf16.xpose.msra.mxu0 %v494
      %504 = vmatmul.bf16.gmra.mxu0 %v491
      %v505 = vpop.f32.mrf.mxu0
      %v506 = vadd.f32 0.0, %v505
      %v507 = vpop.f32.mrf.mxu0
      %508 = vdwg.mxu0
      %v509 = vmul.f32 %v506, 0.35355338
      %v510 = vld [vmem:[%s273] sm:$0xf]
      %v511 = vunpack.c.l.bf16 %v510
      %vm512 = vcmp.eq.f32.partialorder %v511, 0.0
      %v513 = vsel %vm512, -1e+09, %v509
      %s514 = scalar_lea.vmem [#allocation2], 16
      %v515 = vld [vmem:[%s514] sm:$0xff]
      %v516 = vsel %vm303, %v513, -inf
      %517 = vmax.xlane.f32.xlu0 %v516
      %v518 = vpop.xlane.xlu0 %517
      %v519 = vmax.f32 %v515, %v518
      %v520 = vsub.f32 %v515, %v519
      %v521 = vmul.f32 %v520, 1.442695
      %v522 = vpow.pop %v521
      %524 = vset.pattern.permute.xlu0 0
      %525 = vperm.xlu0 %524, %v519
      %v526 = vpop.permute.xlu0 %525
      %v528 = vsub.f32 %v513, %v526
      %v529 = vmul.f32 %v528, 1.442695
      %v530 = vpow.pop %v529
      %s531 = scalar_lea.vmem [#allocation3], 16
      %v532 = vld [vmem:[%s531] sm:$0xff]
      %v533 = vmul.f32 %v522, %v532
      %v534 = vsel %vm303, %v530, 0.0
      %535 = vadd.xlane.f32.xlu0 %v534
      %v536 = vpop.xlane.xlu0 %535
      %v537 = vadd.f32 %v533, %v536
      %538 = vst.msk [vmem:[%s531] sm:$0xff] %vm350, %v537
      %s539 = scalar_lea.vmem [#allocation4], 16
      %v540 = vld [vmem:[%s539] sm:$0xff]
      %542 = vset.pattern.permute.xlu0 0
      %543 = vperm.xlu0 %542, %v522
      %v544 = vpop.permute.xlu0 %543
      %v546 = vmul.f32 %v544, %v540
      %v547 = vpack.c.bf16 %v530, %v530
      %549 = vrot.lane.b32.xlu0 %v483, 112
      %v550 = vpop.permute.xlu0 %549
      %v552 = vsel %vm303, %v547, 0
      %v555 = vsel %vm363, %v550, 0
      %557 = vmatpush.bf16.msra.mxu0 0
      %558 = vmatpush.bf16.msra.mxu0 0
      %559 = vmatpush.bf16.msra.mxu0 0
      %560 = vmatpush.bf16.msra.mxu0 0
      %561 = vmatpush.bf16.msra.mxu0 0
      %562 = vmatpush.bf16.msra.mxu0 0
      %563 = vmatpush.bf16.msra.mxu0 0
      %564 = vmatpush.bf16.msra.mxu0 %v555
      %565 = vmatmul.bf16.gmra.mxu0 %v552
      %v566 = vpop.f32.mrf.mxu0
      %v567 = vadd.f32 0.0, %v566
      %v568 = vpop.f32.mrf.mxu0
      %569 = vdwg.mxu0
      %v570 = vadd.f32 %v546, %v567
      %571 = vst.msk [vmem:[%s539] sm:$0xff] %vm303, %v570
      %572 = vst.msk [vmem:[%s514] sm:$0xff] %vm350, %v519
      %v573 = vld [vmem:[%s255] sm:$0xff]
      %v574 = vpack.c.bf16 %v573, %v573
      %v575 = vld [vmem:[%s262] sm:$0xff]
      %v576 = vpack.c.bf16 %v575, %v575
      %v577 = vld [vmem:[%s269] sm:$0xff]
      %v578 = vpack.c.bf16 %v577, %v577
      %580 = vrot.lane.b32.xlu0 %v574, 104
      %v581 = vpop.permute.xlu0 %580
      %583 = vrot.lane.b32.xlu0 %v576, 104
      %v584 = vpop.permute.xlu0 %583
      %v586 = vsel %vm303, %v581, 0
      %v589 = vsel %vm303, %v584, 0
      %591 = vmatpush.bf16.xpose.msra.mxu0 0
      %592 = vmatpush.bf16.xpose.msra.mxu0 0
      %593 = vmatpush.bf16.xpose.msra.mxu0 0
      %594 = vmatpush.bf16.xpose.msra.mxu0 0
      %595 = vmatpush.bf16.xpose.msra.mxu0 0
      %596 = vmatpush.bf16.xpose.msra.mxu0 0
      %597 = vmatpush.bf16.xpose.msra.mxu0 0
      %598 = vmatpush.bf16.xpose.msra.mxu0 %v589
      %599 = vmatmul.bf16.gmra.mxu0 %v586
      %v600 = vpop.f32.mrf.mxu0
      %v601 = vadd.f32 0.0, %v600
      %v602 = vpop.f32.mrf.mxu0
      %603 = vdwg.mxu0
      %v604 = vmul.f32 %v601, 0.35355338
      %v605 = vld [vmem:[%s273] sm:$0xf]
      %v606 = vunpack.c.l.bf16 %v605
      %vm607 = vcmp.eq.f32.partialorder %v606, 0.0
      %v608 = vsel %vm607, -1e+09, %v604
      %s609 = scalar_lea.vmem [#allocation2], 24
      %v610 = vld [vmem:[%s609] sm:$0xff]
      %v611 = vsel %vm303, %v608, -inf
      %612 = vmax.xlane.f32.xlu0 %v611
      %v613 = vpop.xlane.xlu0 %612
      %v614 = vmax.f32 %v610, %v613
      %v615 = vsub.f32 %v610, %v614
      %v616 = vmul.f32 %v615, 1.442695
      %v617 = vpow.pop %v616
      %619 = vset.pattern.permute.xlu0 0
      %620 = vperm.xlu0 %619, %v614
      %v621 = vpop.permute.xlu0 %620
      %v623 = vsub.f32 %v608, %v621
      %v624 = vmul.f32 %v623, 1.442695
      %v625 = vpow.pop %v624
      %s626 = scalar_lea.vmem [#allocation3], 24
      %v627 = vld [vmem:[%s626] sm:$0xff]
      %v628 = vmul.f32 %v617, %v627
      %v629 = vsel %vm303, %v625, 0.0
      %630 = vadd.xlane.f32.xlu0 %v629
      %v631 = vpop.xlane.xlu0 %630
      %v632 = vadd.f32 %v628, %v631
      %633 = vst.msk [vmem:[%s626] sm:$0xff] %vm350, %v632
      %s634 = scalar_lea.vmem [#allocation4], 24
      %v635 = vld [vmem:[%s634] sm:$0xff]
      %637 = vset.pattern.permute.xlu0 0
      %638 = vperm.xlu0 %637, %v617
      %v639 = vpop.permute.xlu0 %638
      %v641 = vmul.f32 %v639, %v635
      %v642 = vpack.c.bf16 %v625, %v625
      %644 = vrot.lane.b32.xlu0 %v578, 104
      %v645 = vpop.permute.xlu0 %644
      %v647 = vsel %vm303, %v642, 0
      %v650 = vsel %vm363, %v645, 0
      %652 = vmatpush.bf16.msra.mxu0 0
      %653 = vmatpush.bf16.msra.mxu0 0
      %654 = vmatpush.bf16.msra.mxu0 0
      %655 = vmatpush.bf16.msra.mxu0 0
      %656 = vmatpush.bf16.msra.mxu0 0
      %657 = vmatpush.bf16.msra.mxu0 0
      %658 = vmatpush.bf16.msra.mxu0 0
      %659 = vmatpush.bf16.msra.mxu0 %v650
      %660 = vmatmul.bf16.gmra.mxu0 %v647
      %v661 = vpop.f32.mrf.mxu0
      %v662 = vadd.f32 0.0, %v661
      %v663 = vpop.f32.mrf.mxu0
      %664 = vdwg.mxu0
      %v665 = vadd.f32 %v641, %v662
      %666 = vst.msk [vmem:[%s634] sm:$0xff] %vm303, %v665
      %667 = vst.msk [vmem:[%s609] sm:$0xff] %vm350, %v614
      // Predicated region
      $region41: #{decoder_forward.17} parent=35 // pred_check
        %p668 = pneg %p279
      $region42: #{decoder_forward.17} parent=35 // pred_check_branch
        %670 = sbr.rel (%p668) target = $region44
      $region43: #{decoder_forward.17} parent=35 // pred_region
        %v671 = vld [vmem:[#allocation3] sm:$0xff]
        %v672 = vrcp.pop %v671
        %v673 = vld [vmem:[#allocation4] sm:$0xff]
        %675 = vset.pattern.permute.xlu0 0
        %676 = vperm.xlu0 %675, %v672
        %v677 = vpop.permute.xlu0 %676
        %v679 = vmul.f32 %v673, %v677
        %680 = vst.msk [vmem:[%s277] sm:$0xff] %vm303, %v679
        %v681 = vld [vmem:[%s436] sm:$0xff]
        %v682 = vrcp.pop %v681
        %v683 = vld [vmem:[%s444] sm:$0xff]
        %685 = vset.pattern.permute.xlu0 0
        %686 = vperm.xlu0 %685, %v682
        %v687 = vpop.permute.xlu0 %686
        %v689 = vmul.f32 %v683, %v687
        %691 = vrot.lane.b32.xlu0 %v689, 8
        %v692 = vpop.permute.xlu0 %691
        %vm694 = vcmask 130112
        %695 = vst.msk [vmem:[%s277] sm:$0xff] %vm694, %v692
        %v696 = vld [vmem:[%s531] sm:$0xff]
        %v697 = vrcp.pop %v696
        %v698 = vld [vmem:[%s539] sm:$0xff]
        %700 = vset.pattern.permute.xlu0 0
        %701 = vperm.xlu0 %700, %v697
        %v702 = vpop.permute.xlu0 %701
        %v704 = vmul.f32 %v698, %v702
        %706 = vrot.lane.b32.xlu0 %v704, 16
        %v707 = vpop.permute.xlu0 %706
        %vm709 = vcmask 195712
        %710 = vst.msk [vmem:[%s277] sm:$0xff] %vm709, %v707
        %v711 = vld [vmem:[%s626] sm:$0xff]
        %v712 = vrcp.pop %v711
        %v713 = vld [vmem:[%s634] sm:$0xff]
        %715 = vset.pattern.permute.xlu0 0
        %716 = vperm.xlu0 %715, %v712
        %v717 = vpop.permute.xlu0 %716
        %v719 = vmul.f32 %v713, %v717
        %721 = vrot.lane.b32.xlu0 %v719, 24
        %v722 = vpop.permute.xlu0 %721
        %vm724 = vcmask 261312
        %725 = vst.msk [vmem:[%s277] sm:$0xff] %vm724, %v722
      $region44: #{decoder_forward.17} parent=35 // pred_fallthru
        _
      %p726 = scmp.lt.s32.totalorder %s19, 1
      %s727 = scalar_select %p726, %s19, 1
      %s728 = smul.addr %s727, 8
      %s729 = scalar_lea.vmem %s4, %s728
      // Predicated region
      $region45: #{decoder_forward.17} parent=35 // pred_check
        %p730 = pneg %p153
      $region46: #{decoder_forward.17} parent=35 // pred_check_branch
        %732 = sbr.rel (%p730) target = $region48
      $region47: #{decoder_forward.17} parent=35 // pred_region
        _
      $region48: #{decoder_forward.17} parent=35 // pred_fallthru
        _
    $region36: #{decoder_forward.17} parent=5 // pred_fallthru
      _
    %p733 = scmp.le.s32.totalorder 2, %s10
    // Predicated region
    $region49: #{decoder_forward.17} parent=5 // pred_check
      %p734 = pneg %p733
    $region50: #{decoder_forward.17} parent=5 // pred_check_branch
      %736 = sbr.rel (%p734) target = $region52
    $region51: #{decoder_forward.17} parent=5 // pred_region
      %s737 = ssub.s32 %s10, 2
      // Predicated region
      $region53: #{decoder_forward.17} parent=51 // pred_check
        %p738 = pneg %p159
      $region54: #{decoder_forward.17} parent=51 // pred_check_branch
        %740 = sbr.rel (%p738) target = $region56
      $region55: #{decoder_forward.17} parent=51 // pred_region
        %p741 = scmp.lt.s32.totalorder %s21, 1
        %s742 = scalar_select %p741, %s21, 1
        %s743 = smul.addr %s742, 8
        %s744 = scalar_lea.vmem %s4, %s743
      $region56: #{decoder_forward.17} parent=51 // pred_fallthru
        _
    $region52: #{decoder_forward.17} parent=5 // pred_fallthru
      _
  $region6: #{decoder_forward.17} parent=0 // loop_footer
    %s14 = sadd.s32 1, %s10
  $region7: #{decoder_forward.17} parent=0 // loop_footer_branch
    %9 = sbr.rel target = $region3
  $region8: #{decoder_forward.17} parent=0 // loop_exit
    _

// kernel: decoder_forward.20
$region0: #{decoder_forward.20}
  #allocation0 [shape = 'u32[]', space=smem, size = 0x4, offset = 0x4, fixed_abs, tag = 'smem constant byte address 0x4 - core index']
  #allocation1 [shape = 'u32[72,128]{1,0:T(1,128)}', space=vmem, size = 0x9000, scoped, tag = 'internal scratch']
  %s0 = inlined_call_operand.vmem [shape: f32[16,32], index: 0, kind: input, shape index: {}]
  %s1 = inlined_call_operand.vmem [shape: bf16[32,64], index: 1, kind: input, shape index: {}]
  %s2 = inlined_call_operand.vmem [shape: f32[1,64], index: 2, kind: input, shape index: {}]
  %s3 = inlined_call_operand.vmem [shape: f32[16,64], index: 3, kind: output, shape index: {}]
  %s4 = sld [smem:[#allocation0]]
  $region22: #{decoder_forward.20} parent=0
    _
  %s6 = ssub.s32 1, %s4
  %s7 = scalar_select 0, %s6, %s4
  // Predicated region
  $region2: #{decoder_forward.20} parent=0 // pred_check
    _
  $region3: #{decoder_forward.20} parent=0 // pred_check_branch
    %9 = sbr.rel (0) target = $region5
  $region4: #{decoder_forward.20} parent=0 // pred_region
    _
  $region5: #{decoder_forward.20} parent=0 // pred_fallthru
    _
  // Predicated region
  $region6: #{decoder_forward.20} parent=0 // pred_check
    _
  $region7: #{decoder_forward.20} parent=0 // pred_check_branch
    %11 = sbr.rel (0) target = $region9
  $region8: #{decoder_forward.20} parent=0 // pred_region
    _
  $region9: #{decoder_forward.20} parent=0 // pred_fallthru
    _
  // Predicated region
  $region10: #{decoder_forward.20} parent=0 // pred_check
    _
  $region11: #{decoder_forward.20} parent=0 // pred_check_branch
    %13 = sbr.rel (0) target = $region13
  $region12: #{decoder_forward.20} parent=0 // pred_region
    _
  $region13: #{decoder_forward.20} parent=0 // pred_fallthru
    _
  %v15 = vld [vmem:[%s0] sm:$0xff]
  %v16 = vld [vmem:[%s0 + $0x8] sm:$0xff]
  %v17 = vpack.c.bf16 %v16, %v15
  %v18 = vld [vmem:[%s1] sm:$0xf]
  %v19 = vld [vmem:[%s1 + $0x4] sm:$0xf]
  %v20 = vld [vmem:[%s1 + $0x8] sm:$0xf]
  %v21 = vld [vmem:[%s1 + $0xc] sm:$0xf]
  %v22 = vld [vmem:[%s2] sm:$0x1]
  %v24 = vperm.slane %v22, 0
  %v30 = vunpack.c.l.b16 %v18
  %v31 = vunpack.c.l.b16 %v19
  %v32 = vunpack.c.l.b16 %v20
  %v33 = vunpack.c.l.b16 %v21
  %v34 = vpack.c.b16 %v31, %v30
  %v35 = vpack.c.b16 %v33, %v32
  %vm38 = vcmask 261120
  %v40 = vsel %vm38, %v17, 0
  %42 = vmatpush.bf16.msra.mxu0 0
  %43 = vmatpush.bf16.msra.mxu0 0
  %44 = vmatpush.bf16.msra.mxu0 0
  %45 = vmatpush.bf16.msra.mxu0 0
  %46 = vmatpush.bf16.msra.mxu0 0
  %47 = vmatpush.bf16.msra.mxu0 0
  %48 = vmatpush.bf16.msra.mxu0 %v35
  %49 = vmatpush.bf16.msra.mxu0 %v34
  %50 = vmatmul.bf16.gmra.mxu0 %v40
  %v51 = vpop.f32.mrf.mxu0
  %v52 = vadd.f32 %v24, %v51
  %v53 = vpop.f32.mrf.mxu0
  %v54 = vadd.f32 %v24, %v53
  %55 = vdwg.mxu0
  %vm56 = vcmask 523264
  %57 = vst.msk [vmem:[%s3] sm:$0xff] %vm56, %v52
  %58 = vst.msk [vmem:[%s3 + $0x8] sm:$0xff] %vm56, %v54
  // Predicated region
  $region14: #{decoder_forward.20} parent=0 // pred_check
    _
  $region15: #{decoder_forward.20} parent=0 // pred_check_branch
    %60 = sbr.rel (0) target = $region17
  $region16: #{decoder_forward.20} parent=0 // pred_region
    _
  $region17: #{decoder_forward.20} parent=0 // pred_fallthru
    _
  // Predicated region
  $region18: #{decoder_forward.20} parent=0 // pred_check
    _
  $region19: #{decoder_forward.20} parent=0 // pred_check_branch
    %62 = sbr.rel (0) target = $region21
  $region20: #{decoder_forward.20} parent=0 // pred_region
    _
  $region21: #{decoder_forward.20} parent=0 // pred_fallthru
    _

// kernel: decoder_forward.23
$region0: #{decoder_forward.23}
  #allocation0 [shape = 'u32[]', space=smem, size = 0x4, offset = 0x4, fixed_abs, tag = 'smem constant byte address 0x4 - core index']
  #allocation1 [shape = 'u32[72,128]{1,0:T(1,128)}', space=vmem, size = 0x9000, scoped, tag = 'internal scratch']
  #allocation2 [shape = 'f32[16,32]{1,0:T(8,128)}', space=vmem, size = 0x2000, scoped, tag = 'scratch operand']
  %s0 = inlined_call_operand.vmem [shape: f32[16,32], index: 0, kind: input, shape index: {}]
  %s1 = inlined_call_operand.vmem [shape: bf16[32,64], index: 1, kind: input, shape index: {}]
  %s2 = inlined_call_operand.vmem [shape: f32[1,64], index: 2, kind: input, shape index: {}]
  %s3 = inlined_call_operand.vmem [shape: bf16[64,32], index: 3, kind: input, shape index: {}]
  %s4 = inlined_call_operand.vmem [shape: f32[1,32], index: 4, kind: input, shape index: {}]
  %s5 = inlined_call_operand.vmem [shape: f32[1,32], index: 5, kind: input, shape index: {}]
  %s6 = inlined_call_operand.vmem [shape: f32[1,32], index: 6, kind: input, shape index: {}]
  %s7 = inlined_call_operand.vmem [shape: f32[16,32], index: 7, kind: output, shape index: {}]
  %s8 = sld [smem:[#allocation0]]
  $region46: #{decoder_forward.23} parent=0
    _
  %s10 = ssub.s32 1, %s8
  %s11 = scalar_select 0, %s10, %s8
  // Predicated region
  $region2: #{decoder_forward.23} parent=0 // pred_check
    _
  $region3: #{decoder_forward.23} parent=0 // pred_check_branch
    %13 = sbr.rel (0) target = $region5
  $region4: #{decoder_forward.23} parent=0 // pred_region
    _
  $region5: #{decoder_forward.23} parent=0 // pred_fallthru
    _
  // Predicated region
  $region6: #{decoder_forward.23} parent=0 // pred_check
    _
  $region7: #{decoder_forward.23} parent=0 // pred_check_branch
    %15 = sbr.rel (0) target = $region9
  $region8: #{decoder_forward.23} parent=0 // pred_region
    _
  $region9: #{decoder_forward.23} parent=0 // pred_fallthru
    _
  // Predicated region
  $region10: #{decoder_forward.23} parent=0 // pred_check
    _
  $region11: #{decoder_forward.23} parent=0 // pred_check_branch
    %17 = sbr.rel (0) target = $region13
  $region12: #{decoder_forward.23} parent=0 // pred_region
    _
  $region13: #{decoder_forward.23} parent=0 // pred_fallthru
    _
  // Predicated region
  $region14: #{decoder_forward.23} parent=0 // pred_check
    _
  $region15: #{decoder_forward.23} parent=0 // pred_check_branch
    %19 = sbr.rel (0) target = $region17
  $region16: #{decoder_forward.23} parent=0 // pred_region
    _
  $region17: #{decoder_forward.23} parent=0 // pred_fallthru
    _
  // Predicated region
  $region18: #{decoder_forward.23} parent=0 // pred_check
    _
  $region19: #{decoder_forward.23} parent=0 // pred_check_branch
    %21 = sbr.rel (0) target = $region21
  $region20: #{decoder_forward.23} parent=0 // pred_region
    _
  $region21: #{decoder_forward.23} parent=0 // pred_fallthru
    _
  // Predicated region
  $region22: #{decoder_forward.23} parent=0 // pred_check
    _
  $region23: #{decoder_forward.23} parent=0 // pred_check_branch
    %23 = sbr.rel (0) target = $region25
  $region24: #{decoder_forward.23} parent=0 // pred_region
    _
  $region25: #{decoder_forward.23} parent=0 // pred_fallthru
    _
  // Predicated region
  $region26: #{decoder_forward.23} parent=0 // pred_check
    _
  $region27: #{decoder_forward.23} parent=0 // pred_check_branch
    %25 = sbr.rel (0) target = $region29
  $region28: #{decoder_forward.23} parent=0 // pred_region
    _
  $region29: #{decoder_forward.23} parent=0 // pred_fallthru
    _
  %p27 = scmp.eq.s32.totalorder 0, 0
  // Predicated region
  $region30: #{decoder_forward.23} parent=0 // pred_check
    %p28 = pneg %p27
  $region31: #{decoder_forward.23} parent=0 // pred_check_branch
    %30 = sbr.rel (%p28) target = $region33
  $region32: #{decoder_forward.23} parent=0 // pred_region
    %vm31 = vcmask 261120
    %32 = vst.msk [vmem:[#allocation2] sm:$0xff] %vm31, 0.0
    %33 = vst.msk [vmem:[#allocation2 + $0x8] sm:$0xff] %vm31, 0.0
  $region33: #{decoder_forward.23} parent=0 // pred_fallthru
    _
  %v34 = vld [vmem:[%s0] sm:$0xff]
  %v35 = vld [vmem:[%s0 + $0x8] sm:$0xff]
  %v36 = vpack.c.bf16 %v35, %v34
  %v37 = vld [vmem:[%s1] sm:$0xf]
  %v38 = vld [vmem:[%s1 + $0x4] sm:$0xf]
  %v39 = vld [vmem:[%s1 + $0x8] sm:$0xf]
  %v40 = vld [vmem:[%s1 + $0xc] sm:$0xf]
  %v41 = vld [vmem:[%s2] sm:$0x1]
  %v43 = vperm.slane %v41, 0
  %v49 = vunpack.c.l.b16 %v37
  %v50 = vunpack.c.l.b16 %v38
  %v51 = vunpack.c.l.b16 %v39
  %v52 = vunpack.c.l.b16 %v40
  %v53 = vpack.c.b16 %v50, %v49
  %v54 = vpack.c.b16 %v52, %v51
  %vm57 = vcmask 261120
  %v59 = vsel %vm57, %v36, 0
  %61 = vmatpush.bf16.msra.mxu0 0
  %62 = vmatpush.bf16.msra.mxu0 0
  %63 = vmatpush.bf16.msra.mxu0 0
  %64 = vmatpush.bf16.msra.mxu0 0
  %65 = vmatpush.bf16.msra.mxu0 0
  %66 = vmatpush.bf16.msra.mxu0 0
  %67 = vmatpush.bf16.msra.mxu0 %v54
  %68 = vmatpush.bf16.msra.mxu0 %v53
  %69 = vmatmul.bf16.gmra.mxu0 %v59
  %v70 = vpop.f32.mrf.mxu0
  %v71 = vadd.f32 %v43, %v70
  %v72 = vpop.f32.mrf.mxu0
  %v73 = vadd.f32 %v43, %v72
  %74 = vdwg.mxu0
  %v75 = vmax.f32 %v71, 0.0
  %v76 = vmax.f32 %v73, 0.0
  %v77 = vld [vmem:[#allocation2] sm:$0xff]
  %v78 = vld [vmem:[#allocation2 + $0x8] sm:$0xff]
  %v79 = vpack.c.bf16 %v76, %v75
  %v80 = vld [vmem:[%s3] sm:$0xf]
  %v81 = vld [vmem:[%s3 + $0x4] sm:$0xf]
  %v82 = vld [vmem:[%s3 + $0x8] sm:$0xf]
  %v83 = vld [vmem:[%s3 + $0xc] sm:$0xf]
  %v84 = vld [vmem:[%s3 + $0x10] sm:$0xf]
  %v85 = vld [vmem:[%s3 + $0x14] sm:$0xf]
  %v86 = vld [vmem:[%s3 + $0x18] sm:$0xf]
  %v87 = vld [vmem:[%s3 + $0x1c] sm:$0xf]
  %v96 = vunpack.c.l.b16 %v80
  %v97 = vunpack.c.l.b16 %v81
  %v98 = vunpack.c.l.b16 %v82
  %v99 = vunpack.c.l.b16 %v83
  %v100 = vunpack.c.l.b16 %v84
  %v101 = vunpack.c.l.b16 %v85
  %v102 = vunpack.c.l.b16 %v86
  %v103 = vunpack.c.l.b16 %v87
  %v104 = vpack.c.b16 %v97, %v96
  %v105 = vpack.c.b16 %v99, %v98
  %v106 = vpack.c.b16 %v101, %v100
  %v107 = vpack.c.b16 %v103, %v102
  %vm112 = vcmask 523264
  %v114 = vsel %vm112, %v79, 0
  %116 = vmatpush.bf16.msra.mxu0 0
  %117 = vmatpush.bf16.msra.mxu0 0
  %118 = vmatpush.bf16.msra.mxu0 0
  %119 = vmatpush.bf16.msra.mxu0 0
  %120 = vmatpush.bf16.msra.mxu0 %v107
  %121 = vmatpush.bf16.msra.mxu0 %v106
  %122 = vmatpush.bf16.msra.mxu0 %v105
  %123 = vmatpush.bf16.msra.mxu0 %v104
  %124 = vmatmul.bf16.gmra.mxu0 %v114
  %v125 = vpop.f32.mrf.mxu0
  %v126 = vadd.f32 0.0, %v125
  %v127 = vpop.f32.mrf.mxu0
  %v128 = vadd.f32 0.0, %v127
  %129 = vdwg.mxu0
  %v130 = vadd.f32 %v77, %v126
  %v131 = vadd.f32 %v78, %v128
  %132 = vst.msk [vmem:[#allocation2] sm:$0xff] %vm57, %v130
  %133 = vst.msk [vmem:[#allocation2 + $0x8] sm:$0xff] %vm57, %v131
  // Predicated region
  $region34: #{decoder_forward.23} parent=0 // pred_check
    %p134 = pneg %p27
  $region35: #{decoder_forward.23} parent=0 // pred_check_branch
    %136 = sbr.rel (%p134) target = $region37
  $region36: #{decoder_forward.23} parent=0 // pred_region
    %v137 = vld [vmem:[#allocation2] sm:$0xff]
    %v138 = vld [vmem:[#allocation2 + $0x8] sm:$0xff]
    %v139 = vld [vmem:[%s4] sm:$0x1]
    %v141 = vperm.slane %v139, 0
    %v143 = vadd.f32 %v137, %v141
    %v144 = vadd.f32 %v138, %v141
    %v145 = vld [vmem:[%s0] sm:$0xff]
    %v146 = vld [vmem:[%s0 + $0x8] sm:$0xff]
    %v147 = vadd.f32 %v143, %v145
    %v148 = vadd.f32 %v144, %v146
    %v149 = vsel %vm57, %v147, 0.0
    %150 = vadd.xlane.f32.xlu0 %v149
    %v151 = vpop.xlane.xlu0 %150
    %v152 = vsel %vm57, %v148, 0.0
    %153 = vadd.xlane.f32.xlu0 %v152
    %v154 = vpop.xlane.xlu0 %153
    %v155 = vrcp.pop 32.0
    %v156 = vmul.f32 32.0, %v155
    %v157 = vsub.f32 1.0, %v156
    %v158 = vmul.f32 %v155, %v157
    %v159 = vadd.f32 %v155, %v158
    %vm160 = vweird.f32 %v155
    %v161 = vsel %vm160, %v155, %v159
    %v162 = vmul.f32 %v151, %v161
    %v163 = vmul.f32 %v154, %v161
    %v164 = vsub.f32 %v147, %v162
    %v165 = vsub.f32 %v148, %v163
    %v166 = vmul.f32 %v164, %v164
    %v167 = vmul.f32 %v165, %v165
    %v168 = vsel %vm57, %v166, 0.0
    %169 = vadd.xlane.f32.xlu0 %v168
    %v170 = vpop.xlane.xlu0 %169
    %v171 = vsel %vm57, %v167, 0.0
    %172 = vadd.xlane.f32.xlu0 %v171
    %v173 = vpop.xlane.xlu0 %172
    %v174 = vmul.f32 %v170, %v161
    %v175 = vmul.f32 %v173, %v161
    %v176 = vadd.f32 %v174, 1e-05
    %v177 = vadd.f32 %v175, 1e-05
    %v178 = vrsqrt.pop %v176
    %v179 = vmul.f32 %v178, %v176
    %v180 = vmul.f32 %v179, %v178
    %v181 = vmul.f32 0.5, %v180
    %v182 = vsub.f32 1.5, %v181
    %v183 = vmul.f32 %v178, %v182
    %vm184 = vweird.f32 %v176
    %vm185 = vweird.f32 %v178
    %vm186 = vmor %vm184, %vm185
    %v187 = vsel %vm186, %v178, %v183
    %v188 = vrsqrt.pop %v177
    %v189 = vmul.f32 %v188, %v177
    %v190 = vmul.f32 %v189, %v188
    %v191 = vmul.f32 0.5, %v190
    %v192 = vsub.f32 1.5, %v191
    %v193 = vmul.f32 %v188, %v192
    %vm194 = vweird.f32 %v177
    %vm195 = vweird.f32 %v188
    %vm196 = vmor %vm194, %vm195
    %v197 = vsel %vm196, %v188, %v193
    %v198 = vmul.f32 %v164, %v187
    %v199 = vmul.f32 %v165, %v197
    %v200 = vld [vmem:[%s5] sm:$0x1]
    %v202 = vperm.slane %v200, 0
    %v204 = vmul.f32 %v198, %v202
    %v205 = vmul.f32 %v199, %v202
    %v206 = vld [vmem:[%s6] sm:$0x1]
    %v208 = vperm.slane %v206, 0
    %v210 = vadd.f32 %v204, %v208
    %v211 = vadd.f32 %v205, %v208
    %212 = vst.msk [vmem:[%s7] sm:$0xff] %vm57, %v210
    %213 = vst.msk [vmem:[%s7 + $0x8] sm:$0xff] %vm57, %v211
  $region37: #{decoder_forward.23} parent=0 // pred_fallthru
    _
  // Predicated region
  $region38: #{decoder_forward.23} parent=0 // pred_check
    _
  $region39: #{decoder_forward.23} parent=0 // pred_check_branch
    %215 = sbr.rel (0) target = $region41
  $region40: #{decoder_forward.23} parent=0 // pred_region
    _
  $region41: #{decoder_forward.23} parent=0 // pred_fallthru
    _
  // Predicated region
  $region42: #{decoder_forward.23} parent=0 // pred_check
    _
  $region43: #{decoder_forward.23} parent=0 // pred_check_branch
    %217 = sbr.rel (0) target = $region45
  $region44: #{decoder_forward.23} parent=0 // pred_region
    _
  $region45: #{decoder_forward.23} parent=0 // pred_fallthru
    _

// kernel: decoder_forward.21
$region0: #{decoder_forward.21}
  #allocation0 [shape = 'u32[]', space=smem, size = 0x4, offset = 0x4, fixed_abs, tag = 'smem constant byte address 0x4 - core index']
  #allocation1 [shape = 'u32[72,128]{1,0:T(1,128)}', space=vmem, size = 0x9000, scoped, tag = 'internal scratch']
  #allocation2 [shape = 'f32[4,8,1]{2,1,0:T(8,128)}', space=vmem, size = 0x4000, scoped, tag = 'scratch operand']
  #allocation3 [shape = 'f32[4,8,1]{2,1,0:T(8,128)}', space=vmem, size = 0x4000, scoped, tag = 'scratch operand']
  #allocation4 [shape = 'f32[4,8,8]{2,1,0:T(8,128)}', space=vmem, size = 0x4000, scoped, tag = 'scratch operand']
  %s0 = inlined_call_operand.vmem [shape: f32[2,8,32], index: 0, kind: input, shape index: {}]
  %s1 = inlined_call_operand.vmem [shape: f32[2,8,32], index: 1, kind: input, shape index: {}]
  %s2 = inlined_call_operand.vmem [shape: f32[2,8,32], index: 2, kind: input, shape index: {}]
  %s3 = inlined_call_operand.vmem [shape: f32[2,8,32], index: 3, kind: output, shape index: {}]
  %s4 = sld [smem:[#allocation0]]
  $region53: #{decoder_forward.21} parent=0
    _
  %s6 = ssub.s32 1, %s4
  %s7 = scalar_select 0, %s6, %s4
  loop: start=0, step=1, limit=4
  $region2: #{decoder_forward.21} parent=0 // loop_pre_header
    _
  $region3: #{decoder_forward.21} parent=0 // loop_header
    %s9 = sphi 0, %s13
    %p10 = scmp.ge.s32.totalorder %s9, 4
    %s16 = sphi 0, %s28
    %s17 = sphi 0, %s24
    %s18 = sphi 0, %s16
    %s19 = sphi 0, %s17
    %s20 = sphi 0, %s18
    %s21 = sphi 0, %s19
    %s31 = sphi 0, %s33
    %s34 = sphi 0, %s31
    %s35 = sphi 0, %s34
    %s51 = sphi 0, %s35
    %s59 = sphi 0, %s61
    %s62 = sphi 0, %s59
    %s63 = sphi 0, %s62
    %s79 = sphi 0, %s63
    %s87 = sphi 0, %s89
    %s90 = sphi 0, %s87
    %s91 = sphi 0, %s90
    %s107 = sphi 0, %s91
    %s113 = sphi 0, %s115
    %s116 = sphi 0, %s113
    %s117 = sphi 0, %s116
    %s133 = sphi 0, %s117
  $region4: #{decoder_forward.21} parent=0 // loop_header_branch
    %12 = sbr.rel (%p10) target = $region8
  $region5: #{decoder_forward.21} parent=0 // loop_body
    %s14 = ssub.s32 %s9, 1
    %s15 = ssub.s32 %s9, 2
    %s22 = sadd.s32 1, %s17
    %p23 = scmp.ge.s32.totalorder %s22, 1
    %s24 = scalar_select %p23, 0, %s22
    %s25 = sadd.s32 1, %s16
    %s26 = scalar_select %p23, %s25, %s16
    %p27 = scmp.ge.s32.totalorder %s26, 2
    %s28 = scalar_select %p27, 0, %s26
    %s29 = ssub.s32 %s16, %s28
    %p30 = scmp.eq.s32.totalorder %s29, 0
    %s32 = sadd.s32 %s31, 1
    %s33 = scalar_select %p30, %s31, %s32
    %p36 = pneg %p30
    %p37 = scmp.eq.s32.totalorder %s9, 1
    %p38 = por %p36, %p37
    %p39 = scmp.ne.s32.totalorder %s31, %s34
    %p40 = scmp.eq.s32.totalorder %s9, 0
    %p41 = por %p39, %p40
    %p42 = scmp.ne.s32.totalorder %s31, %s34
    %p43 = scmp.eq.s32.totalorder %s14, 1
    %p44 = por %p42, %p43
    %p45 = scmp.ne.s32.totalorder %s34, %s35
    %p46 = scmp.eq.s32.totalorder %s14, 0
    %p47 = por %p45, %p46
    %p48 = scmp.ne.s32.totalorder %s34, %s35
    %p49 = scmp.eq.s32.totalorder %s15, 1
    %p50 = por %p48, %p49
    %p52 = scmp.ne.s32.totalorder %s35, %s51
    %p53 = scmp.eq.s32.totalorder %s15, 0
    %p54 = por %p52, %p53
    %s55 = ssub.s32 %s16, %s28
    %s56 = ssub.s32 %s17, %s24
    %s57 = sor.u32 %s55, %s56
    %p58 = scmp.eq.s32.totalorder %s57, 0
    %s60 = sadd.s32 %s59, 1
    %s61 = scalar_select %p58, %s59, %s60
    %p64 = pneg %p58
    %p65 = scmp.eq.s32.totalorder %s9, 1
    %p66 = por %p64, %p65
    %p67 = scmp.ne.s32.totalorder %s59, %s62
    %p68 = scmp.eq.s32.totalorder %s9, 0
    %p69 = por %p67, %p68
    %p70 = scmp.ne.s32.totalorder %s59, %s62
    %p71 = scmp.eq.s32.totalorder %s14, 1
    %p72 = por %p70, %p71
    %p73 = scmp.ne.s32.totalorder %s62, %s63
    %p74 = scmp.eq.s32.totalorder %s14, 0
    %p75 = por %p73, %p74
    %p76 = scmp.ne.s32.totalorder %s62, %s63
    %p77 = scmp.eq.s32.totalorder %s15, 1
    %p78 = por %p76, %p77
    %p80 = scmp.ne.s32.totalorder %s63, %s79
    %p81 = scmp.eq.s32.totalorder %s15, 0
    %p82 = por %p80, %p81
    %s83 = ssub.s32 %s16, %s28
    %s84 = ssub.s32 %s17, %s24
    %s85 = sor.u32 %s83, %s84
    %p86 = scmp.eq.s32.totalorder %s85, 0
    %s88 = sadd.s32 %s87, 1
    %s89 = scalar_select %p86, %s87, %s88
    %p92 = pneg %p86
    %p93 = scmp.eq.s32.totalorder %s9, 1
    %p94 = por %p92, %p93
    %p95 = scmp.ne.s32.totalorder %s87, %s90
    %p96 = scmp.eq.s32.totalorder %s9, 0
    %p97 = por %p95, %p96
    %p98 = scmp.ne.s32.totalorder %s87, %s90
    %p99 = scmp.eq.s32.totalorder %s14, 1
    %p100 = por %p98, %p99
    %p101 = scmp.ne.s32.totalorder %s90, %s91
    %p102 = scmp.eq.s32.totalorder %s14, 0
    %p103 = por %p101, %p102
    %p104 = scmp.ne.s32.totalorder %s90, %s91
    %p105 = scmp.eq.s32.totalorder %s15, 1
    %p106 = por %p104, %p105
    %p108 = scmp.ne.s32.totalorder %s91, %s107
    %p109 = scmp.eq.s32.totalorder %s15, 0
    %p110 = por %p108, %p109
    %s111 = ssub.s32 %s16, %s28
    %p112 = scmp.eq.s32.totalorder %s111, 0
    %s114 = sadd.s32 %s113, 1
    %s115 = scalar_select %p112, %s113, %s114
    %p118 = pneg %p112
    %p119 = scmp.eq.s32.totalorder %s9, 1
    %p120 = por %p118, %p119
    %p121 = scmp.ne.s32.totalorder %s113, %s116
    %p122 = scmp.eq.s32.totalorder %s9, 0
    %p123 = por %p121, %p122
    %p124 = scmp.ne.s32.totalorder %s113, %s116
    %p125 = scmp.eq.s32.totalorder %s14, 1
    %p126 = por %p124, %p125
    %p127 = scmp.ne.s32.totalorder %s116, %s117
    %p128 = scmp.eq.s32.totalorder %s14, 0
    %p129 = por %p127, %p128
    %p130 = scmp.ne.s32.totalorder %s116, %s117
    %p131 = scmp.eq.s32.totalorder %s15, 1
    %p132 = por %p130, %p131
    %p134 = scmp.ne.s32.totalorder %s117, %s133
    %p135 = scmp.eq.s32.totalorder %s15, 0
    %p136 = por %p134, %p135
    %p137 = scmp.le.s32.totalorder 1, %s9
    %p138 = scmp.lt.s32.totalorder %s9, 3
    %p139 = pnand %p137, %p138
    %p140 = pneg %p139
    // Predicated region
    $region9: #{decoder_forward.21} parent=5 // pred_check
      _
    $region10: #{decoder_forward.21} parent=5 // pred_check_branch
      %142 = sbr.rel (%p139) target = $region12
    $region11: #{decoder_forward.21} parent=5 // pred_region
      %s143 = ssub.s32 %s9, 1
    $region12: #{decoder_forward.21} parent=5 // pred_fallthru
      _
    %p144 = scmp.lt.s32.totalorder %s9, 2
    // Predicated region
    $region13: #{decoder_forward.21} parent=5 // pred_check
      %p145 = pneg %p144
    $region14: #{decoder_forward.21} parent=5 // pred_check_branch
      %147 = sbr.rel (%p145) target = $region16
    $region15: #{decoder_forward.21} parent=5 // pred_region
      // Predicated region
      $region17: #{decoder_forward.21} parent=15 // pred_check
        %p148 = pneg %p41
      $region18: #{decoder_forward.21} parent=15 // pred_check_branch
        %150 = sbr.rel (%p148) target = $region20
      $region19: #{decoder_forward.21} parent=15 // pred_region
        %p151 = scmp.lt.s32.totalorder %s16, 1
        %s152 = scalar_select %p151, %s16, 1
        %s153 = smul.addr %s152, 8
        %s154 = scalar_lea.vmem %s0, %s153
      $region20: #{decoder_forward.21} parent=15 // pred_fallthru
        _
      // Predicated region
      $region21: #{decoder_forward.21} parent=15 // pred_check
        %p155 = pneg %p69
      $region22: #{decoder_forward.21} parent=15 // pred_check_branch
        %157 = sbr.rel (%p155) target = $region24
      $region23: #{decoder_forward.21} parent=15 // pred_region
        %p158 = scmp.lt.s32.totalorder %s16, 1
        %s159 = scalar_select %p158, %s16, 1
        %p160 = scmp.lt.s32.totalorder %s17, 0
        %s161 = scalar_select %p160, %s17, 0
        %s162 = sadd.s32 %s161, %s159
        %s163 = smul.addr %s162, 8
        %s164 = scalar_lea.vmem %s1, %s163
      $region24: #{decoder_forward.21} parent=15 // pred_fallthru
        _
      // Predicated region
      $region25: #{decoder_forward.21} parent=15 // pred_check
        %p165 = pneg %p97
      $region26: #{decoder_forward.21} parent=15 // pred_check_branch
        %167 = sbr.rel (%p165) target = $region28
      $region27: #{decoder_forward.21} parent=15 // pred_region
        %p168 = scmp.lt.s32.totalorder %s16, 1
        %s169 = scalar_select %p168, %s16, 1
        %p170 = scmp.lt.s32.totalorder %s17, 0
        %s171 = scalar_select %p170, %s17, 0
        %s172 = sadd.s32 %s171, %s169
        %s173 = smul.addr %s172, 8
        %s174 = scalar_lea.vmem %s2, %s173
      $region28: #{decoder_forward.21} parent=15 // pred_fallthru
        _
    $region16: #{decoder_forward.21} parent=5 // pred_fallthru
      _
    %p175 = scmp.le.s32.totalorder 1, %s9
    %p176 = scmp.lt.s32.totalorder %s9, 3
    %p177 = pnand %p175, %p176
    %p178 = pneg %p177
    // Predicated region
    $region29: #{decoder_forward.21} parent=5 // pred_check
      _
    $region30: #{decoder_forward.21} parent=5 // pred_check_branch
      %180 = sbr.rel (%p177) target = $region32
    $region31: #{decoder_forward.21} parent=5 // pred_region
      %s181 = ssub.s32 %s9, 1
      %p182 = scmp.lt.s32.totalorder %s18, 1
      %s183 = scalar_select %p182, %s18, 1
      %s184 = smul.addr %s183, 8
      %s185 = scalar_lea.vmem %s0, %s184
      %p186 = pneg %p47
      %p187 = pneg %p44
      %p188 = scmp.lt.s32.totalorder %s18, 1
      %s189 = scalar_select %p188, %s18, 1
      %p190 = scmp.lt.s32.totalorder %s19, 0
      %s191 = scalar_select %p190, %s19, 0
      %s192 = sadd.s32 %s191, %s189
      %s193 = smul.addr %s192, 8
      %s194 = scalar_lea.vmem %s1, %s193
      %p195 = pneg %p75
      %p196 = pneg %p72
      %p197 = scmp.lt.s32.totalorder %s18, 1
      %s198 = scalar_select %p197, %s18, 1
      %p199 = scmp.lt.s32.totalorder %s19, 0
      %s200 = scalar_select %p199, %s19, 0
      %s201 = sadd.s32 %s200, %s198
      %s202 = smul.addr %s201, 8
      %s203 = scalar_lea.vmem %s2, %s202
      %p204 = pneg %p103
      %p205 = pneg %p100
      %p206 = pneg %p129
      %p207 = pneg %p126
      %p208 = scmp.lt.s32.totalorder %s18, 1
      %s209 = scalar_select %p208, %s18, 1
      %s210 = smul.addr %s209, 8
      %s211 = scalar_lea.vmem %s3, %s210
      %p212 = scmp.lt.s32.totalorder %s18, 1
      %s213 = scalar_select %p212, %s18, 1
      %s214 = smul.addr %s213, 8
      %s215 = scalar_lea.vmem %s0, %s214
      %p216 = scmp.lt.s32.totalorder %s18, 1
      %s217 = scalar_select %p216, %s18, 1
      %p218 = scmp.lt.s32.totalorder %s19, 0
      %s219 = scalar_select %p218, %s19, 0
      %s220 = sadd.s32 %s219, %s217
      %s221 = smul.addr %s220, 8
      %s222 = scalar_lea.vmem %s1, %s221
      %p223 = scmp.lt.s32.totalorder %s18, 1
      %s224 = scalar_select %p223, %s18, 1
      %p225 = scmp.lt.s32.totalorder %s19, 0
      %s226 = scalar_select %p225, %s19, 0
      %s227 = sadd.s32 %s226, %s224
      %s228 = smul.addr %s227, 8
      %s229 = scalar_lea.vmem %s2, %s228
      %p230 = scmp.lt.s32.totalorder %s18, 1
      %s231 = scalar_select %p230, %s18, 1
      %s232 = smul.addr %s231, 8
      %s233 = scalar_lea.vmem %s3, %s232
      %p235 = scmp.eq.s32.totalorder %s19, 0
      // Predicated region
      $region33: #{decoder_forward.21} parent=31 // pred_check
        %p236 = pneg %p235
      $region34: #{decoder_forward.21} parent=31 // pred_check_branch
        %238 = sbr.rel (%p236) target = $region36
      $region35: #{decoder_forward.21} parent=31 // pred_region
        %vm239 = vcmask 7168
        %240 = vst.msk [vmem:[#allocation2] sm:$0xff] %vm239, -inf
        %241 = vst.msk [vmem:[#allocation2 + $0x8] sm:$0xff] %vm239, -inf
        %242 = vst.msk [vmem:[#allocation2 + $0x10] sm:$0xff] %vm239, -inf
        %243 = vst.msk [vmem:[#allocation2 + $0x18] sm:$0xff] %vm239, -inf
        %244 = vst.msk [vmem:[#allocation3] sm:$0xff] %vm239, 0.0
        %245 = vst.msk [vmem:[#allocation3 + $0x8] sm:$0xff] %vm239, 0.0
        %246 = vst.msk [vmem:[#allocation3 + $0x10] sm:$0xff] %vm239, 0.0
        %247 = vst.msk [vmem:[#allocation3 + $0x18] sm:$0xff] %vm239, 0.0
        %vm248 = vcmask 64512
        %249 = vst.msk [vmem:[#allocation4] sm:$0xff] %vm248, 0.0
        %250 = vst.msk [vmem:[#allocation4 + $0x8] sm:$0xff] %vm248, 0.0
        %251 = vst.msk [vmem:[#allocation4 + $0x10] sm:$0xff] %vm248, 0.0
        %252 = vst.msk [vmem:[#allocation4 + $0x18] sm:$0xff] %vm248, 0.0
      $region36: #{decoder_forward.21} parent=31 // pred_fallthru
        _
      %v253 = vld [vmem:[%s215] sm:$0xff]
      %v254 = vpack.c.bf16 %v253, %v253
      %v255 = vld [vmem:[%s222] sm:$0xff]
      %v256 = vpack.c.bf16 %v255, %v255
      %v257 = vld [vmem:[%s229] sm:$0xff]
      %v258 = vpack.c.bf16 %v257, %v257
      %vm259 = vcmask 64512
      %v261 = vsel %vm259, %v254, 0
      %v264 = vsel %vm259, %v256, 0
      %266 = vmatpush.bf16.xpose.msra.mxu0 0
      %267 = vmatpush.bf16.xpose.msra.mxu0 0
      %268 = vmatpush.bf16.xpose.msra.mxu0 0
      %269 = vmatpush.bf16.xpose.msra.mxu0 0
      %270 = vmatpush.bf16.xpose.msra.mxu0 0
      %271 = vmatpush.bf16.xpose.msra.mxu0 0
      %272 = vmatpush.bf16.xpose.msra.mxu0 0
      %273 = vmatpush.bf16.xpose.msra.mxu0 %v264
      %274 = vmatmul.bf16.gmra.mxu0 %v261
      %v275 = vpop.f32.mrf.mxu0
      %v276 = vadd.f32 0.0, %v275
      %v277 = vpop.f32.mrf.mxu0
      %278 = vdwg.mxu0
      %v279 = vmul.f32 %v276, 0.35355338
      %v280 = vld [vmem:[#allocation2] sm:$0xff]
      %v281 = vsel %vm259, %v279, -inf
      %282 = vmax.xlane.f32.xlu0 %v281
      %v283 = vpop.xlane.xlu0 %282
      %v284 = vmax.f32 %v280, %v283
      %v285 = vsub.f32 %v280, %v284
      %v286 = vmul.f32 %v285, 1.442695
      %v287 = vpow.pop %v286
      %289 = vset.pattern.permute.xlu0 0
      %290 = vperm.xlu0 %289, %v284
      %v291 = vpop.permute.xlu0 %290
      %v293 = vsub.f32 %v279, %v291
      %v294 = vmul.f32 %v293, 1.442695
      %v295 = vpow.pop %v294
      %v296 = vld [vmem:[#allocation3] sm:$0xff]
      %v297 = vmul.f32 %v287, %v296
      %v298 = vsel %vm259, %v295, 0.0
      %299 = vadd.xlane.f32.xlu0 %v298
      %v300 = vpop.xlane.xlu0 %299
      %v301 = vadd.f32 %v297, %v300
      %vm302 = vcmask 7168
      %303 = vst.msk [vmem:[#allocation3] sm:$0xff] %vm302, %v301
      %v304 = vld [vmem:[#allocation4] sm:$0xff]
      %306 = vset.pattern.permute.xlu0 0
      %307 = vperm.xlu0 %306, %v287
      %v308 = vpop.permute.xlu0 %307
      %v310 = vmul.f32 %v308, %v304
      %v311 = vpack.c.bf16 %v295, %v295
      %v313 = vsel %vm259, %v311, 0
      %vm315 = vcmask 1043456
      %v317 = vsel %vm315, %v258, 0
      %319 = vmatpush.bf16.msra.mxu0 0
      %320 = vmatpush.bf16.msra.mxu0 0
      %321 = vmatpush.bf16.msra.mxu0 0
      %322 = vmatpush.bf16.msra.mxu0 0
      %323 = vmatpush.bf16.msra.mxu0 0
      %324 = vmatpush.bf16.msra.mxu0 0
      %325 = vmatpush.bf16.msra.mxu0 0
      %326 = vmatpush.bf16.msra.mxu0 %v317
      %327 = vmatmul.bf16.gmra.mxu0 %v313
      %v328 = vpop.f32.mrf.mxu0
      %v329 = vadd.f32 0.0, %v328
      %v330 = vpop.f32.mrf.mxu0
      %331 = vdwg.mxu0
      %v332 = vadd.f32 %v310, %v329
      %333 = vst.msk [vmem:[#allocation4] sm:$0xff] %vm259, %v332
      %334 = vst.msk [vmem:[#allocation2] sm:$0xff] %vm302, %v284
      %v335 = vld [vmem:[%s215] sm:$0xff]
      %v336 = vpack.c.bf16 %v335, %v335
      %v337 = vld [vmem:[%s222] sm:$0xff]
      %v338 = vpack.c.bf16 %v337, %v337
      %v339 = vld [vmem:[%s229] sm:$0xff]
      %v340 = vpack.c.bf16 %v339, %v339
      %342 = vrot.lane.b32.xlu0 %v336, 120
      %v343 = vpop.permute.xlu0 %342
      %345 = vrot.lane.b32.xlu0 %v338, 120
      %v346 = vpop.permute.xlu0 %345
      %v348 = vsel %vm259, %v343, 0
      %v351 = vsel %vm259, %v346, 0
      %353 = vmatpush.bf16.xpose.msra.mxu0 0
      %354 = vmatpush.bf16.xpose.msra.mxu0 0
      %355 = vmatpush.bf16.xpose.msra.mxu0 0
      %356 = vmatpush.bf16.xpose.msra.mxu0 0
      %357 = vmatpush.bf16.xpose.msra.mxu0 0
      %358 = vmatpush.bf16.xpose.msra.mxu0 0
      %359 = vmatpush.bf16.xpose.msra.mxu0 0
      %360 = vmatpush.bf16.xpose.msra.mxu0 %v351
      %361 = vmatmul.bf16.gmra.mxu0 %v348
      %v362 = vpop.f32.mrf.mxu0
      %v363 = vadd.f32 0.0, %v362
      %v364 = vpop.f32.mrf.mxu0
      %365 = vdwg.mxu0
      %v366 = vmul.f32 %v363, 0.35355338
      %s367 = scalar_lea.vmem [#allocation2], 8
      %v368 = vld [vmem:[%s367] sm:$0xff]
      %v369 = vsel %vm259, %v366, -inf
      %370 = vmax.xlane.f32.xlu0 %v369
      %v371 = vpop.xlane.xlu0 %370
      %v372 = vmax.f32 %v368, %v371
      %v373 = vsub.f32 %v368, %v372
      %v374 = vmul.f32 %v373, 1.442695
      %v375 = vpow.pop %v374
      %377 = vset.pattern.permute.xlu0 0
      %378 = vperm.xlu0 %377, %v372
      %v379 = vpop.permute.xlu0 %378
      %v381 = vsub.f32 %v366, %v379
      %v382 = vmul.f32 %v381, 1.442695
      %v383 = vpow.pop %v382
      %s384 = scalar_lea.vmem [#allocation3], 8
      %v385 = vld [vmem:[%s384] sm:$0xff]
      %v386 = vmul.f32 %v375, %v385
      %v387 = vsel %vm259, %v383, 0.0
      %388 = vadd.xlane.f32.xlu0 %v387
      %v389 = vpop.xlane.xlu0 %388
      %v390 = vadd.f32 %v386, %v389
      %391 = vst.msk [vmem:[%s384] sm:$0xff] %vm302, %v390
      %s392 = scalar_lea.vmem [#allocation4], 8
      %v393 = vld [vmem:[%s392] sm:$0xff]
      %395 = vset.pattern.permute.xlu0 0
      %396 = vperm.xlu0 %395, %v375
      %v397 = vpop.permute.xlu0 %396
      %v399 = vmul.f32 %v397, %v393
      %v400 = vpack.c.bf16 %v383, %v383
      %402 = vrot.lane.b32.xlu0 %v340, 120
      %v403 = vpop.permute.xlu0 %402
      %v405 = vsel %vm259, %v400, 0
      %v408 = vsel %vm315, %v403, 0
      %410 = vmatpush.bf16.msra.mxu0 0
      %411 = vmatpush.bf16.msra.mxu0 0
      %412 = vmatpush.bf16.msra.mxu0 0
      %413 = vmatpush.bf16.msra.mxu0 0
      %414 = vmatpush.bf16.msra.mxu0 0
      %415 = vmatpush.bf16.msra.mxu0 0
      %416 = vmatpush.bf16.msra.mxu0 0
      %417 = vmatpush.bf16.msra.mxu0 %v408
      %418 = vmatmul.bf16.gmra.mxu0 %v405
      %v419 = vpop.f32.mrf.mxu0
      %v420 = vadd.f32 0.0, %v419
      %v421 = vpop.f32.mrf.mxu0
      %422 = vdwg.mxu0
      %v423 = vadd.f32 %v399, %v420
      %424 = vst.msk [vmem:[%s392] sm:$0xff] %vm259, %v423
      %425 = vst.msk [vmem:[%s367] sm:$0xff] %vm302, %v372
      %v426 = vld [vmem:[%s215] sm:$0xff]
      %v427 = vpack.c.bf16 %v426, %v426
      %v428 = vld [vmem:[%s222] sm:$0xff]
      %v429 = vpack.c.bf16 %v428, %v428
      %v430 = vld [vmem:[%s229] sm:$0xff]
      %v431 = vpack.c.bf16 %v430, %v430
      %433 = vrot.lane.b32.xlu0 %v427, 112
      %v434 = vpop.permute.xlu0 %433
      %436 = vrot.lane.b32.xlu0 %v429, 112
      %v437 = vpop.permute.xlu0 %436
      %v439 = vsel %vm259, %v434, 0
      %v442 = vsel %vm259, %v437, 0
      %444 = vmatpush.bf16.xpose.msra.mxu0 0
      %445 = vmatpush.bf16.xpose.msra.mxu0 0
      %446 = vmatpush.bf16.xpose.msra.mxu0 0
      %447 = vmatpush.bf16.xpose.msra.mxu0 0
      %448 = vmatpush.bf16.xpose.msra.mxu0 0
      %449 = vmatpush.bf16.xpose.msra.mxu0 0
      %450 = vmatpush.bf16.xpose.msra.mxu0 0
      %451 = vmatpush.bf16.xpose.msra.mxu0 %v442
      %452 = vmatmul.bf16.gmra.mxu0 %v439
      %v453 = vpop.f32.mrf.mxu0
      %v454 = vadd.f32 0.0, %v453
      %v455 = vpop.f32.mrf.mxu0
      %456 = vdwg.mxu0
      %v457 = vmul.f32 %v454, 0.35355338
      %s458 = scalar_lea.vmem [#allocation2], 16
      %v459 = vld [vmem:[%s458] sm:$0xff]
      %v460 = vsel %vm259, %v457, -inf
      %461 = vmax.xlane.f32.xlu0 %v460
      %v462 = vpop.xlane.xlu0 %461
      %v463 = vmax.f32 %v459, %v462
      %v464 = vsub.f32 %v459, %v463
      %v465 = vmul.f32 %v464, 1.442695
      %v466 = vpow.pop %v465
      %468 = vset.pattern.permute.xlu0 0
      %469 = vperm.xlu0 %468, %v463
      %v470 = vpop.permute.xlu0 %469
      %v472 = vsub.f32 %v457, %v470
      %v473 = vmul.f32 %v472, 1.442695
      %v474 = vpow.pop %v473
      %s475 = scalar_lea.vmem [#allocation3], 16
      %v476 = vld [vmem:[%s475] sm:$0xff]
      %v477 = vmul.f32 %v466, %v476
      %v478 = vsel %vm259, %v474, 0.0
      %479 = vadd.xlane.f32.xlu0 %v478
      %v480 = vpop.xlane.xlu0 %479
      %v481 = vadd.f32 %v477, %v480
      %482 = vst.msk [vmem:[%s475] sm:$0xff] %vm302, %v481
      %s483 = scalar_lea.vmem [#allocation4], 16
      %v484 = vld [vmem:[%s483] sm:$0xff]
      %486 = vset.pattern.permute.xlu0 0
      %487 = vperm.xlu0 %486, %v466
      %v488 = vpop.permute.xlu0 %487
      %v490 = vmul.f32 %v488, %v484
      %v491 = vpack.c.bf16 %v474, %v474
      %493 = vrot.lane.b32.xlu0 %v431, 112
      %v494 = vpop.permute.xlu0 %493
      %v496 = vsel %vm259, %v491, 0
      %v499 = vsel %vm315, %v494, 0
      %501 = vmatpush.bf16.msra.mxu0 0
      %502 = vmatpush.bf16.msra.mxu0 0
      %503 = vmatpush.bf16.msra.mxu0 0
      %504 = vmatpush.bf16.msra.mxu0 0
      %505 = vmatpush.bf16.msra.mxu0 0
      %506 = vmatpush.bf16.msra.mxu0 0
      %507 = vmatpush.bf16.msra.mxu0 0
      %508 = vmatpush.bf16.msra.mxu0 %v499
      %509 = vmatmul.bf16.gmra.mxu0 %v496
      %v510 = vpop.f32.mrf.mxu0
      %v511 = vadd.f32 0.0, %v510
      %v512 = vpop.f32.mrf.mxu0
      %513 = vdwg.mxu0
      %v514 = vadd.f32 %v490, %v511
      %515 = vst.msk [vmem:[%s483] sm:$0xff] %vm259, %v514
      %516 = vst.msk [vmem:[%s458] sm:$0xff] %vm302, %v463
      %v517 = vld [vmem:[%s215] sm:$0xff]
      %v518 = vpack.c.bf16 %v517, %v517
      %v519 = vld [vmem:[%s222] sm:$0xff]
      %v520 = vpack.c.bf16 %v519, %v519
      %v521 = vld [vmem:[%s229] sm:$0xff]
      %v522 = vpack.c.bf16 %v521, %v521
      %524 = vrot.lane.b32.xlu0 %v518, 104
      %v525 = vpop.permute.xlu0 %524
      %527 = vrot.lane.b32.xlu0 %v520, 104
      %v528 = vpop.permute.xlu0 %527
      %v530 = vsel %vm259, %v525, 0
      %v533 = vsel %vm259, %v528, 0
      %535 = vmatpush.bf16.xpose.msra.mxu0 0
      %536 = vmatpush.bf16.xpose.msra.mxu0 0
      %537 = vmatpush.bf16.xpose.msra.mxu0 0
      %538 = vmatpush.bf16.xpose.msra.mxu0 0
      %539 = vmatpush.bf16.xpose.msra.mxu0 0
      %540 = vmatpush.bf16.xpose.msra.mxu0 0
      %541 = vmatpush.bf16.xpose.msra.mxu0 0
      %542 = vmatpush.bf16.xpose.msra.mxu0 %v533
      %543 = vmatmul.bf16.gmra.mxu0 %v530
      %v544 = vpop.f32.mrf.mxu0
      %v545 = vadd.f32 0.0, %v544
      %v546 = vpop.f32.mrf.mxu0
      %547 = vdwg.mxu0
      %v548 = vmul.f32 %v545, 0.35355338
      %s549 = scalar_lea.vmem [#allocation2], 24
      %v550 = vld [vmem:[%s549] sm:$0xff]
      %v551 = vsel %vm259, %v548, -inf
      %552 = vmax.xlane.f32.xlu0 %v551
      %v553 = vpop.xlane.xlu0 %552
      %v554 = vmax.f32 %v550, %v553
      %v555 = vsub.f32 %v550, %v554
      %v556 = vmul.f32 %v555, 1.442695
      %v557 = vpow.pop %v556
      %559 = vset.pattern.permute.xlu0 0
      %560 = vperm.xlu0 %559, %v554
      %v561 = vpop.permute.xlu0 %560
      %v563 = vsub.f32 %v548, %v561
      %v564 = vmul.f32 %v563, 1.442695
      %v565 = vpow.pop %v564
      %s566 = scalar_lea.vmem [#allocation3], 24
      %v567 = vld [vmem:[%s566] sm:$0xff]
      %v568 = vmul.f32 %v557, %v567
      %v569 = vsel %vm259, %v565, 0.0
      %570 = vadd.xlane.f32.xlu0 %v569
      %v571 = vpop.xlane.xlu0 %570
      %v572 = vadd.f32 %v568, %v571
      %573 = vst.msk [vmem:[%s566] sm:$0xff] %vm302, %v572
      %s574 = scalar_lea.vmem [#allocation4], 24
      %v575 = vld [vmem:[%s574] sm:$0xff]
      %577 = vset.pattern.permute.xlu0 0
      %578 = vperm.xlu0 %577, %v557
      %v579 = vpop.permute.xlu0 %578
      %v581 = vmul.f32 %v579, %v575
      %v582 = vpack.c.bf16 %v565, %v565
      %584 = vrot.lane.b32.xlu0 %v522, 104
      %v585 = vpop.permute.xlu0 %584
      %v587 = vsel %vm259, %v582, 0
      %v590 = vsel %vm315, %v585, 0
      %592 = vmatpush.bf16.msra.mxu0 0
      %593 = vmatpush.bf16.msra.mxu0 0
      %594 = vmatpush.bf16.msra.mxu0 0
      %595 = vmatpush.bf16.msra.mxu0 0
      %596 = vmatpush.bf16.msra.mxu0 0
      %597 = vmatpush.bf16.msra.mxu0 0
      %598 = vmatpush.bf16.msra.mxu0 0
      %599 = vmatpush.bf16.msra.mxu0 %v590
      %600 = vmatmul.bf16.gmra.mxu0 %v587
      %v601 = vpop.f32.mrf.mxu0
      %v602 = vadd.f32 0.0, %v601
      %v603 = vpop.f32.mrf.mxu0
      %604 = vdwg.mxu0
      %v605 = vadd.f32 %v581, %v602
      %606 = vst.msk [vmem:[%s574] sm:$0xff] %vm259, %v605
      %607 = vst.msk [vmem:[%s549] sm:$0xff] %vm302, %v554
      // Predicated region
      $region37: #{decoder_forward.21} parent=31 // pred_check
        %p608 = pneg %p235
      $region38: #{decoder_forward.21} parent=31 // pred_check_branch
        %610 = sbr.rel (%p608) target = $region40
      $region39: #{decoder_forward.21} parent=31 // pred_region
        %v611 = vld [vmem:[#allocation3] sm:$0xff]
        %v612 = vrcp.pop %v611
        %v613 = vld [vmem:[#allocation4] sm:$0xff]
        %615 = vset.pattern.permute.xlu0 0
        %616 = vperm.xlu0 %615, %v612
        %v617 = vpop.permute.xlu0 %616
        %v619 = vmul.f32 %v613, %v617
        %620 = vst.msk [vmem:[%s233] sm:$0xff] %vm259, %v619
        %v621 = vld [vmem:[%s384] sm:$0xff]
        %v622 = vrcp.pop %v621
        %v623 = vld [vmem:[%s392] sm:$0xff]
        %625 = vset.pattern.permute.xlu0 0
        %626 = vperm.xlu0 %625, %v622
        %v627 = vpop.permute.xlu0 %626
        %v629 = vmul.f32 %v623, %v627
        %631 = vrot.lane.b32.xlu0 %v629, 8
        %v632 = vpop.permute.xlu0 %631
        %vm634 = vcmask 130112
        %635 = vst.msk [vmem:[%s233] sm:$0xff] %vm634, %v632
        %v636 = vld [vmem:[%s475] sm:$0xff]
        %v637 = vrcp.pop %v636
        %v638 = vld [vmem:[%s483] sm:$0xff]
        %640 = vset.pattern.permute.xlu0 0
        %641 = vperm.xlu0 %640, %v637
        %v642 = vpop.permute.xlu0 %641
        %v644 = vmul.f32 %v638, %v642
        %646 = vrot.lane.b32.xlu0 %v644, 16
        %v647 = vpop.permute.xlu0 %646
        %vm649 = vcmask 195712
        %650 = vst.msk [vmem:[%s233] sm:$0xff] %vm649, %v647
        %v651 = vld [vmem:[%s566] sm:$0xff]
        %v652 = vrcp.pop %v651
        %v653 = vld [vmem:[%s574] sm:$0xff]
        %655 = vset.pattern.permute.xlu0 0
        %656 = vperm.xlu0 %655, %v652
        %v657 = vpop.permute.xlu0 %656
        %v659 = vmul.f32 %v653, %v657
        %661 = vrot.lane.b32.xlu0 %v659, 24
        %v662 = vpop.permute.xlu0 %661
        %vm664 = vcmask 261312
        %665 = vst.msk [vmem:[%s233] sm:$0xff] %vm664, %v662
      $region40: #{decoder_forward.21} parent=31 // pred_fallthru
        _
      %p666 = scmp.lt.s32.totalorder %s18, 1
      %s667 = scalar_select %p666, %s18, 1
      %s668 = smul.addr %s667, 8
      %s669 = scalar_lea.vmem %s3, %s668
      // Predicated region
      $region41: #{decoder_forward.21} parent=31 // pred_check
        %p670 = pneg %p126
      $region42: #{decoder_forward.21} parent=31 // pred_check_branch
        %672 = sbr.rel (%p670) target = $region44
      $region43: #{decoder_forward.21} parent=31 // pred_region
        _
      $region44: #{decoder_forward.21} parent=31 // pred_fallthru
        _
    $region32: #{decoder_forward.21} parent=5 // pred_fallthru
      _
    %p673 = scmp.le.s32.totalorder 2, %s9
    // Predicated region
    $region45: #{decoder_forward.21} parent=5 // pred_check
      %p674 = pneg %p673
    $region46: #{decoder_forward.21} parent=5 // pred_check_branch
      %676 = sbr.rel (%p674) target = $region48
    $region47: #{decoder_forward.21} parent=5 // pred_region
      %s677 = ssub.s32 %s9, 2
      // Predicated region
      $region49: #{decoder_forward.21} parent=47 // pred_check
        %p678 = pneg %p132
      $region50: #{decoder_forward.21} parent=47 // pred_check_branch
        %680 = sbr.rel (%p678) target = $region52
      $region51: #{decoder_forward.21} parent=47 // pred_region
        %p681 = scmp.lt.s32.totalorder %s20, 1
        %s682 = scalar_select %p681, %s20, 1
        %s683 = smul.addr %s682, 8
        %s684 = scalar_lea.vmem %s3, %s683
      $region52: #{decoder_forward.21} parent=47 // pred_fallthru
        _
    $region48: #{decoder_forward.21} parent=5 // pred_fallthru
      _
  $region6: #{decoder_forward.21} parent=0 // loop_footer
    %s13 = sadd.s32 1, %s9
  $region7: #{decoder_forward.21} parent=0 // loop_footer_branch
    %8 = sbr.rel target = $region3
  $region8: #{decoder_forward.21} parent=0 // loop_exit
    _

// kernel: decoder_forward.31
$region0: #{decoder_forward.31}
  #allocation0 [shape = 'u32[]', space=smem, size = 0x4, offset = 0x4, fixed_abs, tag = 'smem constant byte address 0x4 - core index']
  #allocation1 [shape = 'u32[72,128]{1,0:T(1,128)}', space=vmem, size = 0x9000, scoped, tag = 'internal scratch']
  #allocation2 [shape = 'f32[16,32]{1,0:T(8,128)}', space=vmem, size = 0x2000, scoped, tag = 'scratch operand']
  %s0 = inlined_call_operand.vmem [shape: f32[16,32], index: 0, kind: input, shape index: {}]
  %s1 = inlined_call_operand.vmem [shape: bf16[32,64], index: 1, kind: input, shape index: {}]
  %s2 = inlined_call_operand.vmem [shape: f32[1,64], index: 2, kind: input, shape index: {}]
  %s3 = inlined_call_operand.vmem [shape: bf16[64,32], index: 3, kind: input, shape index: {}]
  %s4 = inlined_call_operand.vmem [shape: f32[1,32], index: 4, kind: input, shape index: {}]
  %s5 = inlined_call_operand.vmem [shape: f32[1,32], index: 5, kind: input, shape index: {}]
  %s6 = inlined_call_operand.vmem [shape: f32[1,32], index: 6, kind: input, shape index: {}]
  %s7 = inlined_call_operand.hbm [shape: f32[16,32], index: 7, kind: output, shape index: {}]
  %s8 = sld [smem:[#allocation0]]
  $region46: #{decoder_forward.31} parent=0
    _
  %s10 = ssub.s32 1, %s8
  %s11 = scalar_select 0, %s10, %s8
  $region1: #{decoder_forward.31} parent=0
    #allocation3 [shape = 'u8[8192]{0}', space=vmem, size = 0x2000, scoped, tag = 'output window, operand 0, single buffered']
    #allocation4 [shape = 's32[1]{0}', space=sflag, size = 0x4, scoped, tag = 'scoped memory for decoder_forward.31']
    %12 = vsyncpa [#allocation4], 0
    // Predicated region
    $region2: #{decoder_forward.31} parent=1 // pred_check
      _
    $region3: #{decoder_forward.31} parent=1 // pred_check_branch
      %14 = sbr.rel (0) target = $region5
    $region4: #{decoder_forward.31} parent=1 // pred_region
      _
    $region5: #{decoder_forward.31} parent=1 // pred_fallthru
      _
    // Predicated region
    $region6: #{decoder_forward.31} parent=1 // pred_check
      _
    $region7: #{decoder_forward.31} parent=1 // pred_check_branch
      %16 = sbr.rel (0) target = $region9
    $region8: #{decoder_forward.31} parent=1 // pred_region
      _
    $region9: #{decoder_forward.31} parent=1 // pred_fallthru
      _
    // Predicated region
    $region10: #{decoder_forward.31} parent=1 // pred_check
      _
    $region11: #{decoder_forward.31} parent=1 // pred_check_branch
      %18 = sbr.rel (0) target = $region13
    $region12: #{decoder_forward.31} parent=1 // pred_region
      _
    $region13: #{decoder_forward.31} parent=1 // pred_fallthru
      _
    // Predicated region
    $region14: #{decoder_forward.31} parent=1 // pred_check
      _
    $region15: #{decoder_forward.31} parent=1 // pred_check_branch
      %20 = sbr.rel (0) target = $region17
    $region16: #{decoder_forward.31} parent=1 // pred_region
      _
    $region17: #{decoder_forward.31} parent=1 // pred_fallthru
      _
    // Predicated region
    $region18: #{decoder_forward.31} parent=1 // pred_check
      _
    $region19: #{decoder_forward.31} parent=1 // pred_check_branch
      %22 = sbr.rel (0) target = $region21
    $region20: #{decoder_forward.31} parent=1 // pred_region
      _
    $region21: #{decoder_forward.31} parent=1 // pred_fallthru
      _
    // Predicated region
    $region22: #{decoder_forward.31} parent=1 // pred_check
      _
    $region23: #{decoder_forward.31} parent=1 // pred_check_branch
      %24 = sbr.rel (0) target = $region25
    $region24: #{decoder_forward.31} parent=1 // pred_region
      _
    $region25: #{decoder_forward.31} parent=1 // pred_fallthru
      _
    // Predicated region
    $region26: #{decoder_forward.31} parent=1 // pred_check
      _
    $region27: #{decoder_forward.31} parent=1 // pred_check_branch
      %26 = sbr.rel (0) target = $region29
    $region28: #{decoder_forward.31} parent=1 // pred_region
      _
    $region29: #{decoder_forward.31} parent=1 // pred_fallthru
      _
    %p28 = scmp.eq.s32.totalorder 0, 0
    // Predicated region
    $region30: #{decoder_forward.31} parent=1 // pred_check
      %p29 = pneg %p28
    $region31: #{decoder_forward.31} parent=1 // pred_check_branch
      %31 = sbr.rel (%p29) target = $region33
    $region32: #{decoder_forward.31} parent=1 // pred_region
      %vm32 = vcmask 261120
      %33 = vst.msk [vmem:[#allocation2] sm:$0xff] %vm32, 0.0
      %34 = vst.msk [vmem:[#allocation2 + $0x8] sm:$0xff] %vm32, 0.0
    $region33: #{decoder_forward.31} parent=1 // pred_fallthru
      _
    %v35 = vld [vmem:[%s0] sm:$0xff]
    %v36 = vld [vmem:[%s0 + $0x8] sm:$0xff]
    %v37 = vpack.c.bf16 %v36, %v35
    %v38 = vld [vmem:[%s1] sm:$0xf]
    %v39 = vld [vmem:[%s1 + $0x4] sm:$0xf]
    %v40 = vld [vmem:[%s1 + $0x8] sm:$0xf]
    %v41 = vld [vmem:[%s1 + $0xc] sm:$0xf]
    %v42 = vld [vmem:[%s2] sm:$0x1]
    %v44 = vperm.slane %v42, 0
    %v50 = vunpack.c.l.b16 %v38
    %v51 = vunpack.c.l.b16 %v39
    %v52 = vunpack.c.l.b16 %v40
    %v53 = vunpack.c.l.b16 %v41
    %v54 = vpack.c.b16 %v51, %v50
    %v55 = vpack.c.b16 %v53, %v52
    %vm58 = vcmask 261120
    %v60 = vsel %vm58, %v37, 0
    %62 = vmatpush.bf16.msra.mxu0 0
    %63 = vmatpush.bf16.msra.mxu0 0
    %64 = vmatpush.bf16.msra.mxu0 0
    %65 = vmatpush.bf16.msra.mxu0 0
    %66 = vmatpush.bf16.msra.mxu0 0
    %67 = vmatpush.bf16.msra.mxu0 0
    %68 = vmatpush.bf16.msra.mxu0 %v55
    %69 = vmatpush.bf16.msra.mxu0 %v54
    %70 = vmatmul.bf16.gmra.mxu0 %v60
    %v71 = vpop.f32.mrf.mxu0
    %v72 = vadd.f32 %v44, %v71
    %v73 = vpop.f32.mrf.mxu0
    %v74 = vadd.f32 %v44, %v73
    %75 = vdwg.mxu0
    %v76 = vmax.f32 %v72, 0.0
    %v77 = vmax.f32 %v74, 0.0
    %v78 = vld [vmem:[#allocation2] sm:$0xff]
    %v79 = vld [vmem:[#allocation2 + $0x8] sm:$0xff]
    %v80 = vpack.c.bf16 %v77, %v76
    %v81 = vld [vmem:[%s3] sm:$0xf]
    %v82 = vld [vmem:[%s3 + $0x4] sm:$0xf]
    %v83 = vld [vmem:[%s3 + $0x8] sm:$0xf]
    %v84 = vld [vmem:[%s3 + $0xc] sm:$0xf]
    %v85 = vld [vmem:[%s3 + $0x10] sm:$0xf]
    %v86 = vld [vmem:[%s3 + $0x14] sm:$0xf]
    %v87 = vld [vmem:[%s3 + $0x18] sm:$0xf]
    %v88 = vld [vmem:[%s3 + $0x1c] sm:$0xf]
    %v97 = vunpack.c.l.b16 %v81
    %v98 = vunpack.c.l.b16 %v82
    %v99 = vunpack.c.l.b16 %v83
    %v100 = vunpack.c.l.b16 %v84
    %v101 = vunpack.c.l.b16 %v85
    %v102 = vunpack.c.l.b16 %v86
    %v103 = vunpack.c.l.b16 %v87
    %v104 = vunpack.c.l.b16 %v88
    %v105 = vpack.c.b16 %v98, %v97
    %v106 = vpack.c.b16 %v100, %v99
    %v107 = vpack.c.b16 %v102, %v101
    %v108 = vpack.c.b16 %v104, %v103
    %vm113 = vcmask 523264
    %v115 = vsel %vm113, %v80, 0
    %117 = vmatpush.bf16.msra.mxu0 0
    %118 = vmatpush.bf16.msra.mxu0 0
    %119 = vmatpush.bf16.msra.mxu0 0
    %120 = vmatpush.bf16.msra.mxu0 0
    %121 = vmatpush.bf16.msra.mxu0 %v108
    %122 = vmatpush.bf16.msra.mxu0 %v107
    %123 = vmatpush.bf16.msra.mxu0 %v106
    %124 = vmatpush.bf16.msra.mxu0 %v105
    %125 = vmatmul.bf16.gmra.mxu0 %v115
    %v126 = vpop.f32.mrf.mxu0
    %v127 = vadd.f32 0.0, %v126
    %v128 = vpop.f32.mrf.mxu0
    %v129 = vadd.f32 0.0, %v128
    %130 = vdwg.mxu0
    %v131 = vadd.f32 %v78, %v127
    %v132 = vadd.f32 %v79, %v129
    %133 = vst.msk [vmem:[#allocation2] sm:$0xff] %vm58, %v131
    %134 = vst.msk [vmem:[#allocation2 + $0x8] sm:$0xff] %vm58, %v132
    // Predicated region
    $region34: #{decoder_forward.31} parent=1 // pred_check
      %p135 = pneg %p28
    $region35: #{decoder_forward.31} parent=1 // pred_check_branch
      %137 = sbr.rel (%p135) target = $region37
    $region36: #{decoder_forward.31} parent=1 // pred_region
      %v138 = vld [vmem:[#allocation2] sm:$0xff]
      %v139 = vld [vmem:[#allocation2 + $0x8] sm:$0xff]
      %v140 = vld [vmem:[%s4] sm:$0x1]
      %v142 = vperm.slane %v140, 0
      %v144 = vadd.f32 %v138, %v142
      %v145 = vadd.f32 %v139, %v142
      %v146 = vld [vmem:[%s0] sm:$0xff]
      %v147 = vld [vmem:[%s0 + $0x8] sm:$0xff]
      %v148 = vadd.f32 %v144, %v146
      %v149 = vadd.f32 %v145, %v147
      %v150 = vsel %vm58, %v148, 0.0
      %151 = vadd.xlane.f32.xlu0 %v150
      %v152 = vpop.xlane.xlu0 %151
      %v153 = vsel %vm58, %v149, 0.0
      %154 = vadd.xlane.f32.xlu0 %v153
      %v155 = vpop.xlane.xlu0 %154
      %v156 = vrcp.pop 32.0
      %v157 = vmul.f32 32.0, %v156
      %v158 = vsub.f32 1.0, %v157
      %v159 = vmul.f32 %v156, %v158
      %v160 = vadd.f32 %v156, %v159
      %vm161 = vweird.f32 %v156
      %v162 = vsel %vm161, %v156, %v160
      %v163 = vmul.f32 %v152, %v162
      %v164 = vmul.f32 %v155, %v162
      %v165 = vsub.f32 %v148, %v163
      %v166 = vsub.f32 %v149, %v164
      %v167 = vmul.f32 %v165, %v165
      %v168 = vmul.f32 %v166, %v166
      %v169 = vsel %vm58, %v167, 0.0
      %170 = vadd.xlane.f32.xlu0 %v169
      %v171 = vpop.xlane.xlu0 %170
      %v172 = vsel %vm58, %v168, 0.0
      %173 = vadd.xlane.f32.xlu0 %v172
      %v174 = vpop.xlane.xlu0 %173
      %v175 = vmul.f32 %v171, %v162
      %v176 = vmul.f32 %v174, %v162
      %v177 = vadd.f32 %v175, 1e-05
      %v178 = vadd.f32 %v176, 1e-05
      %v179 = vrsqrt.pop %v177
      %v180 = vmul.f32 %v179, %v177
      %v181 = vmul.f32 %v180, %v179
      %v182 = vmul.f32 0.5, %v181
      %v183 = vsub.f32 1.5, %v182
      %v184 = vmul.f32 %v179, %v183
      %vm185 = vweird.f32 %v177
      %vm186 = vweird.f32 %v179
      %vm187 = vmor %vm185, %vm186
      %v188 = vsel %vm187, %v179, %v184
      %v189 = vrsqrt.pop %v178
      %v190 = vmul.f32 %v189, %v178
      %v191 = vmul.f32 %v190, %v189
      %v192 = vmul.f32 0.5, %v191
      %v193 = vsub.f32 1.5, %v192
      %v194 = vmul.f32 %v189, %v193
      %vm195 = vweird.f32 %v178
      %vm196 = vweird.f32 %v189
      %vm197 = vmor %vm195, %vm196
      %v198 = vsel %vm197, %v189, %v194
      %v199 = vmul.f32 %v165, %v188
      %v200 = vmul.f32 %v166, %v198
      %v201 = vld [vmem:[%s5] sm:$0x1]
      %v203 = vperm.slane %v201, 0
      %v205 = vmul.f32 %v199, %v203
      %v206 = vmul.f32 %v200, %v203
      %v207 = vld [vmem:[%s6] sm:$0x1]
      %v209 = vperm.slane %v207, 0
      %v211 = vadd.f32 %v205, %v209
      %v212 = vadd.f32 %v206, %v209
      %213 = vst.msk [vmem:[#allocation3] sm:$0xff] %vm58, %v211
      %214 = vst.msk [vmem:[#allocation3 + $0x8] sm:$0xff] %vm58, %v212
    $region37: #{decoder_forward.31} parent=1 // pred_fallthru
      _
    // Predicated region
    $region38: #{decoder_forward.31} parent=1 // pred_check
      _
    $region39: #{decoder_forward.31} parent=1 // pred_check_branch
      %216 = sbr.rel (0) target = $region41
    $region40: #{decoder_forward.31} parent=1 // pred_region
      %218 = vsyncadd [#allocation4], 0
      %s219 = sshll.u32 [#allocation3], 4
      %s220 = int_to_ptr.vmem [resolvable:$true] %s219
      %s221 = sshll.u32 %s7, 4
      %s222 = int_to_ptr.hbm [resolvable:$true] %s221
      %227 = dma.vmem_to_hbm [thread:$0]  %s220, 256, %s222, [#allocation4], 128, 128, 8
    $region41: #{decoder_forward.31} parent=1 // pred_fallthru
      _
    // Predicated region
    $region42: #{decoder_forward.31} parent=1 // pred_check
      _
    $region43: #{decoder_forward.31} parent=1 // pred_check_branch
      %229 = sbr.rel (0) target = $region45
    $region44: #{decoder_forward.31} parent=1 // pred_region
      %231 = dma.done [#allocation4], 256
    $region45: #{decoder_forward.31} parent=1 // pred_fallthru
      _
    %232 = vsyncpa [#allocation4], 1

</llo_original>
